<compile_context>
chip_gen: v6e
topology: v6e:2x2x1
jax: 0.10.0
libtpu: 0.0.40
codegen_flags: <defaults>
</compile_context>

<pallas_src>
import functools

import jax
import jax.numpy as jnp
from jax.experimental import pallas as pl
from jax.experimental.pallas import tpu as pltpu


def _round_up(x, m):
    return (x + m - 1) // m * m


# -----------------------------------------------------------------------------
# Fused Pallas kernel (whole forward pass, single invocation, no grid)
# -----------------------------------------------------------------------------
def _fused_kernel(num_layers, T, Bp, H, *refs):
    """refs layout:
      inputs : x(T*Bp, E),
               per layer: wih(in, 8H)  (= [W_ih_fwd | W_ih_bwd] along N),
                          b(1, 8H), whh_f(H, 4H), whh_b(H, 4H),
               fcw_bwd(H, Vp), fcw_fwd(H, Vp), fcb(1, Vp)
      outputs: out(Bp, Vp)
      scratch: xproj(T*Bp, 8H), seq(T*Bp, 2H)   (seq cols 0:H fwd, H:2H bwd)
    """
    G = 4 * H
    n_in = 1 + 4 * num_layers + 3
    x_ref = refs[0]
    layer_refs = [refs[1 + 4 * l: 1 + 4 * (l + 1)] for l in range(num_layers)]
    fcw_bwd_ref, fcw_fwd_ref, fcb_ref = refs[n_in - 3:n_in]
    out_ref = refs[n_in]
    xproj, seq = refs[n_in + 1:]

    def lstm_cell(gates, c_prev):
        # One sigmoid + one tanh over the full (Bp, 4H) gate vreg, then slice.
        sg = jax.nn.sigmoid(gates)
        th = jnp.tanh(gates)
        i_g = sg[:, 0 * H:1 * H]
        f_g = sg[:, 1 * H:2 * H]
        g_g = th[:, 2 * H:3 * H]
        o_g = sg[:, 3 * H:4 * H]
        c_new = f_g * c_prev + i_g * g_g
        h_new = o_g * jnp.tanh(c_new)
        return h_new, c_new

    h_f = h_b = None
    for layer in range(num_layers):
        wih_ref, b_ref, whh_f_ref, whh_b_ref = layer_refs[layer]

        # Hoisted, fused input projection for BOTH directions (one matmul).
        xin = x_ref[...] if layer == 0 else seq[...]
        xproj[...] = (jnp.dot(xin, wih_ref[...],
                              preferred_element_type=jnp.float32)
                      + b_ref[...])

        # Keep the recurrent weights resident across the unrolled time loop.
        whh_f = whh_f_ref[...]
        whh_b = whh_b_ref[...]

        zeros = jnp.zeros((Bp, H), jnp.float32)
        h_f, c_f, h_b, c_b = zeros, zeros, zeros, zeros

        last_layer = (layer == num_layers - 1)

        # Interleaved fwd/bwd recurrence: two independent serial chains in one
        # fully-unrolled loop body.
        for s in range(T):
            tf = s
            tb = T - 1 - s
            gates_f = xproj[pl.ds(tf * Bp, Bp), 0:G]
            gates_b = xproj[pl.ds(tb * Bp, Bp), G:2 * G]
            if s > 0:  # step-0 peel: h == 0 -> recurrent matmul vanishes
                gates_f = gates_f + jnp.dot(h_f, whh_f,
                                            preferred_element_type=jnp.float32)
                gates_b = gates_b + jnp.dot(h_b, whh_b,
                                            preferred_element_type=jnp.float32)
            h_f, c_f = lstm_cell(gates_f, c_f)
            h_b, c_b = lstm_cell(gates_b, c_b)
            if not last_layer:  # last layer only needs its final h states
                seq[pl.ds(tf * Bp, Bp), 0:H] = h_f
                seq[pl.ds(tb * Bp, Bp), H:2 * H] = h_b

    # torch: cat((hidden_state[-1], hidden_state[-2]), -1) = (backward_final, forward_final)
    # TODO(synk): nn.Dropout(0.5) — eval-mode identity here (no RNG dropout applied).
    logits = (jnp.dot(h_b, fcw_bwd_ref[...], preferred_element_type=jnp.float32)
              + jnp.dot(h_f, fcw_fwd_ref[...], preferred_element_type=jnp.float32)
              + fcb_ref[...])
    out_ref[...] = jnp.maximum(logits, 0.0)


# -----------------------------------------------------------------------------
# One-time weight layout prep (hoisted OUT of the per-call forward)
# -----------------------------------------------------------------------------
def prepare_weights(params, num_layers):
    H = params["lstm"][0]["w_hh_f"].shape[0]
    V = params["fc_w_t"].shape[1]
    Vp = _round_up(max(V, 128), 128)

    weights = []
    for p in params["lstm"]:
        wih = jnp.concatenate([p["w_ih_f"], p["w_ih_b"]], axis=1)   # (in, 8H)
        b = jnp.concatenate([p["b_f"], p["b_b"]], axis=1)           # (1, 8H)
        weights += [wih, b, p["w_hh_f"], p["w_hh_b"]]

    fcw = params["fc_w_t"]
    weights += [
        jnp.pad(fcw[:H], ((0, 0), (0, Vp - V))),    # rows multiplying backward final h
        jnp.pad(fcw[H:], ((0, 0), (0, Vp - V))),    # rows multiplying forward final h
        jnp.pad(params["fc_b"], ((0, 0), (0, Vp - V))),
    ]
    return weights


# -----------------------------------------------------------------------------
# Forward: embedding gather (glue) + one fused pallas_call
# -----------------------------------------------------------------------------
@functools.partial(jax.jit, static_argnames=("num_layers", "vocab_size"))
def char_predictor_forward(x_tokens, embedding, weights, num_layers, vocab_size):
    B, T = x_tokens.shape
    H = weights[2].shape[0]          # w_hh_f of layer 0: (H, 4H)
    Vp = weights[-1].shape[1]
    Bp = _round_up(max(B, 8), 8)     # sublane-aligned batch

    # Gather embeddings directly in time-major flattened order.
    x_pad = jnp.pad(x_tokens, ((0, Bp - B), (0, 0)))
    x_flat = jnp.take(embedding, jnp.transpose(x_pad).reshape(-1), axis=0)   # (T*Bp, E)

    inputs = [x_flat] + list(weights)
    vmem = pl.BlockSpec(memory_space=pltpu.MemorySpace.VMEM)
    out_p = pl.pallas_call(
        functools.partial(_fused_kernel, num_layers, T, Bp, H),
        out_shape=jax.ShapeDtypeStruct((Bp, Vp), jnp.float32),
        in_specs=[vmem] * len(inputs),
        out_specs=vmem,
        scratch_shapes=[
            pltpu.VMEM((T * Bp, 8 * H), jnp.float32),   # fused xproj (both directions)
            pltpu.VMEM((T * Bp, 2 * H), jnp.float32),   # layer output seq [fwd | bwd]
        ],
    )(*inputs)
    return out_p[:B, :vocab_size]


# -----------------------------------------------------------------------------
# Pure-JAX reference (same math, unpadded) for correctness check
# -----------------------------------------------------------------------------
def ref_lstm_dir(x_seq, w_ih_t, w_hh_t, b):
    T, B, _ = x_seq.shape
    H = w_hh_t.shape[0]
    h = jnp.zeros((B, H), jnp.float32)
    c = jnp.zeros((B, H), jnp.float32)
    hs = []
    for t in range(T):
        gates = x_seq[t] @ w_ih_t + h @ w_hh_t + b
        i_g = jax.nn.sigmoid(gates[:, :H])
        f_g = jax.nn.sigmoid(gates[:, H:2 * H])
        g_g = jnp.tanh(gates[:, 2 * H:3 * H])
        o_g = jax.nn.sigmoid(gates[:, 3 * H:])
        c = f_g * c + i_g * g_g
        h = o_g * jnp.tanh(c)
        hs.append(h)
    return jnp.stack(hs), h, c


def ref_forward(x_tokens, params, num_layers):
    emb = jnp.take(params["embedding"], x_tokens, axis=0)
    inp = jnp.transpose(emb, (1, 0, 2))
    hfin_fwd = hfin_bwd = None
    for layer in range(num_layers):
        p = params["lstm"][layer]
        hseq_f, hfin_fwd, _ = ref_lstm_dir(inp, p["w_ih_f"], p["w_hh_f"], p["b_f"])
        hseq_b_rev, hfin_bwd, _ = ref_lstm_dir(inp[::-1], p["w_ih_b"], p["w_hh_b"], p["b_b"])
        hseq_b = hseq_b_rev[::-1]
        inp = jnp.concatenate([hseq_f, hseq_b], axis=-1)
    hidden = jnp.concatenate([hfin_bwd, hfin_fwd], axis=-1)
    return jnp.maximum(hidden @ params["fc_w_t"] + params["fc_b"], 0.0)


# -----------------------------------------------------------------------------
# Deterministic parameter init (synthetic; mirrors the module's shapes)
# -----------------------------------------------------------------------------
def init_params(key, vocab_size, embedding_dim, hidden_dim, num_layers, pad_id):
    H = hidden_dim
    k = 1.0 / jnp.sqrt(jnp.float32(H))
    keys = iter(jax.random.split(key, 8 * num_layers + 4))

    emb = 0.1 * jax.random.normal(next(keys), (vocab_size, embedding_dim), jnp.float32)
    emb = emb.at[pad_id].set(0.0)          # padding_idx row is zero

    lstm_params = []
    in_dim = embedding_dim
    for _ in range(num_layers):
        def u(shape):
            return jax.random.uniform(next(keys), shape, jnp.float32, -k, k)
        layer = {
            # stored pre-transposed: (in, 4H) and (H, 4H), gate order (i,f,g,o)
            "w_ih_f": u((in_dim, 4 * H)),
            "w_hh_f": u((H, 4 * H)),
            "b_f":    u((1, 4 * H)) + u((1, 4 * H)),   # b_ih + b_hh
            "w_ih_b": u((in_dim, 4 * H)),
            "w_hh_b": u((H, 4 * H)),
            "b_b":    u((1, 4 * H)) + u((1, 4 * H)),
        }
        lstm_params.append(layer)
        in_dim = 2 * H

    kf = 1.0 / jnp.sqrt(jnp.float32(2 * H))
    fc_w_t = jax.random.uniform(next(keys), (2 * H, vocab_size), jnp.float32, -kf, kf)
    fc_b = jax.random.uniform(next(keys), (1, vocab_size), jnp.float32, -kf, kf)

    return {"embedding": emb, "lstm": lstm_params, "fc_w_t": fc_w_t, "fc_b": fc_b}


if __name__ == "__main__":
    VOCAB, EMB, HID, LAYERS, PAD = 32, 16, 32, 2, 0
    B, T = 2, 8

    root = jax.random.PRNGKey(0)
    k_param, k_tok = jax.random.split(root)
    params = init_params(k_param, VOCAB, EMB, HID, LAYERS, PAD)
    x = jax.random.randint(k_tok, (B, T), 0, VOCAB, dtype=jnp.int32)

    # One-time weight layout prep, outside the per-call forward.
    weights = prepare_weights(params, LAYERS)

    out = char_predictor_forward(x, params["embedding"], weights,
                                 num_layers=LAYERS, vocab_size=VOCAB)
    out = jax.block_until_ready(out)
    assert out.shape == (B, VOCAB), out.shape

    ref = ref_forward(x, params, LAYERS)
    assert jnp.allclose(out, ref, atol=1e-4, rtol=1e-4), (
        float(jnp.max(jnp.abs(out - ref))))

    print("KERNEL_OK")
</pallas_src>

<mosaic_0001>
module attributes {stable_mosaic.version = 11 : i64} {
  func.func @_fused_kernel(%arg0: memref<64x16xf32, #tpu.memory_space<vmem>>, %arg1: memref<16x256xf32, #tpu.memory_space<vmem>>, %arg2: memref<1x256xf32, #tpu.memory_space<vmem>>, %arg3: memref<32x128xf32, #tpu.memory_space<vmem>>, %arg4: memref<32x128xf32, #tpu.memory_space<vmem>>, %arg5: memref<64x256xf32, #tpu.memory_space<vmem>>, %arg6: memref<1x256xf32, #tpu.memory_space<vmem>>, %arg7: memref<32x128xf32, #tpu.memory_space<vmem>>, %arg8: memref<32x128xf32, #tpu.memory_space<vmem>>, %arg9: memref<32x128xf32, #tpu.memory_space<vmem>>, %arg10: memref<32x128xf32, #tpu.memory_space<vmem>>, %arg11: memref<1x128xf32, #tpu.memory_space<vmem>>, %arg12: memref<8x128xf32, #tpu.memory_space<vmem>>, %arg13: memref<64x256xf32, #tpu.memory_space<vmem>>, %arg14: memref<64x64xf32, #tpu.memory_space<vmem>>) attributes {dimension_semantics = [], scalar_prefetch = 0 : i64, scratch_operands = 2 : i64, tpu.core_type = #tpu.core_type<tc>} {
    %c0 = arith.constant 0 : index
    %c0_0 = arith.constant 0 : index
    %0 = vector.load %arg0[%c0, %c0_0] : memref<64x16xf32, #tpu.memory_space<vmem>>, vector<64x16xf32>
    %c0_1 = arith.constant 0 : index
    %c0_2 = arith.constant 0 : index
    %1 = vector.load %arg1[%c0_1, %c0_2] : memref<16x256xf32, #tpu.memory_space<vmem>>, vector<16x256xf32>
    %cst = arith.constant dense<0.000000e+00> : vector<64x256xf32>
    %2 = tpu.matmul %0, %1, %cst {dimension_numbers = #tpu.dot_dimension_numbers<[1], [0], [0], [1], [0, 0, 1, 1], [], []>} : vector<64x16xf32>, vector<16x256xf32>, vector<64x256xf32> -> vector<64x256xf32>
    %c0_3 = arith.constant 0 : index
    %c0_4 = arith.constant 0 : index
    %3 = vector.load %arg2[%c0_3, %c0_4] : memref<1x256xf32, #tpu.memory_space<vmem>>, vector<1x256xf32>
    %4 = vector.broadcast %3 : vector<1x256xf32> to vector<64x256xf32>
    %5 = arith.addf %2, %4 : vector<64x256xf32>
    %c0_5 = arith.constant 0 : index
    %c0_6 = arith.constant 0 : index
    %6 = vector.load %arg13[%c0_5, %c0_6] : memref<64x256xf32, #tpu.memory_space<vmem>>, vector<64x256xf32>
    tpu.vector_store %arg13[%c0_5, %c0_6], %5 {strides = array<i32>} : memref<64x256xf32, #tpu.memory_space<vmem>>, vector<64x256xf32>,
    %c0_7 = arith.constant 0 : index
    %c0_8 = arith.constant 0 : index
    %7 = vector.load %arg3[%c0_7, %c0_8] : memref<32x128xf32, #tpu.memory_space<vmem>>, vector<32x128xf32>
    %c0_9 = arith.constant 0 : index
    %c0_10 = arith.constant 0 : index
    %8 = vector.load %arg4[%c0_9, %c0_10] : memref<32x128xf32, #tpu.memory_space<vmem>>, vector<32x128xf32>
    %cst_11 = arith.constant 0.000000e+00 : f32
    %9 = vector.broadcast %cst_11 : f32 to vector<8x32xf32>
    %c0_12 = arith.constant 0 : index
    %c0_13 = arith.constant 0 : index
    %10 = vector.load %arg13[%c0_12, %c0_13] : memref<64x256xf32, #tpu.memory_space<vmem>>, vector<8x128xf32>
    %c56 = arith.constant 56 : index
    %c128 = arith.constant 128 : index
    %11 = vector.load %arg13[%c56, %c128] : memref<64x256xf32, #tpu.memory_space<vmem>>, vector<8x128xf32>
    %12 = arith.negf %10 : vector<8x128xf32>
    %13 = math.exp %12 : vector<8x128xf32>
    %cst_14 = arith.constant 1.000000e+00 : f32
    %14 = vector.broadcast %cst_14 : f32 to vector<8x128xf32>
    %15 = arith.addf %14, %13 : vector<8x128xf32>
    %16 = arith.divf %14, %15 : vector<8x128xf32>
    %17 = math.tanh %10 : vector<8x128xf32>
    %18 = vector.extract_strided_slice %16 {offsets = [0, 0], sizes = [8, 32], strides = [1, 1]} : vector<8x128xf32> to vector<8x32xf32>
    %19 = vector.extract_strided_slice %16 {offsets = [0, 32], sizes = [8, 32], strides = [1, 1]} : vector<8x128xf32> to vector<8x32xf32>
    %20 = vector.extract_strided_slice %17 {offsets = [0, 64], sizes = [8, 32], strides = [1, 1]} : vector<8x128xf32> to vector<8x32xf32>
    %21 = vector.extract_strided_slice %16 {offsets = [0, 96], sizes = [8, 32], strides = [1, 1]} : vector<8x128xf32> to vector<8x32xf32>
    %22 = arith.mulf %19, %9 : vector<8x32xf32>
    %23 = arith.mulf %18, %20 : vector<8x32xf32>
    %24 = arith.addf %22, %23 : vector<8x32xf32>
    %25 = math.tanh %24 : vector<8x32xf32>
    %26 = arith.mulf %21, %25 : vector<8x32xf32>
    %27 = arith.negf %11 : vector<8x128xf32>
    %28 = math.exp %27 : vector<8x128xf32>
    %cst_15 = arith.constant 1.000000e+00 : f32
    %29 = vector.broadcast %cst_15 : f32 to vector<8x128xf32>
    %30 = arith.addf %29, %28 : vector<8x128xf32>
    %31 = arith.divf %29, %30 : vector<8x128xf32>
    %32 = math.tanh %11 : vector<8x128xf32>
    %33 = vector.extract_strided_slice %31 {offsets = [0, 0], sizes = [8, 32], strides = [1, 1]} : vector<8x128xf32> to vector<8x32xf32>
    %34 = vector.extract_strided_slice %31 {offsets = [0, 32], sizes = [8, 32], strides = [1, 1]} : vector<8x128xf32> to vector<8x32xf32>
    %35 = vector.extract_strided_slice %32 {offsets = [0, 64], sizes = [8, 32], strides = [1, 1]} : vector<8x128xf32> to vector<8x32xf32>
    %36 = vector.extract_strided_slice %31 {offsets = [0, 96], sizes = [8, 32], strides = [1, 1]} : vector<8x128xf32> to vector<8x32xf32>
    %37 = arith.mulf %34, %9 : vector<8x32xf32>
    %38 = arith.mulf %33, %35 : vector<8x32xf32>
    %39 = arith.addf %37, %38 : vector<8x32xf32>
    %40 = math.tanh %39 : vector<8x32xf32>
    %41 = arith.mulf %36, %40 : vector<8x32xf32>
    %c0_16 = arith.constant 0 : index
    %c0_17 = arith.constant 0 : index
    %42 = vector.load %arg14[%c0_16, %c0_17] : memref<64x64xf32, #tpu.memory_space<vmem>>, vector<8x32xf32>
    tpu.vector_store %arg14[%c0_16, %c0_17], %26 {strides = array<i32>} : memref<64x64xf32, #tpu.memory_space<vmem>>, vector<8x32xf32>,
    %c56_18 = arith.constant 56 : index
    %c32 = arith.constant 32 : index
    %43 = vector.load %arg14[%c56_18, %c32] : memref<64x64xf32, #tpu.memory_space<vmem>>, vector<8x32xf32>
    tpu.vector_store %arg14[%c56_18, %c32], %41 {strides = array<i32>} : memref<64x64xf32, #tpu.memory_space<vmem>>, vector<8x32xf32>,
    %c8 = arith.constant 8 : index
    %c0_19 = arith.constant 0 : index
    %44 = vector.load %arg13[%c8, %c0_19] : memref<64x256xf32, #tpu.memory_space<vmem>>, vector<8x128xf32>
    %c48 = arith.constant 48 : index
    %c128_20 = arith.constant 128 : index
    %45 = vector.load %arg13[%c48, %c128_20] : memref<64x256xf32, #tpu.memory_space<vmem>>, vector<8x128xf32>
    %cst_21 = arith.constant dense<0.000000e+00> : vector<8x128xf32>
    %46 = tpu.matmul %26, %7, %cst_21 {dimension_numbers = #tpu.dot_dimension_numbers<[1], [0], [0], [1], [0, 0, 1, 1], [], []>} : vector<8x32xf32>, vector<32x128xf32>, vector<8x128xf32> -> vector<8x128xf32>
    %47 = arith.addf %44, %46 : vector<8x128xf32>
    %cst_22 = arith.constant dense<0.000000e+00> : vector<8x128xf32>
    %48 = tpu.matmul %41, %8, %cst_22 {dimension_numbers = #tpu.dot_dimension_numbers<[1], [0], [0], [1], [0, 0, 1, 1], [], []>} : vector<8x32xf32>, vector<32x128xf32>, vector<8x128xf32> -> vector<8x128xf32>
    %49 = arith.addf %45, %48 : vector<8x128xf32>
    %50 = arith.negf %47 : vector<8x128xf32>
    %51 = math.exp %50 : vector<8x128xf32>
    %cst_23 = arith.constant 1.000000e+00 : f32
    %52 = vector.broadcast %cst_23 : f32 to vector<8x128xf32>
    %53 = arith.addf %52, %51 : vector<8x128xf32>
    %54 = arith.divf %52, %53 : vector<8x128xf32>
    %55 = math.tanh %47 : vector<8x128xf32>
    %56 = vector.extract_strided_slice %54 {offsets = [0, 0], sizes = [8, 32], strides = [1, 1]} : vector<8x128xf32> to vector<8x32xf32>
    %57 = vector.extract_strided_slice %54 {offsets = [0, 32], sizes = [8, 32], strides = [1, 1]} : vector<8x128xf32> to vector<8x32xf32>
    %58 = vector.extract_strided_slice %55 {offsets = [0, 64], sizes = [8, 32], strides = [1, 1]} : vector<8x128xf32> to vector<8x32xf32>
    %59 = vector.extract_strided_slice %54 {offsets = [0, 96], sizes = [8, 32], strides = [1, 1]} : vector<8x128xf32> to vector<8x32xf32>
    %60 = arith.mulf %57, %24 : vector<8x32xf32>
    %61 = arith.mulf %56, %58 : vector<8x32xf32>
    %62 = arith.addf %60, %61 : vector<8x32xf32>
    %63 = math.tanh %62 : vector<8x32xf32>
    %64 = arith.mulf %59, %63 : vector<8x32xf32>
    %65 = arith.negf %49 : vector<8x128xf32>
    %66 = math.exp %65 : vector<8x128xf32>
    %cst_24 = arith.constant 1.000000e+00 : f32
    %67 = vector.broadcast %cst_24 : f32 to vector<8x128xf32>
    %68 = arith.addf %67, %66 : vector<8x128xf32>
    %69 = arith.divf %67, %68 : vector<8x128xf32>
    %70 = math.tanh %49 : vector<8x128xf32>
    %71 = vector.extract_strided_slice %69 {offsets = [0, 0], sizes = [8, 32], strides = [1, 1]} : vector<8x128xf32> to vector<8x32xf32>
    %72 = vector.extract_strided_slice %69 {offsets = [0, 32], sizes = [8, 32], strides = [1, 1]} : vector<8x128xf32> to vector<8x32xf32>
    %73 = vector.extract_strided_slice %70 {offsets = [0, 64], sizes = [8, 32], strides = [1, 1]} : vector<8x128xf32> to vector<8x32xf32>
    %74 = vector.extract_strided_slice %69 {offsets = [0, 96], sizes = [8, 32], strides = [1, 1]} : vector<8x128xf32> to vector<8x32xf32>
    %75 = arith.mulf %72, %39 : vector<8x32xf32>
    %76 = arith.mulf %71, %73 : vector<8x32xf32>
    %77 = arith.addf %75, %76 : vector<8x32xf32>
    %78 = math.tanh %77 : vector<8x32xf32>
    %79 = arith.mulf %74, %78 : vector<8x32xf32>
    %c8_25 = arith.constant 8 : index
    %c0_26 = arith.constant 0 : index
    %80 = vector.load %arg14[%c8_25, %c0_26] : memref<64x64xf32, #tpu.memory_space<vmem>>, vector<8x32xf32>
    tpu.vector_store %arg14[%c8_25, %c0_26], %64 {strides = array<i32>} : memref<64x64xf32, #tpu.memory_space<vmem>>, vector<8x32xf32>,
    %c48_27 = arith.constant 48 : index
    %c32_28 = arith.constant 32 : index
    %81 = vector.load %arg14[%c48_27, %c32_28] : memref<64x64xf32, #tpu.memory_space<vmem>>, vector<8x32xf32>
    tpu.vector_store %arg14[%c48_27, %c32_28], %79 {strides = array<i32>} : memref<64x64xf32, #tpu.memory_space<vmem>>, vector<8x32xf32>,
    %c16 = arith.constant 16 : index
    %c0_29 = arith.constant 0 : index
    %82 = vector.load %arg13[%c16, %c0_29] : memref<64x256xf32, #tpu.memory_space<vmem>>, vector<8x128xf32>
    %c40 = arith.constant 40 : index
    %c128_30 = arith.constant 128 : index
    %83 = vector.load %arg13[%c40, %c128_30] : memref<64x256xf32, #tpu.memory_space<vmem>>, vector<8x128xf32>
    %cst_31 = arith.constant dense<0.000000e+00> : vector<8x128xf32>
    %84 = tpu.matmul %64, %7, %cst_31 {dimension_numbers = #tpu.dot_dimension_numbers<[1], [0], [0], [1], [0, 0, 1, 1], [], []>} : vector<8x32xf32>, vector<32x128xf32>, vector<8x128xf32> -> vector<8x128xf32>
    %85 = arith.addf %82, %84 : vector<8x128xf32>
    %cst_32 = arith.constant dense<0.000000e+00> : vector<8x128xf32>
    %86 = tpu.matmul %79, %8, %cst_32 {dimension_numbers = #tpu.dot_dimension_numbers<[1], [0], [0], [1], [0, 0, 1, 1], [], []>} : vector<8x32xf32>, vector<32x128xf32>, vector<8x128xf32> -> vector<8x128xf32>
    %87 = arith.addf %83, %86 : vector<8x128xf32>
    %88 = arith.negf %85 : vector<8x128xf32>
    %89 = math.exp %88 : vector<8x128xf32>
    %cst_33 = arith.constant 1.000000e+00 : f32
    %90 = vector.broadcast %cst_33 : f32 to vector<8x128xf32>
    %91 = arith.addf %90, %89 : vector<8x128xf32>
    %92 = arith.divf %90, %91 : vector<8x128xf32>
    %93 = math.tanh %85 : vector<8x128xf32>
    %94 = vector.extract_strided_slice %92 {offsets = [0, 0], sizes = [8, 32], strides = [1, 1]} : vector<8x128xf32> to vector<8x32xf32>
    %95 = vector.extract_strided_slice %92 {offsets = [0, 32], sizes = [8, 32], strides = [1, 1]} : vector<8x128xf32> to vector<8x32xf32>
    %96 = vector.extract_strided_slice %93 {offsets = [0, 64], sizes = [8, 32], strides = [1, 1]} : vector<8x128xf32> to vector<8x32xf32>
    %97 = vector.extract_strided_slice %92 {offsets = [0, 96], sizes = [8, 32], strides = [1, 1]} : vector<8x128xf32> to vector<8x32xf32>
    %98 = arith.mulf %95, %62 : vector<8x32xf32>
    %99 = arith.mulf %94, %96 : vector<8x32xf32>
    %100 = arith.addf %98, %99 : vector<8x32xf32>
    %101 = math.tanh %100 : vector<8x32xf32>
    %102 = arith.mulf %97, %101 : vector<8x32xf32>
    %103 = arith.negf %87 : vector<8x128xf32>
    %104 = math.exp %103 : vector<8x128xf32>
    %cst_34 = arith.constant 1.000000e+00 : f32
    %105 = vector.broadcast %cst_34 : f32 to vector<8x128xf32>
    %106 = arith.addf %105, %104 : vector<8x128xf32>
    %107 = arith.divf %105, %106 : vector<8x128xf32>
    %108 = math.tanh %87 : vector<8x128xf32>
    %109 = vector.extract_strided_slice %107 {offsets = [0, 0], sizes = [8, 32], strides = [1, 1]} : vector<8x128xf32> to vector<8x32xf32>
    %110 = vector.extract_strided_slice %107 {offsets = [0, 32], sizes = [8, 32], strides = [1, 1]} : vector<8x128xf32> to vector<8x32xf32>
    %111 = vector.extract_strided_slice %108 {offsets = [0, 64], sizes = [8, 32], strides = [1, 1]} : vector<8x128xf32> to vector<8x32xf32>
    %112 = vector.extract_strided_slice %107 {offsets = [0, 96], sizes = [8, 32], strides = [1, 1]} : vector<8x128xf32> to vector<8x32xf32>
    %113 = arith.mulf %110, %77 : vector<8x32xf32>
    %114 = arith.mulf %109, %111 : vector<8x32xf32>
    %115 = arith.addf %113, %114 : vector<8x32xf32>
    %116 = math.tanh %115 : vector<8x32xf32>
    %117 = arith.mulf %112, %116 : vector<8x32xf32>
    %c16_35 = arith.constant 16 : index
    %c0_36 = arith.constant 0 : index
    %118 = vector.load %arg14[%c16_35, %c0_36] : memref<64x64xf32, #tpu.memory_space<vmem>>, vector<8x32xf32>
    tpu.vector_store %arg14[%c16_35, %c0_36], %102 {strides = array<i32>} : memref<64x64xf32, #tpu.memory_space<vmem>>, vector<8x32xf32>,
    %c40_37 = arith.constant 40 : index
    %c32_38 = arith.constant 32 : index
    %119 = vector.load %arg14[%c40_37, %c32_38] : memref<64x64xf32, #tpu.memory_space<vmem>>, vector<8x32xf32>
    tpu.vector_store %arg14[%c40_37, %c32_38], %117 {strides = array<i32>} : memref<64x64xf32, #tpu.memory_space<vmem>>, vector<8x32xf32>,
    %c24 = arith.constant 24 : index
    %c0_39 = arith.constant 0 : index
    %120 = vector.load %arg13[%c24, %c0_39] : memref<64x256xf32, #tpu.memory_space<vmem>>, vector<8x128xf32>
    %c32_40 = arith.constant 32 : index
    %c128_41 = arith.constant 128 : index
    %121 = vector.load %arg13[%c32_40, %c128_41] : memref<64x256xf32, #tpu.memory_space<vmem>>, vector<8x128xf32>
    %cst_42 = arith.constant dense<0.000000e+00> : vector<8x128xf32>
    %122 = tpu.matmul %102, %7, %cst_42 {dimension_numbers = #tpu.dot_dimension_numbers<[1], [0], [0], [1], [0, 0, 1, 1], [], []>} : vector<8x32xf32>, vector<32x128xf32>, vector<8x128xf32> -> vector<8x128xf32>
    %123 = arith.addf %120, %122 : vector<8x128xf32>
    %cst_43 = arith.constant dense<0.000000e+00> : vector<8x128xf32>
    %124 = tpu.matmul %117, %8, %cst_43 {dimension_numbers = #tpu.dot_dimension_numbers<[1], [0], [0], [1], [0, 0, 1, 1], [], []>} : vector<8x32xf32>, vector<32x128xf32>, vector<8x128xf32> -> vector<8x128xf32>
    %125 = arith.addf %121, %124 : vector<8x128xf32>
    %126 = arith.negf %123 : vector<8x128xf32>
    %127 = math.exp %126 : vector<8x128xf32>
    %cst_44 = arith.constant 1.000000e+00 : f32
    %128 = vector.broadcast %cst_44 : f32 to vector<8x128xf32>
    %129 = arith.addf %128, %127 : vector<8x128xf32>
    %130 = arith.divf %128, %129 : vector<8x128xf32>
    %131 = math.tanh %123 : vector<8x128xf32>
    %132 = vector.extract_strided_slice %130 {offsets = [0, 0], sizes = [8, 32], strides = [1, 1]} : vector<8x128xf32> to vector<8x32xf32>
    %133 = vector.extract_strided_slice %130 {offsets = [0, 32], sizes = [8, 32], strides = [1, 1]} : vector<8x128xf32> to vector<8x32xf32>
    %134 = vector.extract_strided_slice %131 {offsets = [0, 64], sizes = [8, 32], strides = [1, 1]} : vector<8x128xf32> to vector<8x32xf32>
    %135 = vector.extract_strided_slice %130 {offsets = [0, 96], sizes = [8, 32], strides = [1, 1]} : vector<8x128xf32> to vector<8x32xf32>
    %136 = arith.mulf %133, %100 : vector<8x32xf32>
    %137 = arith.mulf %132, %134 : vector<8x32xf32>
    %138 = arith.addf %136, %137 : vector<8x32xf32>
    %139 = math.tanh %138 : vector<8x32xf32>
    %140 = arith.mulf %135, %139 : vector<8x32xf32>
    %141 = arith.negf %125 : vector<8x128xf32>
    %142 = math.exp %141 : vector<8x128xf32>
    %cst_45 = arith.constant 1.000000e+00 : f32
    %143 = vector.broadcast %cst_45 : f32 to vector<8x128xf32>
    %144 = arith.addf %143, %142 : vector<8x128xf32>
    %145 = arith.divf %143, %144 : vector<8x128xf32>
    %146 = math.tanh %125 : vector<8x128xf32>
    %147 = vector.extract_strided_slice %145 {offsets = [0, 0], sizes = [8, 32], strides = [1, 1]} : vector<8x128xf32> to vector<8x32xf32>
    %148 = vector.extract_strided_slice %145 {offsets = [0, 32], sizes = [8, 32], strides = [1, 1]} : vector<8x128xf32> to vector<8x32xf32>
    %149 = vector.extract_strided_slice %146 {offsets = [0, 64], sizes = [8, 32], strides = [1, 1]} : vector<8x128xf32> to vector<8x32xf32>
    %150 = vector.extract_strided_slice %145 {offsets = [0, 96], sizes = [8, 32], strides = [1, 1]} : vector<8x128xf32> to vector<8x32xf32>
    %151 = arith.mulf %148, %115 : vector<8x32xf32>
    %152 = arith.mulf %147, %149 : vector<8x32xf32>
    %153 = arith.addf %151, %152 : vector<8x32xf32>
    %154 = math.tanh %153 : vector<8x32xf32>
    %155 = arith.mulf %150, %154 : vector<8x32xf32>
    %c24_46 = arith.constant 24 : index
    %c0_47 = arith.constant 0 : index
    %156 = vector.load %arg14[%c24_46, %c0_47] : memref<64x64xf32, #tpu.memory_space<vmem>>, vector<8x32xf32>
    tpu.vector_store %arg14[%c24_46, %c0_47], %140 {strides = array<i32>} : memref<64x64xf32, #tpu.memory_space<vmem>>, vector<8x32xf32>,
    %c32_48 = arith.constant 32 : index
    %c32_49 = arith.constant 32 : index
    %157 = vector.load %arg14[%c32_48, %c32_49] : memref<64x64xf32, #tpu.memory_space<vmem>>, vector<8x32xf32>
    tpu.vector_store %arg14[%c32_48, %c32_49], %155 {strides = array<i32>} : memref<64x64xf32, #tpu.memory_space<vmem>>, vector<8x32xf32>,
    %c32_50 = arith.constant 32 : index
    %c0_51 = arith.constant 0 : index
    %158 = vector.load %arg13[%c32_50, %c0_51] : memref<64x256xf32, #tpu.memory_space<vmem>>, vector<8x128xf32>
    %c24_52 = arith.constant 24 : index
    %c128_53 = arith.constant 128 : index
    %159 = vector.load %arg13[%c24_52, %c128_53] : memref<64x256xf32, #tpu.memory_space<vmem>>, vector<8x128xf32>
    %cst_54 = arith.constant dense<0.000000e+00> : vector<8x128xf32>
    %160 = tpu.matmul %140, %7, %cst_54 {dimension_numbers = #tpu.dot_dimension_numbers<[1], [0], [0], [1], [0, 0, 1, 1], [], []>} : vector<8x32xf32>, vector<32x128xf32>, vector<8x128xf32> -> vector<8x128xf32>
    %161 = arith.addf %158, %160 : vector<8x128xf32>
    %cst_55 = arith.constant dense<0.000000e+00> : vector<8x128xf32>
    %162 = tpu.matmul %155, %8, %cst_55 {dimension_numbers = #tpu.dot_dimension_numbers<[1], [0], [0], [1], [0, 0, 1, 1], [], []>} : vector<8x32xf32>, vector<32x128xf32>, vector<8x128xf32> -> vector<8x128xf32>
    %163 = arith.addf %159, %162 : vector<8x128xf32>
    %164 = arith.negf %161 : vector<8x128xf32>
    %165 = math.exp %164 : vector<8x128xf32>
    %cst_56 = arith.constant 1.000000e+00 : f32
    %166 = vector.broadcast %cst_56 : f32 to vector<8x128xf32>
    %167 = arith.addf %166, %165 : vector<8x128xf32>
    %168 = arith.divf %166, %167 : vector<8x128xf32>
    %169 = math.tanh %161 : vector<8x128xf32>
    %170 = vector.extract_strided_slice %168 {offsets = [0, 0], sizes = [8, 32], strides = [1, 1]} : vector<8x128xf32> to vector<8x32xf32>
    %171 = vector.extract_strided_slice %168 {offsets = [0, 32], sizes = [8, 32], strides = [1, 1]} : vector<8x128xf32> to vector<8x32xf32>
    %172 = vector.extract_strided_slice %169 {offsets = [0, 64], sizes = [8, 32], strides = [1, 1]} : vector<8x128xf32> to vector<8x32xf32>
    %173 = vector.extract_strided_slice %168 {offsets = [0, 96], sizes = [8, 32], strides = [1, 1]} : vector<8x128xf32> to vector<8x32xf32>
    %174 = arith.mulf %171, %138 : vector<8x32xf32>
    %175 = arith.mulf %170, %172 : vector<8x32xf32>
    %176 = arith.addf %174, %175 : vector<8x32xf32>
    %177 = math.tanh %176 : vector<8x32xf32>
    %178 = arith.mulf %173, %177 : vector<8x32xf32>
    %179 = arith.negf %163 : vector<8x128xf32>
    %180 = math.exp %179 : vector<8x128xf32>
    %cst_57 = arith.constant 1.000000e+00 : f32
    %181 = vector.broadcast %cst_57 : f32 to vector<8x128xf32>
    %182 = arith.addf %181, %180 : vector<8x128xf32>
    %183 = arith.divf %181, %182 : vector<8x128xf32>
    %184 = math.tanh %163 : vector<8x128xf32>
    %185 = vector.extract_strided_slice %183 {offsets = [0, 0], sizes = [8, 32], strides = [1, 1]} : vector<8x128xf32> to vector<8x32xf32>
    %186 = vector.extract_strided_slice %183 {offsets = [0, 32], sizes = [8, 32], strides = [1, 1]} : vector<8x128xf32> to vector<8x32xf32>
    %187 = vector.extract_strided_slice %184 {offsets = [0, 64], sizes = [8, 32], strides = [1, 1]} : vector<8x128xf32> to vector<8x32xf32>
    %188 = vector.extract_strided_slice %183 {offsets = [0, 96], sizes = [8, 32], strides = [1, 1]} : vector<8x128xf32> to vector<8x32xf32>
    %189 = arith.mulf %186, %153 : vector<8x32xf32>
    %190 = arith.mulf %185, %187 : vector<8x32xf32>
    %191 = arith.addf %189, %190 : vector<8x32xf32>
    %192 = math.tanh %191 : vector<8x32xf32>
    %193 = arith.mulf %188, %192 : vector<8x32xf32>
    %c32_58 = arith.constant 32 : index
    %c0_59 = arith.constant 0 : index
    %194 = vector.load %arg14[%c32_58, %c0_59] : memref<64x64xf32, #tpu.memory_space<vmem>>, vector<8x32xf32>
    tpu.vector_store %arg14[%c32_58, %c0_59], %178 {strides = array<i32>} : memref<64x64xf32, #tpu.memory_space<vmem>>, vector<8x32xf32>,
    %c24_60 = arith.constant 24 : index
    %c32_61 = arith.constant 32 : index
    %195 = vector.load %arg14[%c24_60, %c32_61] : memref<64x64xf32, #tpu.memory_space<vmem>>, vector<8x32xf32>
    tpu.vector_store %arg14[%c24_60, %c32_61], %193 {strides = array<i32>} : memref<64x64xf32, #tpu.memory_space<vmem>>, vector<8x32xf32>,
    %c40_62 = arith.constant 40 : index
    %c0_63 = arith.constant 0 : index
    %196 = vector.load %arg13[%c40_62, %c0_63] : memref<64x256xf32, #tpu.memory_space<vmem>>, vector<8x128xf32>
    %c16_64 = arith.constant 16 : index
    %c128_65 = arith.constant 128 : index
    %197 = vector.load %arg13[%c16_64, %c128_65] : memref<64x256xf32, #tpu.memory_space<vmem>>, vector<8x128xf32>
    %cst_66 = arith.constant dense<0.000000e+00> : vector<8x128xf32>
    %198 = tpu.matmul %178, %7, %cst_66 {dimension_numbers = #tpu.dot_dimension_numbers<[1], [0], [0], [1], [0, 0, 1, 1], [], []>} : vector<8x32xf32>, vector<32x128xf32>, vector<8x128xf32> -> vector<8x128xf32>
    %199 = arith.addf %196, %198 : vector<8x128xf32>
    %cst_67 = arith.constant dense<0.000000e+00> : vector<8x128xf32>
    %200 = tpu.matmul %193, %8, %cst_67 {dimension_numbers = #tpu.dot_dimension_numbers<[1], [0], [0], [1], [0, 0, 1, 1], [], []>} : vector<8x32xf32>, vector<32x128xf32>, vector<8x128xf32> -> vector<8x128xf32>
    %201 = arith.addf %197, %200 : vector<8x128xf32>
    %202 = arith.negf %199 : vector<8x128xf32>
    %203 = math.exp %202 : vector<8x128xf32>
    %cst_68 = arith.constant 1.000000e+00 : f32
    %204 = vector.broadcast %cst_68 : f32 to vector<8x128xf32>
    %205 = arith.addf %204, %203 : vector<8x128xf32>
    %206 = arith.divf %204, %205 : vector<8x128xf32>
    %207 = math.tanh %199 : vector<8x128xf32>
    %208 = vector.extract_strided_slice %206 {offsets = [0, 0], sizes = [8, 32], strides = [1, 1]} : vector<8x128xf32> to vector<8x32xf32>
    %209 = vector.extract_strided_slice %206 {offsets = [0, 32], sizes = [8, 32], strides = [1, 1]} : vector<8x128xf32> to vector<8x32xf32>
    %210 = vector.extract_strided_slice %207 {offsets = [0, 64], sizes = [8, 32], strides = [1, 1]} : vector<8x128xf32> to vector<8x32xf32>
    %211 = vector.extract_strided_slice %206 {offsets = [0, 96], sizes = [8, 32], strides = [1, 1]} : vector<8x128xf32> to vector<8x32xf32>
    %212 = arith.mulf %209, %176 : vector<8x32xf32>
    %213 = arith.mulf %208, %210 : vector<8x32xf32>
    %214 = arith.addf %212, %213 : vector<8x32xf32>
    %215 = math.tanh %214 : vector<8x32xf32>
    %216 = arith.mulf %211, %215 : vector<8x32xf32>
    %217 = arith.negf %201 : vector<8x128xf32>
    %218 = math.exp %217 : vector<8x128xf32>
    %cst_69 = arith.constant 1.000000e+00 : f32
    %219 = vector.broadcast %cst_69 : f32 to vector<8x128xf32>
    %220 = arith.addf %219, %218 : vector<8x128xf32>
    %221 = arith.divf %219, %220 : vector<8x128xf32>
    %222 = math.tanh %201 : vector<8x128xf32>
    %223 = vector.extract_strided_slice %221 {offsets = [0, 0], sizes = [8, 32], strides = [1, 1]} : vector<8x128xf32> to vector<8x32xf32>
    %224 = vector.extract_strided_slice %221 {offsets = [0, 32], sizes = [8, 32], strides = [1, 1]} : vector<8x128xf32> to vector<8x32xf32>
    %225 = vector.extract_strided_slice %222 {offsets = [0, 64], sizes = [8, 32], strides = [1, 1]} : vector<8x128xf32> to vector<8x32xf32>
    %226 = vector.extract_strided_slice %221 {offsets = [0, 96], sizes = [8, 32], strides = [1, 1]} : vector<8x128xf32> to vector<8x32xf32>
    %227 = arith.mulf %224, %191 : vector<8x32xf32>
    %228 = arith.mulf %223, %225 : vector<8x32xf32>
    %229 = arith.addf %227, %228 : vector<8x32xf32>
    %230 = math.tanh %229 : vector<8x32xf32>
    %231 = arith.mulf %226, %230 : vector<8x32xf32>
    %c40_70 = arith.constant 40 : index
    %c0_71 = arith.constant 0 : index
    %232 = vector.load %arg14[%c40_70, %c0_71] : memref<64x64xf32, #tpu.memory_space<vmem>>, vector<8x32xf32>
    tpu.vector_store %arg14[%c40_70, %c0_71], %216 {strides = array<i32>} : memref<64x64xf32, #tpu.memory_space<vmem>>, vector<8x32xf32>,
    %c16_72 = arith.constant 16 : index
    %c32_73 = arith.constant 32 : index
    %233 = vector.load %arg14[%c16_72, %c32_73] : memref<64x64xf32, #tpu.memory_space<vmem>>, vector<8x32xf32>
    tpu.vector_store %arg14[%c16_72, %c32_73], %231 {strides = array<i32>} : memref<64x64xf32, #tpu.memory_space<vmem>>, vector<8x32xf32>,
    %c48_74 = arith.constant 48 : index
    %c0_75 = arith.constant 0 : index
    %234 = vector.load %arg13[%c48_74, %c0_75] : memref<64x256xf32, #tpu.memory_space<vmem>>, vector<8x128xf32>
    %c8_76 = arith.constant 8 : index
    %c128_77 = arith.constant 128 : index
    %235 = vector.load %arg13[%c8_76, %c128_77] : memref<64x256xf32, #tpu.memory_space<vmem>>, vector<8x128xf32>
    %cst_78 = arith.constant dense<0.000000e+00> : vector<8x128xf32>
    %236 = tpu.matmul %216, %7, %cst_78 {dimension_numbers = #tpu.dot_dimension_numbers<[1], [0], [0], [1], [0, 0, 1, 1], [], []>} : vector<8x32xf32>, vector<32x128xf32>, vector<8x128xf32> -> vector<8x128xf32>
    %237 = arith.addf %234, %236 : vector<8x128xf32>
    %cst_79 = arith.constant dense<0.000000e+00> : vector<8x128xf32>
    %238 = tpu.matmul %231, %8, %cst_79 {dimension_numbers = #tpu.dot_dimension_numbers<[1], [0], [0], [1], [0, 0, 1, 1], [], []>} : vector<8x32xf32>, vector<32x128xf32>, vector<8x128xf32> -> vector<8x128xf32>
    %239 = arith.addf %235, %238 : vector<8x128xf32>
    %240 = arith.negf %237 : vector<8x128xf32>
    %241 = math.exp %240 : vector<8x128xf32>
    %cst_80 = arith.constant 1.000000e+00 : f32
    %242 = vector.broadcast %cst_80 : f32 to vector<8x128xf32>
    %243 = arith.addf %242, %241 : vector<8x128xf32>
    %244 = arith.divf %242, %243 : vector<8x128xf32>
    %245 = math.tanh %237 : vector<8x128xf32>
    %246 = vector.extract_strided_slice %244 {offsets = [0, 0], sizes = [8, 32], strides = [1, 1]} : vector<8x128xf32> to vector<8x32xf32>
    %247 = vector.extract_strided_slice %244 {offsets = [0, 32], sizes = [8, 32], strides = [1, 1]} : vector<8x128xf32> to vector<8x32xf32>
    %248 = vector.extract_strided_slice %245 {offsets = [0, 64], sizes = [8, 32], strides = [1, 1]} : vector<8x128xf32> to vector<8x32xf32>
    %249 = vector.extract_strided_slice %244 {offsets = [0, 96], sizes = [8, 32], strides = [1, 1]} : vector<8x128xf32> to vector<8x32xf32>
    %250 = arith.mulf %247, %214 : vector<8x32xf32>
    %251 = arith.mulf %246, %248 : vector<8x32xf32>
    %252 = arith.addf %250, %251 : vector<8x32xf32>
    %253 = math.tanh %252 : vector<8x32xf32>
    %254 = arith.mulf %249, %253 : vector<8x32xf32>
    %255 = arith.negf %239 : vector<8x128xf32>
    %256 = math.exp %255 : vector<8x128xf32>
    %cst_81 = arith.constant 1.000000e+00 : f32
    %257 = vector.broadcast %cst_81 : f32 to vector<8x128xf32>
    %258 = arith.addf %257, %256 : vector<8x128xf32>
    %259 = arith.divf %257, %258 : vector<8x128xf32>
    %260 = math.tanh %239 : vector<8x128xf32>
    %261 = vector.extract_strided_slice %259 {offsets = [0, 0], sizes = [8, 32], strides = [1, 1]} : vector<8x128xf32> to vector<8x32xf32>
    %262 = vector.extract_strided_slice %259 {offsets = [0, 32], sizes = [8, 32], strides = [1, 1]} : vector<8x128xf32> to vector<8x32xf32>
    %263 = vector.extract_strided_slice %260 {offsets = [0, 64], sizes = [8, 32], strides = [1, 1]} : vector<8x128xf32> to vector<8x32xf32>
    %264 = vector.extract_strided_slice %259 {offsets = [0, 96], sizes = [8, 32], strides = [1, 1]} : vector<8x128xf32> to vector<8x32xf32>
    %265 = arith.mulf %262, %229 : vector<8x32xf32>
    %266 = arith.mulf %261, %263 : vector<8x32xf32>
    %267 = arith.addf %265, %266 : vector<8x32xf32>
    %268 = math.tanh %267 : vector<8x32xf32>
    %269 = arith.mulf %264, %268 : vector<8x32xf32>
    %c48_82 = arith.constant 48 : index
    %c0_83 = arith.constant 0 : index
    %270 = vector.load %arg14[%c48_82, %c0_83] : memref<64x64xf32, #tpu.memory_space<vmem>>, vector<8x32xf32>
    tpu.vector_store %arg14[%c48_82, %c0_83], %254 {strides = array<i32>} : memref<64x64xf32, #tpu.memory_space<vmem>>, vector<8x32xf32>,
    %c8_84 = arith.constant 8 : index
    %c32_85 = arith.constant 32 : index
    %271 = vector.load %arg14[%c8_84, %c32_85] : memref<64x64xf32, #tpu.memory_space<vmem>>, vector<8x32xf32>
    tpu.vector_store %arg14[%c8_84, %c32_85], %269 {strides = array<i32>} : memref<64x64xf32, #tpu.memory_space<vmem>>, vector<8x32xf32>,
    %c56_86 = arith.constant 56 : index
    %c0_87 = arith.constant 0 : index
    %272 = vector.load %arg13[%c56_86, %c0_87] : memref<64x256xf32, #tpu.memory_space<vmem>>, vector<8x128xf32>
    %c0_88 = arith.constant 0 : index
    %c128_89 = arith.constant 128 : index
    %273 = vector.load %arg13[%c0_88, %c128_89] : memref<64x256xf32, #tpu.memory_space<vmem>>, vector<8x128xf32>
    %cst_90 = arith.constant dense<0.000000e+00> : vector<8x128xf32>
    %274 = tpu.matmul %254, %7, %cst_90 {dimension_numbers = #tpu.dot_dimension_numbers<[1], [0], [0], [1], [0, 0, 1, 1], [], []>} : vector<8x32xf32>, vector<32x128xf32>, vector<8x128xf32> -> vector<8x128xf32>
    %275 = arith.addf %272, %274 : vector<8x128xf32>
    %cst_91 = arith.constant dense<0.000000e+00> : vector<8x128xf32>
    %276 = tpu.matmul %269, %8, %cst_91 {dimension_numbers = #tpu.dot_dimension_numbers<[1], [0], [0], [1], [0, 0, 1, 1], [], []>} : vector<8x32xf32>, vector<32x128xf32>, vector<8x128xf32> -> vector<8x128xf32>
    %277 = arith.addf %273, %276 : vector<8x128xf32>
    %278 = arith.negf %275 : vector<8x128xf32>
    %279 = math.exp %278 : vector<8x128xf32>
    %cst_92 = arith.constant 1.000000e+00 : f32
    %280 = vector.broadcast %cst_92 : f32 to vector<8x128xf32>
    %281 = arith.addf %280, %279 : vector<8x128xf32>
    %282 = arith.divf %280, %281 : vector<8x128xf32>
    %283 = math.tanh %275 : vector<8x128xf32>
    %284 = vector.extract_strided_slice %282 {offsets = [0, 0], sizes = [8, 32], strides = [1, 1]} : vector<8x128xf32> to vector<8x32xf32>
    %285 = vector.extract_strided_slice %282 {offsets = [0, 32], sizes = [8, 32], strides = [1, 1]} : vector<8x128xf32> to vector<8x32xf32>
    %286 = vector.extract_strided_slice %283 {offsets = [0, 64], sizes = [8, 32], strides = [1, 1]} : vector<8x128xf32> to vector<8x32xf32>
    %287 = vector.extract_strided_slice %282 {offsets = [0, 96], sizes = [8, 32], strides = [1, 1]} : vector<8x128xf32> to vector<8x32xf32>
    %288 = arith.mulf %285, %252 : vector<8x32xf32>
    %289 = arith.mulf %284, %286 : vector<8x32xf32>
    %290 = arith.addf %288, %289 : vector<8x32xf32>
    %291 = math.tanh %290 : vector<8x32xf32>
    %292 = arith.mulf %287, %291 : vector<8x32xf32>
    %293 = arith.negf %277 : vector<8x128xf32>
    %294 = math.exp %293 : vector<8x128xf32>
    %cst_93 = arith.constant 1.000000e+00 : f32
    %295 = vector.broadcast %cst_93 : f32 to vector<8x128xf32>
    %296 = arith.addf %295, %294 : vector<8x128xf32>
    %297 = arith.divf %295, %296 : vector<8x128xf32>
    %298 = math.tanh %277 : vector<8x128xf32>
    %299 = vector.extract_strided_slice %297 {offsets = [0, 0], sizes = [8, 32], strides = [1, 1]} : vector<8x128xf32> to vector<8x32xf32>
    %300 = vector.extract_strided_slice %297 {offsets = [0, 32], sizes = [8, 32], strides = [1, 1]} : vector<8x128xf32> to vector<8x32xf32>
    %301 = vector.extract_strided_slice %298 {offsets = [0, 64], sizes = [8, 32], strides = [1, 1]} : vector<8x128xf32> to vector<8x32xf32>
    %302 = vector.extract_strided_slice %297 {offsets = [0, 96], sizes = [8, 32], strides = [1, 1]} : vector<8x128xf32> to vector<8x32xf32>
    %303 = arith.mulf %300, %267 : vector<8x32xf32>
    %304 = arith.mulf %299, %301 : vector<8x32xf32>
    %305 = arith.addf %303, %304 : vector<8x32xf32>
    %306 = math.tanh %305 : vector<8x32xf32>
    %307 = arith.mulf %302, %306 : vector<8x32xf32>
    %c56_94 = arith.constant 56 : index
    %c0_95 = arith.constant 0 : index
    %308 = vector.load %arg14[%c56_94, %c0_95] : memref<64x64xf32, #tpu.memory_space<vmem>>, vector<8x32xf32>
    tpu.vector_store %arg14[%c56_94, %c0_95], %292 {strides = array<i32>} : memref<64x64xf32, #tpu.memory_space<vmem>>, vector<8x32xf32>,
    %c0_96 = arith.constant 0 : index
    %c32_97 = arith.constant 32 : index
    %309 = vector.load %arg14[%c0_96, %c32_97] : memref<64x64xf32, #tpu.memory_space<vmem>>, vector<8x32xf32>
    tpu.vector_store %arg14[%c0_96, %c32_97], %307 {strides = array<i32>} : memref<64x64xf32, #tpu.memory_space<vmem>>, vector<8x32xf32>,
    %c0_98 = arith.constant 0 : index
    %c0_99 = arith.constant 0 : index
    %310 = vector.load %arg14[%c0_98, %c0_99] : memref<64x64xf32, #tpu.memory_space<vmem>>, vector<64x64xf32>
    %c0_100 = arith.constant 0 : index
    %c0_101 = arith.constant 0 : index
    %311 = vector.load %arg5[%c0_100, %c0_101] : memref<64x256xf32, #tpu.memory_space<vmem>>, vector<64x256xf32>
    %cst_102 = arith.constant dense<0.000000e+00> : vector<64x256xf32>
    %312 = tpu.matmul %310, %311, %cst_102 {dimension_numbers = #tpu.dot_dimension_numbers<[1], [0], [0], [1], [0, 0, 1, 1], [], []>} : vector<64x64xf32>, vector<64x256xf32>, vector<64x256xf32> -> vector<64x256xf32>
    %c0_103 = arith.constant 0 : index
    %c0_104 = arith.constant 0 : index
    %313 = vector.load %arg6[%c0_103, %c0_104] : memref<1x256xf32, #tpu.memory_space<vmem>>, vector<1x256xf32>
    %314 = vector.broadcast %313 : vector<1x256xf32> to vector<64x256xf32>
    %315 = arith.addf %312, %314 : vector<64x256xf32>
    %c0_105 = arith.constant 0 : index
    %c0_106 = arith.constant 0 : index
    %316 = vector.load %arg13[%c0_105, %c0_106] : memref<64x256xf32, #tpu.memory_space<vmem>>, vector<64x256xf32>
    tpu.vector_store %arg13[%c0_105, %c0_106], %315 {strides = array<i32>} : memref<64x256xf32, #tpu.memory_space<vmem>>, vector<64x256xf32>,
    %c0_107 = arith.constant 0 : index
    %c0_108 = arith.constant 0 : index
    %317 = vector.load %arg7[%c0_107, %c0_108] : memref<32x128xf32, #tpu.memory_space<vmem>>, vector<32x128xf32>
    %c0_109 = arith.constant 0 : index
    %c0_110 = arith.constant 0 : index
    %318 = vector.load %arg8[%c0_109, %c0_110] : memref<32x128xf32, #tpu.memory_space<vmem>>, vector<32x128xf32>
    %cst_111 = arith.constant 0.000000e+00 : f32
    %319 = vector.broadcast %cst_111 : f32 to vector<8x32xf32>
    %c0_112 = arith.constant 0 : index
    %c0_113 = arith.constant 0 : index
    %320 = vector.load %arg13[%c0_112, %c0_113] : memref<64x256xf32, #tpu.memory_space<vmem>>, vector<8x128xf32>
    %c56_114 = arith.constant 56 : index
    %c128_115 = arith.constant 128 : index
    %321 = vector.load %arg13[%c56_114, %c128_115] : memref<64x256xf32, #tpu.memory_space<vmem>>, vector<8x128xf32>
    %322 = arith.negf %320 : vector<8x128xf32>
    %323 = math.exp %322 : vector<8x128xf32>
    %cst_116 = arith.constant 1.000000e+00 : f32
    %324 = vector.broadcast %cst_116 : f32 to vector<8x128xf32>
    %325 = arith.addf %324, %323 : vector<8x128xf32>
    %326 = arith.divf %324, %325 : vector<8x128xf32>
    %327 = math.tanh %320 : vector<8x128xf32>
    %328 = vector.extract_strided_slice %326 {offsets = [0, 0], sizes = [8, 32], strides = [1, 1]} : vector<8x128xf32> to vector<8x32xf32>
    %329 = vector.extract_strided_slice %326 {offsets = [0, 32], sizes = [8, 32], strides = [1, 1]} : vector<8x128xf32> to vector<8x32xf32>
    %330 = vector.extract_strided_slice %327 {offsets = [0, 64], sizes = [8, 32], strides = [1, 1]} : vector<8x128xf32> to vector<8x32xf32>
    %331 = vector.extract_strided_slice %326 {offsets = [0, 96], sizes = [8, 32], strides = [1, 1]} : vector<8x128xf32> to vector<8x32xf32>
    %332 = arith.mulf %329, %319 : vector<8x32xf32>
    %333 = arith.mulf %328, %330 : vector<8x32xf32>
    %334 = arith.addf %332, %333 : vector<8x32xf32>
    %335 = math.tanh %334 : vector<8x32xf32>
    %336 = arith.mulf %331, %335 : vector<8x32xf32>
    %337 = arith.negf %321 : vector<8x128xf32>
    %338 = math.exp %337 : vector<8x128xf32>
    %cst_117 = arith.constant 1.000000e+00 : f32
    %339 = vector.broadcast %cst_117 : f32 to vector<8x128xf32>
    %340 = arith.addf %339, %338 : vector<8x128xf32>
    %341 = arith.divf %339, %340 : vector<8x128xf32>
    %342 = math.tanh %321 : vector<8x128xf32>
    %343 = vector.extract_strided_slice %341 {offsets = [0, 0], sizes = [8, 32], strides = [1, 1]} : vector<8x128xf32> to vector<8x32xf32>
    %344 = vector.extract_strided_slice %341 {offsets = [0, 32], sizes = [8, 32], strides = [1, 1]} : vector<8x128xf32> to vector<8x32xf32>
    %345 = vector.extract_strided_slice %342 {offsets = [0, 64], sizes = [8, 32], strides = [1, 1]} : vector<8x128xf32> to vector<8x32xf32>
    %346 = vector.extract_strided_slice %341 {offsets = [0, 96], sizes = [8, 32], strides = [1, 1]} : vector<8x128xf32> to vector<8x32xf32>
    %347 = arith.mulf %344, %319 : vector<8x32xf32>
    %348 = arith.mulf %343, %345 : vector<8x32xf32>
    %349 = arith.addf %347, %348 : vector<8x32xf32>
    %350 = math.tanh %349 : vector<8x32xf32>
    %351 = arith.mulf %346, %350 : vector<8x32xf32>
    %c8_118 = arith.constant 8 : index
    %c0_119 = arith.constant 0 : index
    %352 = vector.load %arg13[%c8_118, %c0_119] : memref<64x256xf32, #tpu.memory_space<vmem>>, vector<8x128xf32>
    %c48_120 = arith.constant 48 : index
    %c128_121 = arith.constant 128 : index
    %353 = vector.load %arg13[%c48_120, %c128_121] : memref<64x256xf32, #tpu.memory_space<vmem>>, vector<8x128xf32>
    %cst_122 = arith.constant dense<0.000000e+00> : vector<8x128xf32>
    %354 = tpu.matmul %336, %317, %cst_122 {dimension_numbers = #tpu.dot_dimension_numbers<[1], [0], [0], [1], [0, 0, 1, 1], [], []>} : vector<8x32xf32>, vector<32x128xf32>, vector<8x128xf32> -> vector<8x128xf32>
    %355 = arith.addf %352, %354 : vector<8x128xf32>
    %cst_123 = arith.constant dense<0.000000e+00> : vector<8x128xf32>
    %356 = tpu.matmul %351, %318, %cst_123 {dimension_numbers = #tpu.dot_dimension_numbers<[1], [0], [0], [1], [0, 0, 1, 1], [], []>} : vector<8x32xf32>, vector<32x128xf32>, vector<8x128xf32> -> vector<8x128xf32>
    %357 = arith.addf %353, %356 : vector<8x128xf32>
    %358 = arith.negf %355 : vector<8x128xf32>
    %359 = math.exp %358 : vector<8x128xf32>
    %cst_124 = arith.constant 1.000000e+00 : f32
    %360 = vector.broadcast %cst_124 : f32 to vector<8x128xf32>
    %361 = arith.addf %360, %359 : vector<8x128xf32>
    %362 = arith.divf %360, %361 : vector<8x128xf32>
    %363 = math.tanh %355 : vector<8x128xf32>
    %364 = vector.extract_strided_slice %362 {offsets = [0, 0], sizes = [8, 32], strides = [1, 1]} : vector<8x128xf32> to vector<8x32xf32>
    %365 = vector.extract_strided_slice %362 {offsets = [0, 32], sizes = [8, 32], strides = [1, 1]} : vector<8x128xf32> to vector<8x32xf32>
    %366 = vector.extract_strided_slice %363 {offsets = [0, 64], sizes = [8, 32], strides = [1, 1]} : vector<8x128xf32> to vector<8x32xf32>
    %367 = vector.extract_strided_slice %362 {offsets = [0, 96], sizes = [8, 32], strides = [1, 1]} : vector<8x128xf32> to vector<8x32xf32>
    %368 = arith.mulf %365, %334 : vector<8x32xf32>
    %369 = arith.mulf %364, %366 : vector<8x32xf32>
    %370 = arith.addf %368, %369 : vector<8x32xf32>
    %371 = math.tanh %370 : vector<8x32xf32>
    %372 = arith.mulf %367, %371 : vector<8x32xf32>
    %373 = arith.negf %357 : vector<8x128xf32>
    %374 = math.exp %373 : vector<8x128xf32>
    %cst_125 = arith.constant 1.000000e+00 : f32
    %375 = vector.broadcast %cst_125 : f32 to vector<8x128xf32>
    %376 = arith.addf %375, %374 : vector<8x128xf32>
    %377 = arith.divf %375, %376 : vector<8x128xf32>
    %378 = math.tanh %357 : vector<8x128xf32>
    %379 = vector.extract_strided_slice %377 {offsets = [0, 0], sizes = [8, 32], strides = [1, 1]} : vector<8x128xf32> to vector<8x32xf32>
    %380 = vector.extract_strided_slice %377 {offsets = [0, 32], sizes = [8, 32], strides = [1, 1]} : vector<8x128xf32> to vector<8x32xf32>
    %381 = vector.extract_strided_slice %378 {offsets = [0, 64], sizes = [8, 32], strides = [1, 1]} : vector<8x128xf32> to vector<8x32xf32>
    %382 = vector.extract_strided_slice %377 {offsets = [0, 96], sizes = [8, 32], strides = [1, 1]} : vector<8x128xf32> to vector<8x32xf32>
    %383 = arith.mulf %380, %349 : vector<8x32xf32>
    %384 = arith.mulf %379, %381 : vector<8x32xf32>
    %385 = arith.addf %383, %384 : vector<8x32xf32>
    %386 = math.tanh %385 : vector<8x32xf32>
    %387 = arith.mulf %382, %386 : vector<8x32xf32>
    %c16_126 = arith.constant 16 : index
    %c0_127 = arith.constant 0 : index
    %388 = vector.load %arg13[%c16_126, %c0_127] : memref<64x256xf32, #tpu.memory_space<vmem>>, vector<8x128xf32>
    %c40_128 = arith.constant 40 : index
    %c128_129 = arith.constant 128 : index
    %389 = vector.load %arg13[%c40_128, %c128_129] : memref<64x256xf32, #tpu.memory_space<vmem>>, vector<8x128xf32>
    %cst_130 = arith.constant dense<0.000000e+00> : vector<8x128xf32>
    %390 = tpu.matmul %372, %317, %cst_130 {dimension_numbers = #tpu.dot_dimension_numbers<[1], [0], [0], [1], [0, 0, 1, 1], [], []>} : vector<8x32xf32>, vector<32x128xf32>, vector<8x128xf32> -> vector<8x128xf32>
    %391 = arith.addf %388, %390 : vector<8x128xf32>
    %cst_131 = arith.constant dense<0.000000e+00> : vector<8x128xf32>
    %392 = tpu.matmul %387, %318, %cst_131 {dimension_numbers = #tpu.dot_dimension_numbers<[1], [0], [0], [1], [0, 0, 1, 1], [], []>} : vector<8x32xf32>, vector<32x128xf32>, vector<8x128xf32> -> vector<8x128xf32>
    %393 = arith.addf %389, %392 : vector<8x128xf32>
    %394 = arith.negf %391 : vector<8x128xf32>
    %395 = math.exp %394 : vector<8x128xf32>
    %cst_132 = arith.constant 1.000000e+00 : f32
    %396 = vector.broadcast %cst_132 : f32 to vector<8x128xf32>
    %397 = arith.addf %396, %395 : vector<8x128xf32>
    %398 = arith.divf %396, %397 : vector<8x128xf32>
    %399 = math.tanh %391 : vector<8x128xf32>
    %400 = vector.extract_strided_slice %398 {offsets = [0, 0], sizes = [8, 32], strides = [1, 1]} : vector<8x128xf32> to vector<8x32xf32>
    %401 = vector.extract_strided_slice %398 {offsets = [0, 32], sizes = [8, 32], strides = [1, 1]} : vector<8x128xf32> to vector<8x32xf32>
    %402 = vector.extract_strided_slice %399 {offsets = [0, 64], sizes = [8, 32], strides = [1, 1]} : vector<8x128xf32> to vector<8x32xf32>
    %403 = vector.extract_strided_slice %398 {offsets = [0, 96], sizes = [8, 32], strides = [1, 1]} : vector<8x128xf32> to vector<8x32xf32>
    %404 = arith.mulf %401, %370 : vector<8x32xf32>
    %405 = arith.mulf %400, %402 : vector<8x32xf32>
    %406 = arith.addf %404, %405 : vector<8x32xf32>
    %407 = math.tanh %406 : vector<8x32xf32>
    %408 = arith.mulf %403, %407 : vector<8x32xf32>
    %409 = arith.negf %393 : vector<8x128xf32>
    %410 = math.exp %409 : vector<8x128xf32>
    %cst_133 = arith.constant 1.000000e+00 : f32
    %411 = vector.broadcast %cst_133 : f32 to vector<8x128xf32>
    %412 = arith.addf %411, %410 : vector<8x128xf32>
    %413 = arith.divf %411, %412 : vector<8x128xf32>
    %414 = math.tanh %393 : vector<8x128xf32>
    %415 = vector.extract_strided_slice %413 {offsets = [0, 0], sizes = [8, 32], strides = [1, 1]} : vector<8x128xf32> to vector<8x32xf32>
    %416 = vector.extract_strided_slice %413 {offsets = [0, 32], sizes = [8, 32], strides = [1, 1]} : vector<8x128xf32> to vector<8x32xf32>
    %417 = vector.extract_strided_slice %414 {offsets = [0, 64], sizes = [8, 32], strides = [1, 1]} : vector<8x128xf32> to vector<8x32xf32>
    %418 = vector.extract_strided_slice %413 {offsets = [0, 96], sizes = [8, 32], strides = [1, 1]} : vector<8x128xf32> to vector<8x32xf32>
    %419 = arith.mulf %416, %385 : vector<8x32xf32>
    %420 = arith.mulf %415, %417 : vector<8x32xf32>
    %421 = arith.addf %419, %420 : vector<8x32xf32>
    %422 = math.tanh %421 : vector<8x32xf32>
    %423 = arith.mulf %418, %422 : vector<8x32xf32>
    %c24_134 = arith.constant 24 : index
    %c0_135 = arith.constant 0 : index
    %424 = vector.load %arg13[%c24_134, %c0_135] : memref<64x256xf32, #tpu.memory_space<vmem>>, vector<8x128xf32>
    %c32_136 = arith.constant 32 : index
    %c128_137 = arith.constant 128 : index
    %425 = vector.load %arg13[%c32_136, %c128_137] : memref<64x256xf32, #tpu.memory_space<vmem>>, vector<8x128xf32>
    %cst_138 = arith.constant dense<0.000000e+00> : vector<8x128xf32>
    %426 = tpu.matmul %408, %317, %cst_138 {dimension_numbers = #tpu.dot_dimension_numbers<[1], [0], [0], [1], [0, 0, 1, 1], [], []>} : vector<8x32xf32>, vector<32x128xf32>, vector<8x128xf32> -> vector<8x128xf32>
    %427 = arith.addf %424, %426 : vector<8x128xf32>
    %cst_139 = arith.constant dense<0.000000e+00> : vector<8x128xf32>
    %428 = tpu.matmul %423, %318, %cst_139 {dimension_numbers = #tpu.dot_dimension_numbers<[1], [0], [0], [1], [0, 0, 1, 1], [], []>} : vector<8x32xf32>, vector<32x128xf32>, vector<8x128xf32> -> vector<8x128xf32>
    %429 = arith.addf %425, %428 : vector<8x128xf32>
    %430 = arith.negf %427 : vector<8x128xf32>
    %431 = math.exp %430 : vector<8x128xf32>
    %cst_140 = arith.constant 1.000000e+00 : f32
    %432 = vector.broadcast %cst_140 : f32 to vector<8x128xf32>
    %433 = arith.addf %432, %431 : vector<8x128xf32>
    %434 = arith.divf %432, %433 : vector<8x128xf32>
    %435 = math.tanh %427 : vector<8x128xf32>
    %436 = vector.extract_strided_slice %434 {offsets = [0, 0], sizes = [8, 32], strides = [1, 1]} : vector<8x128xf32> to vector<8x32xf32>
    %437 = vector.extract_strided_slice %434 {offsets = [0, 32], sizes = [8, 32], strides = [1, 1]} : vector<8x128xf32> to vector<8x32xf32>
    %438 = vector.extract_strided_slice %435 {offsets = [0, 64], sizes = [8, 32], strides = [1, 1]} : vector<8x128xf32> to vector<8x32xf32>
    %439 = vector.extract_strided_slice %434 {offsets = [0, 96], sizes = [8, 32], strides = [1, 1]} : vector<8x128xf32> to vector<8x32xf32>
    %440 = arith.mulf %437, %406 : vector<8x32xf32>
    %441 = arith.mulf %436, %438 : vector<8x32xf32>
    %442 = arith.addf %440, %441 : vector<8x32xf32>
    %443 = math.tanh %442 : vector<8x32xf32>
    %444 = arith.mulf %439, %443 : vector<8x32xf32>
    %445 = arith.negf %429 : vector<8x128xf32>
    %446 = math.exp %445 : vector<8x128xf32>
    %cst_141 = arith.constant 1.000000e+00 : f32
    %447 = vector.broadcast %cst_141 : f32 to vector<8x128xf32>
    %448 = arith.addf %447, %446 : vector<8x128xf32>
    %449 = arith.divf %447, %448 : vector<8x128xf32>
    %450 = math.tanh %429 : vector<8x128xf32>
    %451 = vector.extract_strided_slice %449 {offsets = [0, 0], sizes = [8, 32], strides = [1, 1]} : vector<8x128xf32> to vector<8x32xf32>
    %452 = vector.extract_strided_slice %449 {offsets = [0, 32], sizes = [8, 32], strides = [1, 1]} : vector<8x128xf32> to vector<8x32xf32>
    %453 = vector.extract_strided_slice %450 {offsets = [0, 64], sizes = [8, 32], strides = [1, 1]} : vector<8x128xf32> to vector<8x32xf32>
    %454 = vector.extract_strided_slice %449 {offsets = [0, 96], sizes = [8, 32], strides = [1, 1]} : vector<8x128xf32> to vector<8x32xf32>
    %455 = arith.mulf %452, %421 : vector<8x32xf32>
    %456 = arith.mulf %451, %453 : vector<8x32xf32>
    %457 = arith.addf %455, %456 : vector<8x32xf32>
    %458 = math.tanh %457 : vector<8x32xf32>
    %459 = arith.mulf %454, %458 : vector<8x32xf32>
    %c32_142 = arith.constant 32 : index
    %c0_143 = arith.constant 0 : index
    %460 = vector.load %arg13[%c32_142, %c0_143] : memref<64x256xf32, #tpu.memory_space<vmem>>, vector<8x128xf32>
    %c24_144 = arith.constant 24 : index
    %c128_145 = arith.constant 128 : index
    %461 = vector.load %arg13[%c24_144, %c128_145] : memref<64x256xf32, #tpu.memory_space<vmem>>, vector<8x128xf32>
    %cst_146 = arith.constant dense<0.000000e+00> : vector<8x128xf32>
    %462 = tpu.matmul %444, %317, %cst_146 {dimension_numbers = #tpu.dot_dimension_numbers<[1], [0], [0], [1], [0, 0, 1, 1], [], []>} : vector<8x32xf32>, vector<32x128xf32>, vector<8x128xf32> -> vector<8x128xf32>
    %463 = arith.addf %460, %462 : vector<8x128xf32>
    %cst_147 = arith.constant dense<0.000000e+00> : vector<8x128xf32>
    %464 = tpu.matmul %459, %318, %cst_147 {dimension_numbers = #tpu.dot_dimension_numbers<[1], [0], [0], [1], [0, 0, 1, 1], [], []>} : vector<8x32xf32>, vector<32x128xf32>, vector<8x128xf32> -> vector<8x128xf32>
    %465 = arith.addf %461, %464 : vector<8x128xf32>
    %466 = arith.negf %463 : vector<8x128xf32>
    %467 = math.exp %466 : vector<8x128xf32>
    %cst_148 = arith.constant 1.000000e+00 : f32
    %468 = vector.broadcast %cst_148 : f32 to vector<8x128xf32>
    %469 = arith.addf %468, %467 : vector<8x128xf32>
    %470 = arith.divf %468, %469 : vector<8x128xf32>
    %471 = math.tanh %463 : vector<8x128xf32>
    %472 = vector.extract_strided_slice %470 {offsets = [0, 0], sizes = [8, 32], strides = [1, 1]} : vector<8x128xf32> to vector<8x32xf32>
    %473 = vector.extract_strided_slice %470 {offsets = [0, 32], sizes = [8, 32], strides = [1, 1]} : vector<8x128xf32> to vector<8x32xf32>
    %474 = vector.extract_strided_slice %471 {offsets = [0, 64], sizes = [8, 32], strides = [1, 1]} : vector<8x128xf32> to vector<8x32xf32>
    %475 = vector.extract_strided_slice %470 {offsets = [0, 96], sizes = [8, 32], strides = [1, 1]} : vector<8x128xf32> to vector<8x32xf32>
    %476 = arith.mulf %473, %442 : vector<8x32xf32>
    %477 = arith.mulf %472, %474 : vector<8x32xf32>
    %478 = arith.addf %476, %477 : vector<8x32xf32>
    %479 = math.tanh %478 : vector<8x32xf32>
    %480 = arith.mulf %475, %479 : vector<8x32xf32>
    %481 = arith.negf %465 : vector<8x128xf32>
    %482 = math.exp %481 : vector<8x128xf32>
    %cst_149 = arith.constant 1.000000e+00 : f32
    %483 = vector.broadcast %cst_149 : f32 to vector<8x128xf32>
    %484 = arith.addf %483, %482 : vector<8x128xf32>
    %485 = arith.divf %483, %484 : vector<8x128xf32>
    %486 = math.tanh %465 : vector<8x128xf32>
    %487 = vector.extract_strided_slice %485 {offsets = [0, 0], sizes = [8, 32], strides = [1, 1]} : vector<8x128xf32> to vector<8x32xf32>
    %488 = vector.extract_strided_slice %485 {offsets = [0, 32], sizes = [8, 32], strides = [1, 1]} : vector<8x128xf32> to vector<8x32xf32>
    %489 = vector.extract_strided_slice %486 {offsets = [0, 64], sizes = [8, 32], strides = [1, 1]} : vector<8x128xf32> to vector<8x32xf32>
    %490 = vector.extract_strided_slice %485 {offsets = [0, 96], sizes = [8, 32], strides = [1, 1]} : vector<8x128xf32> to vector<8x32xf32>
    %491 = arith.mulf %488, %457 : vector<8x32xf32>
    %492 = arith.mulf %487, %489 : vector<8x32xf32>
    %493 = arith.addf %491, %492 : vector<8x32xf32>
    %494 = math.tanh %493 : vector<8x32xf32>
    %495 = arith.mulf %490, %494 : vector<8x32xf32>
    %c40_150 = arith.constant 40 : index
    %c0_151 = arith.constant 0 : index
    %496 = vector.load %arg13[%c40_150, %c0_151] : memref<64x256xf32, #tpu.memory_space<vmem>>, vector<8x128xf32>
    %c16_152 = arith.constant 16 : index
    %c128_153 = arith.constant 128 : index
    %497 = vector.load %arg13[%c16_152, %c128_153] : memref<64x256xf32, #tpu.memory_space<vmem>>, vector<8x128xf32>
    %cst_154 = arith.constant dense<0.000000e+00> : vector<8x128xf32>
    %498 = tpu.matmul %480, %317, %cst_154 {dimension_numbers = #tpu.dot_dimension_numbers<[1], [0], [0], [1], [0, 0, 1, 1], [], []>} : vector<8x32xf32>, vector<32x128xf32>, vector<8x128xf32> -> vector<8x128xf32>
    %499 = arith.addf %496, %498 : vector<8x128xf32>
    %cst_155 = arith.constant dense<0.000000e+00> : vector<8x128xf32>
    %500 = tpu.matmul %495, %318, %cst_155 {dimension_numbers = #tpu.dot_dimension_numbers<[1], [0], [0], [1], [0, 0, 1, 1], [], []>} : vector<8x32xf32>, vector<32x128xf32>, vector<8x128xf32> -> vector<8x128xf32>
    %501 = arith.addf %497, %500 : vector<8x128xf32>
    %502 = arith.negf %499 : vector<8x128xf32>
    %503 = math.exp %502 : vector<8x128xf32>
    %cst_156 = arith.constant 1.000000e+00 : f32
    %504 = vector.broadcast %cst_156 : f32 to vector<8x128xf32>
    %505 = arith.addf %504, %503 : vector<8x128xf32>
    %506 = arith.divf %504, %505 : vector<8x128xf32>
    %507 = math.tanh %499 : vector<8x128xf32>
    %508 = vector.extract_strided_slice %506 {offsets = [0, 0], sizes = [8, 32], strides = [1, 1]} : vector<8x128xf32> to vector<8x32xf32>
    %509 = vector.extract_strided_slice %506 {offsets = [0, 32], sizes = [8, 32], strides = [1, 1]} : vector<8x128xf32> to vector<8x32xf32>
    %510 = vector.extract_strided_slice %507 {offsets = [0, 64], sizes = [8, 32], strides = [1, 1]} : vector<8x128xf32> to vector<8x32xf32>
    %511 = vector.extract_strided_slice %506 {offsets = [0, 96], sizes = [8, 32], strides = [1, 1]} : vector<8x128xf32> to vector<8x32xf32>
    %512 = arith.mulf %509, %478 : vector<8x32xf32>
    %513 = arith.mulf %508, %510 : vector<8x32xf32>
    %514 = arith.addf %512, %513 : vector<8x32xf32>
    %515 = math.tanh %514 : vector<8x32xf32>
    %516 = arith.mulf %511, %515 : vector<8x32xf32>
    %517 = arith.negf %501 : vector<8x128xf32>
    %518 = math.exp %517 : vector<8x128xf32>
    %cst_157 = arith.constant 1.000000e+00 : f32
    %519 = vector.broadcast %cst_157 : f32 to vector<8x128xf32>
    %520 = arith.addf %519, %518 : vector<8x128xf32>
    %521 = arith.divf %519, %520 : vector<8x128xf32>
    %522 = math.tanh %501 : vector<8x128xf32>
    %523 = vector.extract_strided_slice %521 {offsets = [0, 0], sizes = [8, 32], strides = [1, 1]} : vector<8x128xf32> to vector<8x32xf32>
    %524 = vector.extract_strided_slice %521 {offsets = [0, 32], sizes = [8, 32], strides = [1, 1]} : vector<8x128xf32> to vector<8x32xf32>
    %525 = vector.extract_strided_slice %522 {offsets = [0, 64], sizes = [8, 32], strides = [1, 1]} : vector<8x128xf32> to vector<8x32xf32>
    %526 = vector.extract_strided_slice %521 {offsets = [0, 96], sizes = [8, 32], strides = [1, 1]} : vector<8x128xf32> to vector<8x32xf32>
    %527 = arith.mulf %524, %493 : vector<8x32xf32>
    %528 = arith.mulf %523, %525 : vector<8x32xf32>
    %529 = arith.addf %527, %528 : vector<8x32xf32>
    %530 = math.tanh %529 : vector<8x32xf32>
    %531 = arith.mulf %526, %530 : vector<8x32xf32>
    %c48_158 = arith.constant 48 : index
    %c0_159 = arith.constant 0 : index
    %532 = vector.load %arg13[%c48_158, %c0_159] : memref<64x256xf32, #tpu.memory_space<vmem>>, vector<8x128xf32>
    %c8_160 = arith.constant 8 : index
    %c128_161 = arith.constant 128 : index
    %533 = vector.load %arg13[%c8_160, %c128_161] : memref<64x256xf32, #tpu.memory_space<vmem>>, vector<8x128xf32>
    %cst_162 = arith.constant dense<0.000000e+00> : vector<8x128xf32>
    %534 = tpu.matmul %516, %317, %cst_162 {dimension_numbers = #tpu.dot_dimension_numbers<[1], [0], [0], [1], [0, 0, 1, 1], [], []>} : vector<8x32xf32>, vector<32x128xf32>, vector<8x128xf32> -> vector<8x128xf32>
    %535 = arith.addf %532, %534 : vector<8x128xf32>
    %cst_163 = arith.constant dense<0.000000e+00> : vector<8x128xf32>
    %536 = tpu.matmul %531, %318, %cst_163 {dimension_numbers = #tpu.dot_dimension_numbers<[1], [0], [0], [1], [0, 0, 1, 1], [], []>} : vector<8x32xf32>, vector<32x128xf32>, vector<8x128xf32> -> vector<8x128xf32>
    %537 = arith.addf %533, %536 : vector<8x128xf32>
    %538 = arith.negf %535 : vector<8x128xf32>
    %539 = math.exp %538 : vector<8x128xf32>
    %cst_164 = arith.constant 1.000000e+00 : f32
    %540 = vector.broadcast %cst_164 : f32 to vector<8x128xf32>
    %541 = arith.addf %540, %539 : vector<8x128xf32>
    %542 = arith.divf %540, %541 : vector<8x128xf32>
    %543 = math.tanh %535 : vector<8x128xf32>
    %544 = vector.extract_strided_slice %542 {offsets = [0, 0], sizes = [8, 32], strides = [1, 1]} : vector<8x128xf32> to vector<8x32xf32>
    %545 = vector.extract_strided_slice %542 {offsets = [0, 32], sizes = [8, 32], strides = [1, 1]} : vector<8x128xf32> to vector<8x32xf32>
    %546 = vector.extract_strided_slice %543 {offsets = [0, 64], sizes = [8, 32], strides = [1, 1]} : vector<8x128xf32> to vector<8x32xf32>
    %547 = vector.extract_strided_slice %542 {offsets = [0, 96], sizes = [8, 32], strides = [1, 1]} : vector<8x128xf32> to vector<8x32xf32>
    %548 = arith.mulf %545, %514 : vector<8x32xf32>
    %549 = arith.mulf %544, %546 : vector<8x32xf32>
    %550 = arith.addf %548, %549 : vector<8x32xf32>
    %551 = math.tanh %550 : vector<8x32xf32>
    %552 = arith.mulf %547, %551 : vector<8x32xf32>
    %553 = arith.negf %537 : vector<8x128xf32>
    %554 = math.exp %553 : vector<8x128xf32>
    %cst_165 = arith.constant 1.000000e+00 : f32
    %555 = vector.broadcast %cst_165 : f32 to vector<8x128xf32>
    %556 = arith.addf %555, %554 : vector<8x128xf32>
    %557 = arith.divf %555, %556 : vector<8x128xf32>
    %558 = math.tanh %537 : vector<8x128xf32>
    %559 = vector.extract_strided_slice %557 {offsets = [0, 0], sizes = [8, 32], strides = [1, 1]} : vector<8x128xf32> to vector<8x32xf32>
    %560 = vector.extract_strided_slice %557 {offsets = [0, 32], sizes = [8, 32], strides = [1, 1]} : vector<8x128xf32> to vector<8x32xf32>
    %561 = vector.extract_strided_slice %558 {offsets = [0, 64], sizes = [8, 32], strides = [1, 1]} : vector<8x128xf32> to vector<8x32xf32>
    %562 = vector.extract_strided_slice %557 {offsets = [0, 96], sizes = [8, 32], strides = [1, 1]} : vector<8x128xf32> to vector<8x32xf32>
    %563 = arith.mulf %560, %529 : vector<8x32xf32>
    %564 = arith.mulf %559, %561 : vector<8x32xf32>
    %565 = arith.addf %563, %564 : vector<8x32xf32>
    %566 = math.tanh %565 : vector<8x32xf32>
    %567 = arith.mulf %562, %566 : vector<8x32xf32>
    %c56_166 = arith.constant 56 : index
    %c0_167 = arith.constant 0 : index
    %568 = vector.load %arg13[%c56_166, %c0_167] : memref<64x256xf32, #tpu.memory_space<vmem>>, vector<8x128xf32>
    %c0_168 = arith.constant 0 : index
    %c128_169 = arith.constant 128 : index
    %569 = vector.load %arg13[%c0_168, %c128_169] : memref<64x256xf32, #tpu.memory_space<vmem>>, vector<8x128xf32>
    %cst_170 = arith.constant dense<0.000000e+00> : vector<8x128xf32>
    %570 = tpu.matmul %552, %317, %cst_170 {dimension_numbers = #tpu.dot_dimension_numbers<[1], [0], [0], [1], [0, 0, 1, 1], [], []>} : vector<8x32xf32>, vector<32x128xf32>, vector<8x128xf32> -> vector<8x128xf32>
    %571 = arith.addf %568, %570 : vector<8x128xf32>
    %cst_171 = arith.constant dense<0.000000e+00> : vector<8x128xf32>
    %572 = tpu.matmul %567, %318, %cst_171 {dimension_numbers = #tpu.dot_dimension_numbers<[1], [0], [0], [1], [0, 0, 1, 1], [], []>} : vector<8x32xf32>, vector<32x128xf32>, vector<8x128xf32> -> vector<8x128xf32>
    %573 = arith.addf %569, %572 : vector<8x128xf32>
    %574 = arith.negf %571 : vector<8x128xf32>
    %575 = math.exp %574 : vector<8x128xf32>
    %cst_172 = arith.constant 1.000000e+00 : f32
    %576 = vector.broadcast %cst_172 : f32 to vector<8x128xf32>
    %577 = arith.addf %576, %575 : vector<8x128xf32>
    %578 = arith.divf %576, %577 : vector<8x128xf32>
    %579 = math.tanh %571 : vector<8x128xf32>
    %580 = vector.extract_strided_slice %578 {offsets = [0, 0], sizes = [8, 32], strides = [1, 1]} : vector<8x128xf32> to vector<8x32xf32>
    %581 = vector.extract_strided_slice %578 {offsets = [0, 32], sizes = [8, 32], strides = [1, 1]} : vector<8x128xf32> to vector<8x32xf32>
    %582 = vector.extract_strided_slice %579 {offsets = [0, 64], sizes = [8, 32], strides = [1, 1]} : vector<8x128xf32> to vector<8x32xf32>
    %583 = vector.extract_strided_slice %578 {offsets = [0, 96], sizes = [8, 32], strides = [1, 1]} : vector<8x128xf32> to vector<8x32xf32>
    %584 = arith.mulf %581, %550 : vector<8x32xf32>
    %585 = arith.mulf %580, %582 : vector<8x32xf32>
    %586 = arith.addf %584, %585 : vector<8x32xf32>
    %587 = math.tanh %586 : vector<8x32xf32>
    %588 = arith.mulf %583, %587 : vector<8x32xf32>
    %589 = arith.negf %573 : vector<8x128xf32>
    %590 = math.exp %589 : vector<8x128xf32>
    %cst_173 = arith.constant 1.000000e+00 : f32
    %591 = vector.broadcast %cst_173 : f32 to vector<8x128xf32>
    %592 = arith.addf %591, %590 : vector<8x128xf32>
    %593 = arith.divf %591, %592 : vector<8x128xf32>
    %594 = math.tanh %573 : vector<8x128xf32>
    %595 = vector.extract_strided_slice %593 {offsets = [0, 0], sizes = [8, 32], strides = [1, 1]} : vector<8x128xf32> to vector<8x32xf32>
    %596 = vector.extract_strided_slice %593 {offsets = [0, 32], sizes = [8, 32], strides = [1, 1]} : vector<8x128xf32> to vector<8x32xf32>
    %597 = vector.extract_strided_slice %594 {offsets = [0, 64], sizes = [8, 32], strides = [1, 1]} : vector<8x128xf32> to vector<8x32xf32>
    %598 = vector.extract_strided_slice %593 {offsets = [0, 96], sizes = [8, 32], strides = [1, 1]} : vector<8x128xf32> to vector<8x32xf32>
    %599 = arith.mulf %596, %565 : vector<8x32xf32>
    %600 = arith.mulf %595, %597 : vector<8x32xf32>
    %601 = arith.addf %599, %600 : vector<8x32xf32>
    %602 = math.tanh %601 : vector<8x32xf32>
    %603 = arith.mulf %598, %602 : vector<8x32xf32>
    %c0_174 = arith.constant 0 : index
    %c0_175 = arith.constant 0 : index
    %604 = vector.load %arg9[%c0_174, %c0_175] : memref<32x128xf32, #tpu.memory_space<vmem>>, vector<32x128xf32>
    %cst_176 = arith.constant dense<0.000000e+00> : vector<8x128xf32>
    %605 = tpu.matmul %603, %604, %cst_176 {dimension_numbers = #tpu.dot_dimension_numbers<[1], [0], [0], [1], [0, 0, 1, 1], [], []>} : vector<8x32xf32>, vector<32x128xf32>, vector<8x128xf32> -> vector<8x128xf32>
    %c0_177 = arith.constant 0 : index
    %c0_178 = arith.constant 0 : index
    %606 = vector.load %arg10[%c0_177, %c0_178] : memref<32x128xf32, #tpu.memory_space<vmem>>, vector<32x128xf32>
    %cst_179 = arith.constant dense<0.000000e+00> : vector<8x128xf32>
    %607 = tpu.matmul %588, %606, %cst_179 {dimension_numbers = #tpu.dot_dimension_numbers<[1], [0], [0], [1], [0, 0, 1, 1], [], []>} : vector<8x32xf32>, vector<32x128xf32>, vector<8x128xf32> -> vector<8x128xf32>
    %608 = arith.addf %605, %607 : vector<8x128xf32>
    %c0_180 = arith.constant 0 : index
    %c0_181 = arith.constant 0 : index
    %609 = vector.load %arg11[%c0_180, %c0_181] : memref<1x128xf32, #tpu.memory_space<vmem>>, vector<1x128xf32>
    %610 = vector.broadcast %609 : vector<1x128xf32> to vector<8x128xf32>
    %611 = arith.addf %608, %610 : vector<8x128xf32>
    %cst_182 = arith.constant 0.000000e+00 : f32
    %612 = vector.broadcast %cst_182 : f32 to vector<8x128xf32>
    %613 = arith.maximumf %611, %612 : vector<8x128xf32>
    %c0_183 = arith.constant 0 : index
    %c0_184 = arith.constant 0 : index
    %614 = vector.load %arg12[%c0_183, %c0_184] : memref<8x128xf32, #tpu.memory_space<vmem>>, vector<8x128xf32>
    tpu.vector_store %arg12[%c0_183, %c0_184], %613 {strides = array<i32>} : memref<8x128xf32, #tpu.memory_space<vmem>>, vector<8x128xf32>,
    return
  }
}

</mosaic_0001>

<llo_original>
// kernel: char_predictor_forward.1
$region0: #{char_predictor_forward.1}
  #allocation0 [shape = 'u32[]', space=smem, size = 0x4, offset = 0x4, fixed_abs, tag = 'smem constant byte address 0x4 - core index']
  #allocation1 [shape = 'u32[144,128]{1,0:T(1,128)}', space=vmem, size = 0x12000, scoped, tag = 'internal scratch']
  #allocation2 [shape = 'f32[64,256]{1,0:T(8,128)}', space=vmem, size = 0x10000, scoped, tag = 'scratch operand']
  #allocation3 [shape = 'f32[64,64]{1,0:T(8,128)}', space=vmem, size = 0x8000, scoped, tag = 'scratch operand']
  %s0 = inlined_call_operand.vmem [shape: f32[64,16], index: 0, kind: input, shape index: {}]
  %s1 = inlined_call_operand.vmem [shape: f32[16,256], index: 1, kind: input, shape index: {}]
  %s2 = inlined_call_operand.vmem [shape: f32[1,256], index: 2, kind: input, shape index: {}]
  %s3 = inlined_call_operand.vmem [shape: f32[32,128], index: 3, kind: input, shape index: {}]
  %s4 = inlined_call_operand.vmem [shape: f32[32,128], index: 4, kind: input, shape index: {}]
  %s5 = inlined_call_operand.vmem [shape: f32[64,256], index: 5, kind: input, shape index: {}]
  %s6 = inlined_call_operand.vmem [shape: f32[1,256], index: 6, kind: input, shape index: {}]
  %s7 = inlined_call_operand.vmem [shape: f32[32,128], index: 7, kind: input, shape index: {}]
  %s8 = inlined_call_operand.vmem [shape: f32[32,128], index: 8, kind: input, shape index: {}]
  %s9 = inlined_call_operand.vmem [shape: f32[32,128], index: 9, kind: input, shape index: {}]
  %s10 = inlined_call_operand.vmem [shape: f32[32,128], index: 10, kind: input, shape index: {}]
  %s11 = inlined_call_operand.vmem [shape: f32[1,128], index: 11, kind: input, shape index: {}]
  %s12 = inlined_call_operand.vmem [shape: f32[8,128], index: 12, kind: output, shape index: {}]
  %s13 = sld [smem:[#allocation0]]
  $region58: #{char_predictor_forward.1} parent=0
    _
  %s15 = ssub.s32 1, %s13
  %s16 = scalar_select 0, %s15, %s13
  // Predicated region
  $region2: #{char_predictor_forward.1} parent=0 // pred_check
    _
  $region3: #{char_predictor_forward.1} parent=0 // pred_check_branch
    %18 = sbr.rel (0) target = $region5
  $region4: #{char_predictor_forward.1} parent=0 // pred_region
    _
  $region5: #{char_predictor_forward.1} parent=0 // pred_fallthru
    _
  // Predicated region
  $region6: #{char_predictor_forward.1} parent=0 // pred_check
    _
  $region7: #{char_predictor_forward.1} parent=0 // pred_check_branch
    %20 = sbr.rel (0) target = $region9
  $region8: #{char_predictor_forward.1} parent=0 // pred_region
    _
  $region9: #{char_predictor_forward.1} parent=0 // pred_fallthru
    _
  // Predicated region
  $region10: #{char_predictor_forward.1} parent=0 // pred_check
    _
  $region11: #{char_predictor_forward.1} parent=0 // pred_check_branch
    %22 = sbr.rel (0) target = $region13
  $region12: #{char_predictor_forward.1} parent=0 // pred_region
    _
  $region13: #{char_predictor_forward.1} parent=0 // pred_fallthru
    _
  // Predicated region
  $region14: #{char_predictor_forward.1} parent=0 // pred_check
    _
  $region15: #{char_predictor_forward.1} parent=0 // pred_check_branch
    %24 = sbr.rel (0) target = $region17
  $region16: #{char_predictor_forward.1} parent=0 // pred_region
    _
  $region17: #{char_predictor_forward.1} parent=0 // pred_fallthru
    _
  // Predicated region
  $region18: #{char_predictor_forward.1} parent=0 // pred_check
    _
  $region19: #{char_predictor_forward.1} parent=0 // pred_check_branch
    %26 = sbr.rel (0) target = $region21
  $region20: #{char_predictor_forward.1} parent=0 // pred_region
    _
  $region21: #{char_predictor_forward.1} parent=0 // pred_fallthru
    _
  // Predicated region
  $region22: #{char_predictor_forward.1} parent=0 // pred_check
    _
  $region23: #{char_predictor_forward.1} parent=0 // pred_check_branch
    %28 = sbr.rel (0) target = $region25
  $region24: #{char_predictor_forward.1} parent=0 // pred_region
    _
  $region25: #{char_predictor_forward.1} parent=0 // pred_fallthru
    _
  // Predicated region
  $region26: #{char_predictor_forward.1} parent=0 // pred_check
    _
  $region27: #{char_predictor_forward.1} parent=0 // pred_check_branch
    %30 = sbr.rel (0) target = $region29
  $region28: #{char_predictor_forward.1} parent=0 // pred_region
    _
  $region29: #{char_predictor_forward.1} parent=0 // pred_fallthru
    _
  // Predicated region
  $region30: #{char_predictor_forward.1} parent=0 // pred_check
    _
  $region31: #{char_predictor_forward.1} parent=0 // pred_check_branch
    %32 = sbr.rel (0) target = $region33
  $region32: #{char_predictor_forward.1} parent=0 // pred_region
    _
  $region33: #{char_predictor_forward.1} parent=0 // pred_fallthru
    _
  // Predicated region
  $region34: #{char_predictor_forward.1} parent=0 // pred_check
    _
  $region35: #{char_predictor_forward.1} parent=0 // pred_check_branch
    %34 = sbr.rel (0) target = $region37
  $region36: #{char_predictor_forward.1} parent=0 // pred_region
    _
  $region37: #{char_predictor_forward.1} parent=0 // pred_fallthru
    _
  // Predicated region
  $region38: #{char_predictor_forward.1} parent=0 // pred_check
    _
  $region39: #{char_predictor_forward.1} parent=0 // pred_check_branch
    %36 = sbr.rel (0) target = $region41
  $region40: #{char_predictor_forward.1} parent=0 // pred_region
    _
  $region41: #{char_predictor_forward.1} parent=0 // pred_fallthru
    _
  // Predicated region
  $region42: #{char_predictor_forward.1} parent=0 // pred_check
    _
  $region43: #{char_predictor_forward.1} parent=0 // pred_check_branch
    %38 = sbr.rel (0) target = $region45
  $region44: #{char_predictor_forward.1} parent=0 // pred_region
    _
  $region45: #{char_predictor_forward.1} parent=0 // pred_fallthru
    _
  // Predicated region
  $region46: #{char_predictor_forward.1} parent=0 // pred_check
    _
  $region47: #{char_predictor_forward.1} parent=0 // pred_check_branch
    %40 = sbr.rel (0) target = $region49
  $region48: #{char_predictor_forward.1} parent=0 // pred_region
    _
  $region49: #{char_predictor_forward.1} parent=0 // pred_fallthru
    _
  %v41 = vld [vmem:[%s0] sm:$0xff]
  %v42 = vld [vmem:[%s0 + $0x8] sm:$0xff]
  %v43 = vld [vmem:[%s0 + $0x10] sm:$0xff]
  %v44 = vld [vmem:[%s0 + $0x18] sm:$0xff]
  %v45 = vld [vmem:[%s0 + $0x20] sm:$0xff]
  %v46 = vld [vmem:[%s0 + $0x28] sm:$0xff]
  %v47 = vld [vmem:[%s0 + $0x30] sm:$0xff]
  %v48 = vld [vmem:[%s0 + $0x38] sm:$0xff]
  %v49 = vld [vmem:[%s1] sm:$0xff]
  %v50 = vld [vmem:[%s1 + $0x8] sm:$0xff]
  %v51 = vld [vmem:[%s1 + $0x10] sm:$0xff]
  %v52 = vld [vmem:[%s1 + $0x18] sm:$0xff]
  %v53 = vld [vmem:[%s2] sm:$0x3]
  %v55 = vlaneseq
  %v56 = vshrl.u32 %v55, 7
  %v57 = vsub.s32 0, %v56
  %v58 = vrot.slane %v53, %v57
  %v59 = vlaneseq
  %v60 = vshrl.u32 %v59, 7
  %v61 = vsub.s32 1, %v60
  %v62 = vrot.slane %v53, %v61
  %vm65 = vcmask 130048
  %v67 = vsel %vm65, %v41, 0
  %v70 = vsel %vm65, %v42, 0
  %v73 = vsel %vm65, %v43, 0
  %v76 = vsel %vm65, %v44, 0
  %v79 = vsel %vm65, %v45, 0
  %v82 = vsel %vm65, %v46, 0
  %v85 = vsel %vm65, %v47, 0
  %v88 = vsel %vm65, %v48, 0
  %90 = vmatprep.subr.mxu0 0.0
  %91 = vmatpush1.msra.mxu0 0.0
  %92 = vmatprep.subr.mxu0 0.0
  %93 = vmatpush1.msra.mxu0 0.0
  %94 = vmatprep.subr.mxu0 0.0
  %95 = vmatpush1.msra.mxu0 0.0
  %96 = vmatprep.subr.mxu0 0.0
  %97 = vmatpush1.msra.mxu0 0.0
  %98 = vmatprep.subr.mxu0 0.0
  %99 = vmatpush1.msra.mxu0 0.0
  %100 = vmatprep.subr.mxu0 0.0
  %101 = vmatpush1.msra.mxu0 0.0
  %102 = vmatprep.subr.mxu0 0.0
  %103 = vmatpush1.msra.mxu0 0.0
  %104 = vmatprep.subr.mxu0 0.0
  %105 = vmatpush1.msra.mxu0 0.0
  %106 = vmatprep.subr.mxu0 0.0
  %107 = vmatpush1.msra.mxu0 0.0
  %108 = vmatprep.subr.mxu0 0.0
  %109 = vmatpush1.msra.mxu0 0.0
  %110 = vmatprep.subr.mxu0 0.0
  %111 = vmatpush1.msra.mxu0 0.0
  %112 = vmatprep.subr.mxu0 0.0
  %113 = vmatpush1.msra.mxu0 0.0
  %114 = vmatprep.subr.mxu0 0.0
  %115 = vmatpush1.msra.mxu0 0.0
  %116 = vmatprep.subr.mxu0 0.0
  %117 = vmatpush1.msra.mxu0 0.0
  %118 = vmatprep.subr.mxu0 %v52
  %119 = vmatpush1.msra.mxu0 %v51
  %120 = vmatprep.subr.mxu0 %v50
  %121 = vmatpush1.msra.mxu0 %v49
  %122 = vmatprep.subr.mxu0 0.0
  %123 = vmatpush2.msra.mxu0 0.0
  %124 = vmatprep.subr.mxu0 0.0
  %125 = vmatpush2.msra.mxu0 0.0
  %126 = vmatprep.subr.mxu0 0.0
  %127 = vmatpush2.msra.mxu0 0.0
  %128 = vmatprep.subr.mxu0 0.0
  %129 = vmatpush2.msra.mxu0 0.0
  %130 = vmatprep.subr.mxu0 0.0
  %131 = vmatpush2.msra.mxu0 0.0
  %132 = vmatprep.subr.mxu0 0.0
  %133 = vmatpush2.msra.mxu0 0.0
  %134 = vmatprep.subr.mxu0 0.0
  %135 = vmatpush2.msra.mxu0 0.0
  %136 = vmatprep.subr.mxu0 0.0
  %137 = vmatpush2.msra.mxu0 0.0
  %138 = vmatprep.subr.mxu0 0.0
  %139 = vmatpush2.msra.mxu0 0.0
  %140 = vmatprep.subr.mxu0 0.0
  %141 = vmatpush2.msra.mxu0 0.0
  %142 = vmatprep.subr.mxu0 0.0
  %143 = vmatpush2.msra.mxu0 0.0
  %144 = vmatprep.subr.mxu0 0.0
  %145 = vmatpush2.msra.mxu0 0.0
  %146 = vmatprep.subr.mxu0 0.0
  %147 = vmatpush2.msra.mxu0 0.0
  %148 = vmatprep.subr.mxu0 0.0
  %149 = vmatpush2.msra.mxu0 0.0
  %150 = vmatprep.subr.mxu0 0.0
  %151 = vmatpush2.msra.mxu0 0.0
  %152 = vmatprep.subr.mxu0 0.0
  %153 = vmatpush2.msra.mxu0 0.0
  %154 = vmatprep.mubr.f32.mxu0 0.0
  %155 = vmatmul.mubr.f32.gmra.mxu0 %v67
  %v156 = vpop.f32.mrf.mxu0
  %v157 = vadd.f32 %v58, %v156
  %v158 = vpop.f32.mrf.mxu0
  %v159 = vadd.f32 %v62, %v158
  %160 = vmatprep.mubr.f32.mxu0 0.0
  %161 = vmatmul.mubr.f32.gmra.mxu0 %v70
  %v162 = vpop.f32.mrf.mxu0
  %v163 = vadd.f32 %v58, %v162
  %v164 = vpop.f32.mrf.mxu0
  %v165 = vadd.f32 %v62, %v164
  %166 = vmatprep.mubr.f32.mxu0 0.0
  %167 = vmatmul.mubr.f32.gmra.mxu0 %v73
  %v168 = vpop.f32.mrf.mxu0
  %v169 = vadd.f32 %v58, %v168
  %v170 = vpop.f32.mrf.mxu0
  %v171 = vadd.f32 %v62, %v170
  %172 = vmatprep.mubr.f32.mxu0 0.0
  %173 = vmatmul.mubr.f32.gmra.mxu0 %v76
  %v174 = vpop.f32.mrf.mxu0
  %v175 = vadd.f32 %v58, %v174
  %v176 = vpop.f32.mrf.mxu0
  %v177 = vadd.f32 %v62, %v176
  %178 = vmatprep.mubr.f32.mxu0 0.0
  %179 = vmatmul.mubr.f32.gmra.mxu0 %v79
  %v180 = vpop.f32.mrf.mxu0
  %v181 = vadd.f32 %v58, %v180
  %v182 = vpop.f32.mrf.mxu0
  %v183 = vadd.f32 %v62, %v182
  %184 = vmatprep.mubr.f32.mxu0 0.0
  %185 = vmatmul.mubr.f32.gmra.mxu0 %v82
  %v186 = vpop.f32.mrf.mxu0
  %v187 = vadd.f32 %v58, %v186
  %v188 = vpop.f32.mrf.mxu0
  %v189 = vadd.f32 %v62, %v188
  %190 = vmatprep.mubr.f32.mxu0 0.0
  %191 = vmatmul.mubr.f32.gmra.mxu0 %v85
  %v192 = vpop.f32.mrf.mxu0
  %v193 = vadd.f32 %v58, %v192
  %v194 = vpop.f32.mrf.mxu0
  %v195 = vadd.f32 %v62, %v194
  %196 = vmatprep.mubr.f32.mxu0 0.0
  %197 = vmatmul.mubr.f32.gmra.mxu0 %v88
  %v198 = vpop.f32.mrf.mxu0
  %v199 = vadd.f32 %v58, %v198
  %v200 = vpop.f32.mrf.mxu0
  %v201 = vadd.f32 %v62, %v200
  %202 = vdwg.mxu0
  %203 = vst [vmem:[#allocation2] sm:$0xff] %v157
  %204 = vst [vmem:[#allocation2 + $0x8] sm:$0xff] %v159
  %205 = vst [vmem:[#allocation2 + $0x10] sm:$0xff] %v163
  %206 = vst [vmem:[#allocation2 + $0x18] sm:$0xff] %v165
  %207 = vst [vmem:[#allocation2 + $0x20] sm:$0xff] %v169
  %208 = vst [vmem:[#allocation2 + $0x28] sm:$0xff] %v171
  %209 = vst [vmem:[#allocation2 + $0x30] sm:$0xff] %v175
  %210 = vst [vmem:[#allocation2 + $0x38] sm:$0xff] %v177
  %211 = vst [vmem:[#allocation2 + $0x40] sm:$0xff] %v181
  %212 = vst [vmem:[#allocation2 + $0x48] sm:$0xff] %v183
  %213 = vst [vmem:[#allocation2 + $0x50] sm:$0xff] %v187
  %214 = vst [vmem:[#allocation2 + $0x58] sm:$0xff] %v189
  %215 = vst [vmem:[#allocation2 + $0x60] sm:$0xff] %v193
  %216 = vst [vmem:[#allocation2 + $0x68] sm:$0xff] %v195
  %217 = vst [vmem:[#allocation2 + $0x70] sm:$0xff] %v199
  %218 = vst [vmem:[#allocation2 + $0x78] sm:$0xff] %v201
  %v219 = vld [vmem:[%s3] sm:$0xff]
  %v220 = vld [vmem:[%s3 + $0x8] sm:$0xff]
  %v221 = vld [vmem:[%s3 + $0x10] sm:$0xff]
  %v222 = vld [vmem:[%s3 + $0x18] sm:$0xff]
  %v223 = vld [vmem:[%s4] sm:$0xff]
  %v224 = vld [vmem:[%s4 + $0x8] sm:$0xff]
  %v225 = vld [vmem:[%s4 + $0x10] sm:$0xff]
  %v226 = vld [vmem:[%s4 + $0x18] sm:$0xff]
  %v227 = vld [vmem:[#allocation2] sm:$0xff]
  %v228 = vld [vmem:[#allocation2 + $0x78] sm:$0xff]
  %v229 = vxor.u32 %v227, 2147483648
  %v230 = vmul.f32 %v229, 1.442695
  %v231 = vpow.pop %v230
  %v232 = vadd.f32 %v231, 1.0
  %v233 = vrcp.pop %v232
  %v234 = vmul.f32 1.0, %v233
  %v235 = vtanh.pop %v227
  %v236 = vmul.f32 %v234, 0.0
  %238 = vrot.lane.b32.xlu0 %v235, 64
  %v239 = vpop.permute.xlu0 %238
  %v241 = vmul.f32 %v234, %v239
  %243 = vrot.lane.b32.xlu0 %v241, 32
  %v244 = vpop.permute.xlu0 %243
  %v246 = vadd.f32 %v236, %v244
  %v247 = vtanh.pop %v246
  %249 = vrot.lane.b32.xlu0 %v247, 64
  %v250 = vpop.permute.xlu0 %249
  %v252 = vmul.f32 %v234, %v250
  %v253 = vxor.u32 %v228, 2147483648
  %v254 = vmul.f32 %v253, 1.442695
  %v255 = vpow.pop %v254
  %v256 = vadd.f32 %v255, 1.0
  %v257 = vrcp.pop %v256
  %v258 = vmul.f32 1.0, %v257
  %v259 = vtanh.pop %v228
  %v260 = vmul.f32 %v258, 0.0
  %262 = vrot.lane.b32.xlu0 %v259, 64
  %v263 = vpop.permute.xlu0 %262
  %v265 = vmul.f32 %v258, %v263
  %267 = vrot.lane.b32.xlu0 %v265, 32
  %v268 = vpop.permute.xlu0 %267
  %v270 = vadd.f32 %v260, %v268
  %v271 = vtanh.pop %v270
  %273 = vrot.lane.b32.xlu0 %v271, 64
  %v274 = vpop.permute.xlu0 %273
  %v276 = vmul.f32 %v258, %v274
  %278 = vrot.lane.b32.xlu0 %v252, 32
  %v279 = vpop.permute.xlu0 %278
  %vm281 = vcmask 261120
  %282 = vst.msk [vmem:[#allocation3] sm:$0xff] %vm281, %v279
  %284 = vrot.lane.b32.xlu0 %v276, 64
  %v285 = vpop.permute.xlu0 %284
  %vm287 = vcmask 523520
  %288 = vst.msk [vmem:[#allocation3 + $0x38] sm:$0xff] %vm287, %v285
  %v289 = vld [vmem:[#allocation2 + $0x10] sm:$0xff]
  %v290 = vld [vmem:[#allocation2 + $0x68] sm:$0xff]
  %v291 = vsel %vm281, %v279, 0
  %293 = vmatprep.subr.mxu0 0.0
  %294 = vmatpush1.msra.mxu0 0.0
  %295 = vmatprep.subr.mxu0 0.0
  %296 = vmatpush1.msra.mxu0 0.0
  %297 = vmatprep.subr.mxu0 0.0
  %298 = vmatpush1.msra.mxu0 0.0
  %299 = vmatprep.subr.mxu0 0.0
  %300 = vmatpush1.msra.mxu0 0.0
  %301 = vmatprep.subr.mxu0 0.0
  %302 = vmatpush1.msra.mxu0 0.0
  %303 = vmatprep.subr.mxu0 0.0
  %304 = vmatpush1.msra.mxu0 0.0
  %305 = vmatprep.subr.mxu0 0.0
  %306 = vmatpush1.msra.mxu0 0.0
  %307 = vmatprep.subr.mxu0 0.0
  %308 = vmatpush1.msra.mxu0 0.0
  %309 = vmatprep.subr.mxu0 0.0
  %310 = vmatpush1.msra.mxu0 0.0
  %311 = vmatprep.subr.mxu0 0.0
  %312 = vmatpush1.msra.mxu0 0.0
  %313 = vmatprep.subr.mxu0 0.0
  %314 = vmatpush1.msra.mxu0 0.0
  %315 = vmatprep.subr.mxu0 0.0
  %316 = vmatpush1.msra.mxu0 0.0
  %317 = vmatprep.subr.mxu0 0.0
  %318 = vmatpush1.msra.mxu0 %v222
  %319 = vmatprep.subr.mxu0 0.0
  %320 = vmatpush1.msra.mxu0 %v221
  %321 = vmatprep.subr.mxu0 0.0
  %322 = vmatpush1.msra.mxu0 %v220
  %323 = vmatprep.subr.mxu0 0.0
  %324 = vmatpush1.msra.mxu0 %v219
  %325 = vmatprep.subr.mxu0 0.0
  %326 = vmatpush2.msra.mxu0 0.0
  %327 = vmatprep.subr.mxu0 0.0
  %328 = vmatpush2.msra.mxu0 0.0
  %329 = vmatprep.subr.mxu0 0.0
  %330 = vmatpush2.msra.mxu0 0.0
  %331 = vmatprep.subr.mxu0 0.0
  %332 = vmatpush2.msra.mxu0 0.0
  %333 = vmatprep.subr.mxu0 0.0
  %334 = vmatpush2.msra.mxu0 0.0
  %335 = vmatprep.subr.mxu0 0.0
  %336 = vmatpush2.msra.mxu0 0.0
  %337 = vmatprep.subr.mxu0 0.0
  %338 = vmatpush2.msra.mxu0 0.0
  %339 = vmatprep.subr.mxu0 0.0
  %340 = vmatpush2.msra.mxu0 0.0
  %341 = vmatprep.subr.mxu0 0.0
  %342 = vmatpush2.msra.mxu0 0.0
  %343 = vmatprep.subr.mxu0 0.0
  %344 = vmatpush2.msra.mxu0 0.0
  %345 = vmatprep.subr.mxu0 0.0
  %346 = vmatpush2.msra.mxu0 0.0
  %347 = vmatprep.subr.mxu0 0.0
  %348 = vmatpush2.msra.mxu0 0.0
  %349 = vmatprep.subr.mxu0 0.0
  %350 = vmatpush2.msra.mxu0 0.0
  %351 = vmatprep.subr.mxu0 0.0
  %352 = vmatpush2.msra.mxu0 0.0
  %353 = vmatprep.subr.mxu0 0.0
  %354 = vmatpush2.msra.mxu0 0.0
  %355 = vmatprep.subr.mxu0 0.0
  %356 = vmatpush2.msra.mxu0 0.0
  %357 = vmatprep.mubr.f32.mxu0 0.0
  %358 = vmatmul.mubr.f32.gmra.mxu0 %v291
  %v359 = vpop.f32.mrf.mxu0
  %v360 = vadd.f32 0.0, %v359
  %v361 = vpop.f32.mrf.mxu0
  %362 = vdwg.mxu0
  %v363 = vadd.f32 %v289, %v360
  %364 = vrot.lane.b32.xlu0 %v276, 32
  %v365 = vpop.permute.xlu0 %364
  %v366 = vsel %vm281, %v365, 0
  %368 = vmatprep.subr.mxu0 0.0
  %369 = vmatpush1.msra.mxu0 0.0
  %370 = vmatprep.subr.mxu0 0.0
  %371 = vmatpush1.msra.mxu0 0.0
  %372 = vmatprep.subr.mxu0 0.0
  %373 = vmatpush1.msra.mxu0 0.0
  %374 = vmatprep.subr.mxu0 0.0
  %375 = vmatpush1.msra.mxu0 0.0
  %376 = vmatprep.subr.mxu0 0.0
  %377 = vmatpush1.msra.mxu0 0.0
  %378 = vmatprep.subr.mxu0 0.0
  %379 = vmatpush1.msra.mxu0 0.0
  %380 = vmatprep.subr.mxu0 0.0
  %381 = vmatpush1.msra.mxu0 0.0
  %382 = vmatprep.subr.mxu0 0.0
  %383 = vmatpush1.msra.mxu0 0.0
  %384 = vmatprep.subr.mxu0 0.0
  %385 = vmatpush1.msra.mxu0 0.0
  %386 = vmatprep.subr.mxu0 0.0
  %387 = vmatpush1.msra.mxu0 0.0
  %388 = vmatprep.subr.mxu0 0.0
  %389 = vmatpush1.msra.mxu0 0.0
  %390 = vmatprep.subr.mxu0 0.0
  %391 = vmatpush1.msra.mxu0 0.0
  %392 = vmatprep.subr.mxu0 0.0
  %393 = vmatpush1.msra.mxu0 %v226
  %394 = vmatprep.subr.mxu0 0.0
  %395 = vmatpush1.msra.mxu0 %v225
  %396 = vmatprep.subr.mxu0 0.0
  %397 = vmatpush1.msra.mxu0 %v224
  %398 = vmatprep.subr.mxu0 0.0
  %399 = vmatpush1.msra.mxu0 %v223
  %400 = vmatprep.subr.mxu0 0.0
  %401 = vmatpush2.msra.mxu0 0.0
  %402 = vmatprep.subr.mxu0 0.0
  %403 = vmatpush2.msra.mxu0 0.0
  %404 = vmatprep.subr.mxu0 0.0
  %405 = vmatpush2.msra.mxu0 0.0
  %406 = vmatprep.subr.mxu0 0.0
  %407 = vmatpush2.msra.mxu0 0.0
  %408 = vmatprep.subr.mxu0 0.0
  %409 = vmatpush2.msra.mxu0 0.0
  %410 = vmatprep.subr.mxu0 0.0
  %411 = vmatpush2.msra.mxu0 0.0
  %412 = vmatprep.subr.mxu0 0.0
  %413 = vmatpush2.msra.mxu0 0.0
  %414 = vmatprep.subr.mxu0 0.0
  %415 = vmatpush2.msra.mxu0 0.0
  %416 = vmatprep.subr.mxu0 0.0
  %417 = vmatpush2.msra.mxu0 0.0
  %418 = vmatprep.subr.mxu0 0.0
  %419 = vmatpush2.msra.mxu0 0.0
  %420 = vmatprep.subr.mxu0 0.0
  %421 = vmatpush2.msra.mxu0 0.0
  %422 = vmatprep.subr.mxu0 0.0
  %423 = vmatpush2.msra.mxu0 0.0
  %424 = vmatprep.subr.mxu0 0.0
  %425 = vmatpush2.msra.mxu0 0.0
  %426 = vmatprep.subr.mxu0 0.0
  %427 = vmatpush2.msra.mxu0 0.0
  %428 = vmatprep.subr.mxu0 0.0
  %429 = vmatpush2.msra.mxu0 0.0
  %430 = vmatprep.subr.mxu0 0.0
  %431 = vmatpush2.msra.mxu0 0.0
  %432 = vmatprep.mubr.f32.mxu0 0.0
  %433 = vmatmul.mubr.f32.gmra.mxu0 %v366
  %v434 = vpop.f32.mrf.mxu0
  %v435 = vadd.f32 0.0, %v434
  %v436 = vpop.f32.mrf.mxu0
  %437 = vdwg.mxu0
  %v438 = vadd.f32 %v290, %v435
  %v439 = vxor.u32 %v363, 2147483648
  %v440 = vmul.f32 %v439, 1.442695
  %v441 = vpow.pop %v440
  %v442 = vadd.f32 %v441, 1.0
  %v443 = vrcp.pop %v442
  %v444 = vmul.f32 1.0, %v443
  %v445 = vtanh.pop %v363
  %v446 = vmul.f32 %v444, %v246
  %448 = vrot.lane.b32.xlu0 %v445, 64
  %v449 = vpop.permute.xlu0 %448
  %v451 = vmul.f32 %v444, %v449
  %453 = vrot.lane.b32.xlu0 %v451, 32
  %v454 = vpop.permute.xlu0 %453
  %v456 = vadd.f32 %v446, %v454
  %v457 = vtanh.pop %v456
  %459 = vrot.lane.b32.xlu0 %v457, 64
  %v460 = vpop.permute.xlu0 %459
  %v462 = vmul.f32 %v444, %v460
  %v463 = vxor.u32 %v438, 2147483648
  %v464 = vmul.f32 %v463, 1.442695
  %v465 = vpow.pop %v464
  %v466 = vadd.f32 %v465, 1.0
  %v467 = vrcp.pop %v466
  %v468 = vmul.f32 1.0, %v467
  %v469 = vtanh.pop %v438
  %v470 = vmul.f32 %v468, %v270
  %472 = vrot.lane.b32.xlu0 %v469, 64
  %v473 = vpop.permute.xlu0 %472
  %v475 = vmul.f32 %v468, %v473
  %477 = vrot.lane.b32.xlu0 %v475, 32
  %v478 = vpop.permute.xlu0 %477
  %v480 = vadd.f32 %v470, %v478
  %v481 = vtanh.pop %v480
  %483 = vrot.lane.b32.xlu0 %v481, 64
  %v484 = vpop.permute.xlu0 %483
  %v486 = vmul.f32 %v468, %v484
  %488 = vrot.lane.b32.xlu0 %v462, 32
  %v489 = vpop.permute.xlu0 %488
  %491 = vst.msk [vmem:[#allocation3 + $0x8] sm:$0xff] %vm281, %v489
  %493 = vrot.lane.b32.xlu0 %v486, 64
  %v494 = vpop.permute.xlu0 %493
  %496 = vst.msk [vmem:[#allocation3 + $0x30] sm:$0xff] %vm287, %v494
  %v497 = vld [vmem:[#allocation2 + $0x20] sm:$0xff]
  %v498 = vld [vmem:[#allocation2 + $0x58] sm:$0xff]
  %v499 = vsel %vm281, %v489, 0
  %501 = vmatprep.subr.mxu0 0.0
  %502 = vmatpush1.msra.mxu0 0.0
  %503 = vmatprep.subr.mxu0 0.0
  %504 = vmatpush1.msra.mxu0 0.0
  %505 = vmatprep.subr.mxu0 0.0
  %506 = vmatpush1.msra.mxu0 0.0
  %507 = vmatprep.subr.mxu0 0.0
  %508 = vmatpush1.msra.mxu0 0.0
  %509 = vmatprep.subr.mxu0 0.0
  %510 = vmatpush1.msra.mxu0 0.0
  %511 = vmatprep.subr.mxu0 0.0
  %512 = vmatpush1.msra.mxu0 0.0
  %513 = vmatprep.subr.mxu0 0.0
  %514 = vmatpush1.msra.mxu0 0.0
  %515 = vmatprep.subr.mxu0 0.0
  %516 = vmatpush1.msra.mxu0 0.0
  %517 = vmatprep.subr.mxu0 0.0
  %518 = vmatpush1.msra.mxu0 0.0
  %519 = vmatprep.subr.mxu0 0.0
  %520 = vmatpush1.msra.mxu0 0.0
  %521 = vmatprep.subr.mxu0 0.0
  %522 = vmatpush1.msra.mxu0 0.0
  %523 = vmatprep.subr.mxu0 0.0
  %524 = vmatpush1.msra.mxu0 0.0
  %525 = vmatprep.subr.mxu0 0.0
  %526 = vmatpush1.msra.mxu0 %v222
  %527 = vmatprep.subr.mxu0 0.0
  %528 = vmatpush1.msra.mxu0 %v221
  %529 = vmatprep.subr.mxu0 0.0
  %530 = vmatpush1.msra.mxu0 %v220
  %531 = vmatprep.subr.mxu0 0.0
  %532 = vmatpush1.msra.mxu0 %v219
  %533 = vmatprep.subr.mxu0 0.0
  %534 = vmatpush2.msra.mxu0 0.0
  %535 = vmatprep.subr.mxu0 0.0
  %536 = vmatpush2.msra.mxu0 0.0
  %537 = vmatprep.subr.mxu0 0.0
  %538 = vmatpush2.msra.mxu0 0.0
  %539 = vmatprep.subr.mxu0 0.0
  %540 = vmatpush2.msra.mxu0 0.0
  %541 = vmatprep.subr.mxu0 0.0
  %542 = vmatpush2.msra.mxu0 0.0
  %543 = vmatprep.subr.mxu0 0.0
  %544 = vmatpush2.msra.mxu0 0.0
  %545 = vmatprep.subr.mxu0 0.0
  %546 = vmatpush2.msra.mxu0 0.0
  %547 = vmatprep.subr.mxu0 0.0
  %548 = vmatpush2.msra.mxu0 0.0
  %549 = vmatprep.subr.mxu0 0.0
  %550 = vmatpush2.msra.mxu0 0.0
  %551 = vmatprep.subr.mxu0 0.0
  %552 = vmatpush2.msra.mxu0 0.0
  %553 = vmatprep.subr.mxu0 0.0
  %554 = vmatpush2.msra.mxu0 0.0
  %555 = vmatprep.subr.mxu0 0.0
  %556 = vmatpush2.msra.mxu0 0.0
  %557 = vmatprep.subr.mxu0 0.0
  %558 = vmatpush2.msra.mxu0 0.0
  %559 = vmatprep.subr.mxu0 0.0
  %560 = vmatpush2.msra.mxu0 0.0
  %561 = vmatprep.subr.mxu0 0.0
  %562 = vmatpush2.msra.mxu0 0.0
  %563 = vmatprep.subr.mxu0 0.0
  %564 = vmatpush2.msra.mxu0 0.0
  %565 = vmatprep.mubr.f32.mxu0 0.0
  %566 = vmatmul.mubr.f32.gmra.mxu0 %v499
  %v567 = vpop.f32.mrf.mxu0
  %v568 = vadd.f32 0.0, %v567
  %v569 = vpop.f32.mrf.mxu0
  %570 = vdwg.mxu0
  %v571 = vadd.f32 %v497, %v568
  %572 = vrot.lane.b32.xlu0 %v486, 32
  %v573 = vpop.permute.xlu0 %572
  %v574 = vsel %vm281, %v573, 0
  %576 = vmatprep.subr.mxu0 0.0
  %577 = vmatpush1.msra.mxu0 0.0
  %578 = vmatprep.subr.mxu0 0.0
  %579 = vmatpush1.msra.mxu0 0.0
  %580 = vmatprep.subr.mxu0 0.0
  %581 = vmatpush1.msra.mxu0 0.0
  %582 = vmatprep.subr.mxu0 0.0
  %583 = vmatpush1.msra.mxu0 0.0
  %584 = vmatprep.subr.mxu0 0.0
  %585 = vmatpush1.msra.mxu0 0.0
  %586 = vmatprep.subr.mxu0 0.0
  %587 = vmatpush1.msra.mxu0 0.0
  %588 = vmatprep.subr.mxu0 0.0
  %589 = vmatpush1.msra.mxu0 0.0
  %590 = vmatprep.subr.mxu0 0.0
  %591 = vmatpush1.msra.mxu0 0.0
  %592 = vmatprep.subr.mxu0 0.0
  %593 = vmatpush1.msra.mxu0 0.0
  %594 = vmatprep.subr.mxu0 0.0
  %595 = vmatpush1.msra.mxu0 0.0
  %596 = vmatprep.subr.mxu0 0.0
  %597 = vmatpush1.msra.mxu0 0.0
  %598 = vmatprep.subr.mxu0 0.0
  %599 = vmatpush1.msra.mxu0 0.0
  %600 = vmatprep.subr.mxu0 0.0
  %601 = vmatpush1.msra.mxu0 %v226
  %602 = vmatprep.subr.mxu0 0.0
  %603 = vmatpush1.msra.mxu0 %v225
  %604 = vmatprep.subr.mxu0 0.0
  %605 = vmatpush1.msra.mxu0 %v224
  %606 = vmatprep.subr.mxu0 0.0
  %607 = vmatpush1.msra.mxu0 %v223
  %608 = vmatprep.subr.mxu0 0.0
  %609 = vmatpush2.msra.mxu0 0.0
  %610 = vmatprep.subr.mxu0 0.0
  %611 = vmatpush2.msra.mxu0 0.0
  %612 = vmatprep.subr.mxu0 0.0
  %613 = vmatpush2.msra.mxu0 0.0
  %614 = vmatprep.subr.mxu0 0.0
  %615 = vmatpush2.msra.mxu0 0.0
  %616 = vmatprep.subr.mxu0 0.0
  %617 = vmatpush2.msra.mxu0 0.0
  %618 = vmatprep.subr.mxu0 0.0
  %619 = vmatpush2.msra.mxu0 0.0
  %620 = vmatprep.subr.mxu0 0.0
  %621 = vmatpush2.msra.mxu0 0.0
  %622 = vmatprep.subr.mxu0 0.0
  %623 = vmatpush2.msra.mxu0 0.0
  %624 = vmatprep.subr.mxu0 0.0
  %625 = vmatpush2.msra.mxu0 0.0
  %626 = vmatprep.subr.mxu0 0.0
  %627 = vmatpush2.msra.mxu0 0.0
  %628 = vmatprep.subr.mxu0 0.0
  %629 = vmatpush2.msra.mxu0 0.0
  %630 = vmatprep.subr.mxu0 0.0
  %631 = vmatpush2.msra.mxu0 0.0
  %632 = vmatprep.subr.mxu0 0.0
  %633 = vmatpush2.msra.mxu0 0.0
  %634 = vmatprep.subr.mxu0 0.0
  %635 = vmatpush2.msra.mxu0 0.0
  %636 = vmatprep.subr.mxu0 0.0
  %637 = vmatpush2.msra.mxu0 0.0
  %638 = vmatprep.subr.mxu0 0.0
  %639 = vmatpush2.msra.mxu0 0.0
  %640 = vmatprep.mubr.f32.mxu0 0.0
  %641 = vmatmul.mubr.f32.gmra.mxu0 %v574
  %v642 = vpop.f32.mrf.mxu0
  %v643 = vadd.f32 0.0, %v642
  %v644 = vpop.f32.mrf.mxu0
  %645 = vdwg.mxu0
  %v646 = vadd.f32 %v498, %v643
  %v647 = vxor.u32 %v571, 2147483648
  %v648 = vmul.f32 %v647, 1.442695
  %v649 = vpow.pop %v648
  %v650 = vadd.f32 %v649, 1.0
  %v651 = vrcp.pop %v650
  %v652 = vmul.f32 1.0, %v651
  %v653 = vtanh.pop %v571
  %v654 = vmul.f32 %v652, %v456
  %656 = vrot.lane.b32.xlu0 %v653, 64
  %v657 = vpop.permute.xlu0 %656
  %v659 = vmul.f32 %v652, %v657
  %661 = vrot.lane.b32.xlu0 %v659, 32
  %v662 = vpop.permute.xlu0 %661
  %v664 = vadd.f32 %v654, %v662
  %v665 = vtanh.pop %v664
  %667 = vrot.lane.b32.xlu0 %v665, 64
  %v668 = vpop.permute.xlu0 %667
  %v670 = vmul.f32 %v652, %v668
  %v671 = vxor.u32 %v646, 2147483648
  %v672 = vmul.f32 %v671, 1.442695
  %v673 = vpow.pop %v672
  %v674 = vadd.f32 %v673, 1.0
  %v675 = vrcp.pop %v674
  %v676 = vmul.f32 1.0, %v675
  %v677 = vtanh.pop %v646
  %v678 = vmul.f32 %v676, %v480
  %680 = vrot.lane.b32.xlu0 %v677, 64
  %v681 = vpop.permute.xlu0 %680
  %v683 = vmul.f32 %v676, %v681
  %685 = vrot.lane.b32.xlu0 %v683, 32
  %v686 = vpop.permute.xlu0 %685
  %v688 = vadd.f32 %v678, %v686
  %v689 = vtanh.pop %v688
  %691 = vrot.lane.b32.xlu0 %v689, 64
  %v692 = vpop.permute.xlu0 %691
  %v694 = vmul.f32 %v676, %v692
  %696 = vrot.lane.b32.xlu0 %v670, 32
  %v697 = vpop.permute.xlu0 %696
  %699 = vst.msk [vmem:[#allocation3 + $0x10] sm:$0xff] %vm281, %v697
  %701 = vrot.lane.b32.xlu0 %v694, 64
  %v702 = vpop.permute.xlu0 %701
  %704 = vst.msk [vmem:[#allocation3 + $0x28] sm:$0xff] %vm287, %v702
  %v705 = vld [vmem:[#allocation2 + $0x30] sm:$0xff]
  %v706 = vld [vmem:[#allocation2 + $0x48] sm:$0xff]
  %v707 = vsel %vm281, %v697, 0
  %709 = vmatprep.subr.mxu0 0.0
  %710 = vmatpush1.msra.mxu0 0.0
  %711 = vmatprep.subr.mxu0 0.0
  %712 = vmatpush1.msra.mxu0 0.0
  %713 = vmatprep.subr.mxu0 0.0
  %714 = vmatpush1.msra.mxu0 0.0
  %715 = vmatprep.subr.mxu0 0.0
  %716 = vmatpush1.msra.mxu0 0.0
  %717 = vmatprep.subr.mxu0 0.0
  %718 = vmatpush1.msra.mxu0 0.0
  %719 = vmatprep.subr.mxu0 0.0
  %720 = vmatpush1.msra.mxu0 0.0
  %721 = vmatprep.subr.mxu0 0.0
  %722 = vmatpush1.msra.mxu0 0.0
  %723 = vmatprep.subr.mxu0 0.0
  %724 = vmatpush1.msra.mxu0 0.0
  %725 = vmatprep.subr.mxu0 0.0
  %726 = vmatpush1.msra.mxu0 0.0
  %727 = vmatprep.subr.mxu0 0.0
  %728 = vmatpush1.msra.mxu0 0.0
  %729 = vmatprep.subr.mxu0 0.0
  %730 = vmatpush1.msra.mxu0 0.0
  %731 = vmatprep.subr.mxu0 0.0
  %732 = vmatpush1.msra.mxu0 0.0
  %733 = vmatprep.subr.mxu0 0.0
  %734 = vmatpush1.msra.mxu0 %v222
  %735 = vmatprep.subr.mxu0 0.0
  %736 = vmatpush1.msra.mxu0 %v221
  %737 = vmatprep.subr.mxu0 0.0
  %738 = vmatpush1.msra.mxu0 %v220
  %739 = vmatprep.subr.mxu0 0.0
  %740 = vmatpush1.msra.mxu0 %v219
  %741 = vmatprep.subr.mxu0 0.0
  %742 = vmatpush2.msra.mxu0 0.0
  %743 = vmatprep.subr.mxu0 0.0
  %744 = vmatpush2.msra.mxu0 0.0
  %745 = vmatprep.subr.mxu0 0.0
  %746 = vmatpush2.msra.mxu0 0.0
  %747 = vmatprep.subr.mxu0 0.0
  %748 = vmatpush2.msra.mxu0 0.0
  %749 = vmatprep.subr.mxu0 0.0
  %750 = vmatpush2.msra.mxu0 0.0
  %751 = vmatprep.subr.mxu0 0.0
  %752 = vmatpush2.msra.mxu0 0.0
  %753 = vmatprep.subr.mxu0 0.0
  %754 = vmatpush2.msra.mxu0 0.0
  %755 = vmatprep.subr.mxu0 0.0
  %756 = vmatpush2.msra.mxu0 0.0
  %757 = vmatprep.subr.mxu0 0.0
  %758 = vmatpush2.msra.mxu0 0.0
  %759 = vmatprep.subr.mxu0 0.0
  %760 = vmatpush2.msra.mxu0 0.0
  %761 = vmatprep.subr.mxu0 0.0
  %762 = vmatpush2.msra.mxu0 0.0
  %763 = vmatprep.subr.mxu0 0.0
  %764 = vmatpush2.msra.mxu0 0.0
  %765 = vmatprep.subr.mxu0 0.0
  %766 = vmatpush2.msra.mxu0 0.0
  %767 = vmatprep.subr.mxu0 0.0
  %768 = vmatpush2.msra.mxu0 0.0
  %769 = vmatprep.subr.mxu0 0.0
  %770 = vmatpush2.msra.mxu0 0.0
  %771 = vmatprep.subr.mxu0 0.0
  %772 = vmatpush2.msra.mxu0 0.0
  %773 = vmatprep.mubr.f32.mxu0 0.0
  %774 = vmatmul.mubr.f32.gmra.mxu0 %v707
  %v775 = vpop.f32.mrf.mxu0
  %v776 = vadd.f32 0.0, %v775
  %v777 = vpop.f32.mrf.mxu0
  %778 = vdwg.mxu0
  %v779 = vadd.f32 %v705, %v776
  %780 = vrot.lane.b32.xlu0 %v694, 32
  %v781 = vpop.permute.xlu0 %780
  %v782 = vsel %vm281, %v781, 0
  %784 = vmatprep.subr.mxu0 0.0
  %785 = vmatpush1.msra.mxu0 0.0
  %786 = vmatprep.subr.mxu0 0.0
  %787 = vmatpush1.msra.mxu0 0.0
  %788 = vmatprep.subr.mxu0 0.0
  %789 = vmatpush1.msra.mxu0 0.0
  %790 = vmatprep.subr.mxu0 0.0
  %791 = vmatpush1.msra.mxu0 0.0
  %792 = vmatprep.subr.mxu0 0.0
  %793 = vmatpush1.msra.mxu0 0.0
  %794 = vmatprep.subr.mxu0 0.0
  %795 = vmatpush1.msra.mxu0 0.0
  %796 = vmatprep.subr.mxu0 0.0
  %797 = vmatpush1.msra.mxu0 0.0
  %798 = vmatprep.subr.mxu0 0.0
  %799 = vmatpush1.msra.mxu0 0.0
  %800 = vmatprep.subr.mxu0 0.0
  %801 = vmatpush1.msra.mxu0 0.0
  %802 = vmatprep.subr.mxu0 0.0
  %803 = vmatpush1.msra.mxu0 0.0
  %804 = vmatprep.subr.mxu0 0.0
  %805 = vmatpush1.msra.mxu0 0.0
  %806 = vmatprep.subr.mxu0 0.0
  %807 = vmatpush1.msra.mxu0 0.0
  %808 = vmatprep.subr.mxu0 0.0
  %809 = vmatpush1.msra.mxu0 %v226
  %810 = vmatprep.subr.mxu0 0.0
  %811 = vmatpush1.msra.mxu0 %v225
  %812 = vmatprep.subr.mxu0 0.0
  %813 = vmatpush1.msra.mxu0 %v224
  %814 = vmatprep.subr.mxu0 0.0
  %815 = vmatpush1.msra.mxu0 %v223
  %816 = vmatprep.subr.mxu0 0.0
  %817 = vmatpush2.msra.mxu0 0.0
  %818 = vmatprep.subr.mxu0 0.0
  %819 = vmatpush2.msra.mxu0 0.0
  %820 = vmatprep.subr.mxu0 0.0
  %821 = vmatpush2.msra.mxu0 0.0
  %822 = vmatprep.subr.mxu0 0.0
  %823 = vmatpush2.msra.mxu0 0.0
  %824 = vmatprep.subr.mxu0 0.0
  %825 = vmatpush2.msra.mxu0 0.0
  %826 = vmatprep.subr.mxu0 0.0
  %827 = vmatpush2.msra.mxu0 0.0
  %828 = vmatprep.subr.mxu0 0.0
  %829 = vmatpush2.msra.mxu0 0.0
  %830 = vmatprep.subr.mxu0 0.0
  %831 = vmatpush2.msra.mxu0 0.0
  %832 = vmatprep.subr.mxu0 0.0
  %833 = vmatpush2.msra.mxu0 0.0
  %834 = vmatprep.subr.mxu0 0.0
  %835 = vmatpush2.msra.mxu0 0.0
  %836 = vmatprep.subr.mxu0 0.0
  %837 = vmatpush2.msra.mxu0 0.0
  %838 = vmatprep.subr.mxu0 0.0
  %839 = vmatpush2.msra.mxu0 0.0
  %840 = vmatprep.subr.mxu0 0.0
  %841 = vmatpush2.msra.mxu0 0.0
  %842 = vmatprep.subr.mxu0 0.0
  %843 = vmatpush2.msra.mxu0 0.0
  %844 = vmatprep.subr.mxu0 0.0
  %845 = vmatpush2.msra.mxu0 0.0
  %846 = vmatprep.subr.mxu0 0.0
  %847 = vmatpush2.msra.mxu0 0.0
  %848 = vmatprep.mubr.f32.mxu0 0.0
  %849 = vmatmul.mubr.f32.gmra.mxu0 %v782
  %v850 = vpop.f32.mrf.mxu0
  %v851 = vadd.f32 0.0, %v850
  %v852 = vpop.f32.mrf.mxu0
  %853 = vdwg.mxu0
  %v854 = vadd.f32 %v706, %v851
  %v855 = vxor.u32 %v779, 2147483648
  %v856 = vmul.f32 %v855, 1.442695
  %v857 = vpow.pop %v856
  %v858 = vadd.f32 %v857, 1.0
  %v859 = vrcp.pop %v858
  %v860 = vmul.f32 1.0, %v859
  %v861 = vtanh.pop %v779
  %v862 = vmul.f32 %v860, %v664
  %864 = vrot.lane.b32.xlu0 %v861, 64
  %v865 = vpop.permute.xlu0 %864
  %v867 = vmul.f32 %v860, %v865
  %869 = vrot.lane.b32.xlu0 %v867, 32
  %v870 = vpop.permute.xlu0 %869
  %v872 = vadd.f32 %v862, %v870
  %v873 = vtanh.pop %v872
  %875 = vrot.lane.b32.xlu0 %v873, 64
  %v876 = vpop.permute.xlu0 %875
  %v878 = vmul.f32 %v860, %v876
  %v879 = vxor.u32 %v854, 2147483648
  %v880 = vmul.f32 %v879, 1.442695
  %v881 = vpow.pop %v880
  %v882 = vadd.f32 %v881, 1.0
  %v883 = vrcp.pop %v882
  %v884 = vmul.f32 1.0, %v883
  %v885 = vtanh.pop %v854
  %v886 = vmul.f32 %v884, %v688
  %888 = vrot.lane.b32.xlu0 %v885, 64
  %v889 = vpop.permute.xlu0 %888
  %v891 = vmul.f32 %v884, %v889
  %893 = vrot.lane.b32.xlu0 %v891, 32
  %v894 = vpop.permute.xlu0 %893
  %v896 = vadd.f32 %v886, %v894
  %v897 = vtanh.pop %v896
  %899 = vrot.lane.b32.xlu0 %v897, 64
  %v900 = vpop.permute.xlu0 %899
  %v902 = vmul.f32 %v884, %v900
  %904 = vrot.lane.b32.xlu0 %v878, 32
  %v905 = vpop.permute.xlu0 %904
  %907 = vst.msk [vmem:[#allocation3 + $0x18] sm:$0xff] %vm281, %v905
  %909 = vrot.lane.b32.xlu0 %v902, 64
  %v910 = vpop.permute.xlu0 %909
  %912 = vst.msk [vmem:[#allocation3 + $0x20] sm:$0xff] %vm287, %v910
  %v913 = vld [vmem:[#allocation2 + $0x40] sm:$0xff]
  %v914 = vld [vmem:[#allocation2 + $0x38] sm:$0xff]
  %v915 = vsel %vm281, %v905, 0
  %917 = vmatprep.subr.mxu0 0.0
  %918 = vmatpush1.msra.mxu0 0.0
  %919 = vmatprep.subr.mxu0 0.0
  %920 = vmatpush1.msra.mxu0 0.0
  %921 = vmatprep.subr.mxu0 0.0
  %922 = vmatpush1.msra.mxu0 0.0
  %923 = vmatprep.subr.mxu0 0.0
  %924 = vmatpush1.msra.mxu0 0.0
  %925 = vmatprep.subr.mxu0 0.0
  %926 = vmatpush1.msra.mxu0 0.0
  %927 = vmatprep.subr.mxu0 0.0
  %928 = vmatpush1.msra.mxu0 0.0
  %929 = vmatprep.subr.mxu0 0.0
  %930 = vmatpush1.msra.mxu0 0.0
  %931 = vmatprep.subr.mxu0 0.0
  %932 = vmatpush1.msra.mxu0 0.0
  %933 = vmatprep.subr.mxu0 0.0
  %934 = vmatpush1.msra.mxu0 0.0
  %935 = vmatprep.subr.mxu0 0.0
  %936 = vmatpush1.msra.mxu0 0.0
  %937 = vmatprep.subr.mxu0 0.0
  %938 = vmatpush1.msra.mxu0 0.0
  %939 = vmatprep.subr.mxu0 0.0
  %940 = vmatpush1.msra.mxu0 0.0
  %941 = vmatprep.subr.mxu0 0.0
  %942 = vmatpush1.msra.mxu0 %v222
  %943 = vmatprep.subr.mxu0 0.0
  %944 = vmatpush1.msra.mxu0 %v221
  %945 = vmatprep.subr.mxu0 0.0
  %946 = vmatpush1.msra.mxu0 %v220
  %947 = vmatprep.subr.mxu0 0.0
  %948 = vmatpush1.msra.mxu0 %v219
  %949 = vmatprep.subr.mxu0 0.0
  %950 = vmatpush2.msra.mxu0 0.0
  %951 = vmatprep.subr.mxu0 0.0
  %952 = vmatpush2.msra.mxu0 0.0
  %953 = vmatprep.subr.mxu0 0.0
  %954 = vmatpush2.msra.mxu0 0.0
  %955 = vmatprep.subr.mxu0 0.0
  %956 = vmatpush2.msra.mxu0 0.0
  %957 = vmatprep.subr.mxu0 0.0
  %958 = vmatpush2.msra.mxu0 0.0
  %959 = vmatprep.subr.mxu0 0.0
  %960 = vmatpush2.msra.mxu0 0.0
  %961 = vmatprep.subr.mxu0 0.0
  %962 = vmatpush2.msra.mxu0 0.0
  %963 = vmatprep.subr.mxu0 0.0
  %964 = vmatpush2.msra.mxu0 0.0
  %965 = vmatprep.subr.mxu0 0.0
  %966 = vmatpush2.msra.mxu0 0.0
  %967 = vmatprep.subr.mxu0 0.0
  %968 = vmatpush2.msra.mxu0 0.0
  %969 = vmatprep.subr.mxu0 0.0
  %970 = vmatpush2.msra.mxu0 0.0
  %971 = vmatprep.subr.mxu0 0.0
  %972 = vmatpush2.msra.mxu0 0.0
  %973 = vmatprep.subr.mxu0 0.0
  %974 = vmatpush2.msra.mxu0 0.0
  %975 = vmatprep.subr.mxu0 0.0
  %976 = vmatpush2.msra.mxu0 0.0
  %977 = vmatprep.subr.mxu0 0.0
  %978 = vmatpush2.msra.mxu0 0.0
  %979 = vmatprep.subr.mxu0 0.0
  %980 = vmatpush2.msra.mxu0 0.0
  %981 = vmatprep.mubr.f32.mxu0 0.0
  %982 = vmatmul.mubr.f32.gmra.mxu0 %v915
  %v983 = vpop.f32.mrf.mxu0
  %v984 = vadd.f32 0.0, %v983
  %v985 = vpop.f32.mrf.mxu0
  %986 = vdwg.mxu0
  %v987 = vadd.f32 %v913, %v984
  %988 = vrot.lane.b32.xlu0 %v902, 32
  %v989 = vpop.permute.xlu0 %988
  %v990 = vsel %vm281, %v989, 0
  %992 = vmatprep.subr.mxu0 0.0
  %993 = vmatpush1.msra.mxu0 0.0
  %994 = vmatprep.subr.mxu0 0.0
  %995 = vmatpush1.msra.mxu0 0.0
  %996 = vmatprep.subr.mxu0 0.0
  %997 = vmatpush1.msra.mxu0 0.0
  %998 = vmatprep.subr.mxu0 0.0
  %999 = vmatpush1.msra.mxu0 0.0
  %1000 = vmatprep.subr.mxu0 0.0
  %1001 = vmatpush1.msra.mxu0 0.0
  %1002 = vmatprep.subr.mxu0 0.0
  %1003 = vmatpush1.msra.mxu0 0.0
  %1004 = vmatprep.subr.mxu0 0.0
  %1005 = vmatpush1.msra.mxu0 0.0
  %1006 = vmatprep.subr.mxu0 0.0
  %1007 = vmatpush1.msra.mxu0 0.0
  %1008 = vmatprep.subr.mxu0 0.0
  %1009 = vmatpush1.msra.mxu0 0.0
  %1010 = vmatprep.subr.mxu0 0.0
  %1011 = vmatpush1.msra.mxu0 0.0
  %1012 = vmatprep.subr.mxu0 0.0
  %1013 = vmatpush1.msra.mxu0 0.0
  %1014 = vmatprep.subr.mxu0 0.0
  %1015 = vmatpush1.msra.mxu0 0.0
  %1016 = vmatprep.subr.mxu0 0.0
  %1017 = vmatpush1.msra.mxu0 %v226
  %1018 = vmatprep.subr.mxu0 0.0
  %1019 = vmatpush1.msra.mxu0 %v225
  %1020 = vmatprep.subr.mxu0 0.0
  %1021 = vmatpush1.msra.mxu0 %v224
  %1022 = vmatprep.subr.mxu0 0.0
  %1023 = vmatpush1.msra.mxu0 %v223
  %1024 = vmatprep.subr.mxu0 0.0
  %1025 = vmatpush2.msra.mxu0 0.0
  %1026 = vmatprep.subr.mxu0 0.0
  %1027 = vmatpush2.msra.mxu0 0.0
  %1028 = vmatprep.subr.mxu0 0.0
  %1029 = vmatpush2.msra.mxu0 0.0
  %1030 = vmatprep.subr.mxu0 0.0
  %1031 = vmatpush2.msra.mxu0 0.0
  %1032 = vmatprep.subr.mxu0 0.0
  %1033 = vmatpush2.msra.mxu0 0.0
  %1034 = vmatprep.subr.mxu0 0.0
  %1035 = vmatpush2.msra.mxu0 0.0
  %1036 = vmatprep.subr.mxu0 0.0
  %1037 = vmatpush2.msra.mxu0 0.0
  %1038 = vmatprep.subr.mxu0 0.0
  %1039 = vmatpush2.msra.mxu0 0.0
  %1040 = vmatprep.subr.mxu0 0.0
  %1041 = vmatpush2.msra.mxu0 0.0
  %1042 = vmatprep.subr.mxu0 0.0
  %1043 = vmatpush2.msra.mxu0 0.0
  %1044 = vmatprep.subr.mxu0 0.0
  %1045 = vmatpush2.msra.mxu0 0.0
  %1046 = vmatprep.subr.mxu0 0.0
  %1047 = vmatpush2.msra.mxu0 0.0
  %1048 = vmatprep.subr.mxu0 0.0
  %1049 = vmatpush2.msra.mxu0 0.0
  %1050 = vmatprep.subr.mxu0 0.0
  %1051 = vmatpush2.msra.mxu0 0.0
  %1052 = vmatprep.subr.mxu0 0.0
  %1053 = vmatpush2.msra.mxu0 0.0
  %1054 = vmatprep.subr.mxu0 0.0
  %1055 = vmatpush2.msra.mxu0 0.0
  %1056 = vmatprep.mubr.f32.mxu0 0.0
  %1057 = vmatmul.mubr.f32.gmra.mxu0 %v990
  %v1058 = vpop.f32.mrf.mxu0
  %v1059 = vadd.f32 0.0, %v1058
  %v1060 = vpop.f32.mrf.mxu0
  %1061 = vdwg.mxu0
  %v1062 = vadd.f32 %v914, %v1059
  %v1063 = vxor.u32 %v987, 2147483648
  %v1064 = vmul.f32 %v1063, 1.442695
  %v1065 = vpow.pop %v1064
  %v1066 = vadd.f32 %v1065, 1.0
  %v1067 = vrcp.pop %v1066
  %v1068 = vmul.f32 1.0, %v1067
  %v1069 = vtanh.pop %v987
  %v1070 = vmul.f32 %v1068, %v872
  %1072 = vrot.lane.b32.xlu0 %v1069, 64
  %v1073 = vpop.permute.xlu0 %1072
  %v1075 = vmul.f32 %v1068, %v1073
  %1077 = vrot.lane.b32.xlu0 %v1075, 32
  %v1078 = vpop.permute.xlu0 %1077
  %v1080 = vadd.f32 %v1070, %v1078
  %v1081 = vtanh.pop %v1080
  %1083 = vrot.lane.b32.xlu0 %v1081, 64
  %v1084 = vpop.permute.xlu0 %1083
  %v1086 = vmul.f32 %v1068, %v1084
  %v1087 = vxor.u32 %v1062, 2147483648
  %v1088 = vmul.f32 %v1087, 1.442695
  %v1089 = vpow.pop %v1088
  %v1090 = vadd.f32 %v1089, 1.0
  %v1091 = vrcp.pop %v1090
  %v1092 = vmul.f32 1.0, %v1091
  %v1093 = vtanh.pop %v1062
  %v1094 = vmul.f32 %v1092, %v896
  %1096 = vrot.lane.b32.xlu0 %v1093, 64
  %v1097 = vpop.permute.xlu0 %1096
  %v1099 = vmul.f32 %v1092, %v1097
  %1101 = vrot.lane.b32.xlu0 %v1099, 32
  %v1102 = vpop.permute.xlu0 %1101
  %v1104 = vadd.f32 %v1094, %v1102
  %v1105 = vtanh.pop %v1104
  %1107 = vrot.lane.b32.xlu0 %v1105, 64
  %v1108 = vpop.permute.xlu0 %1107
  %v1110 = vmul.f32 %v1092, %v1108
  %1112 = vrot.lane.b32.xlu0 %v1086, 32
  %v1113 = vpop.permute.xlu0 %1112
  %1115 = vst.msk [vmem:[#allocation3 + $0x20] sm:$0xff] %vm281, %v1113
  %1117 = vrot.lane.b32.xlu0 %v1110, 64
  %v1118 = vpop.permute.xlu0 %1117
  %1120 = vst.msk [vmem:[#allocation3 + $0x18] sm:$0xff] %vm287, %v1118
  %v1121 = vld [vmem:[#allocation2 + $0x50] sm:$0xff]
  %v1122 = vld [vmem:[#allocation2 + $0x28] sm:$0xff]
  %v1123 = vsel %vm281, %v1113, 0
  %1125 = vmatprep.subr.mxu0 0.0
  %1126 = vmatpush1.msra.mxu0 0.0
  %1127 = vmatprep.subr.mxu0 0.0
  %1128 = vmatpush1.msra.mxu0 0.0
  %1129 = vmatprep.subr.mxu0 0.0
  %1130 = vmatpush1.msra.mxu0 0.0
  %1131 = vmatprep.subr.mxu0 0.0
  %1132 = vmatpush1.msra.mxu0 0.0
  %1133 = vmatprep.subr.mxu0 0.0
  %1134 = vmatpush1.msra.mxu0 0.0
  %1135 = vmatprep.subr.mxu0 0.0
  %1136 = vmatpush1.msra.mxu0 0.0
  %1137 = vmatprep.subr.mxu0 0.0
  %1138 = vmatpush1.msra.mxu0 0.0
  %1139 = vmatprep.subr.mxu0 0.0
  %1140 = vmatpush1.msra.mxu0 0.0
  %1141 = vmatprep.subr.mxu0 0.0
  %1142 = vmatpush1.msra.mxu0 0.0
  %1143 = vmatprep.subr.mxu0 0.0
  %1144 = vmatpush1.msra.mxu0 0.0
  %1145 = vmatprep.subr.mxu0 0.0
  %1146 = vmatpush1.msra.mxu0 0.0
  %1147 = vmatprep.subr.mxu0 0.0
  %1148 = vmatpush1.msra.mxu0 0.0
  %1149 = vmatprep.subr.mxu0 0.0
  %1150 = vmatpush1.msra.mxu0 %v222
  %1151 = vmatprep.subr.mxu0 0.0
  %1152 = vmatpush1.msra.mxu0 %v221
  %1153 = vmatprep.subr.mxu0 0.0
  %1154 = vmatpush1.msra.mxu0 %v220
  %1155 = vmatprep.subr.mxu0 0.0
  %1156 = vmatpush1.msra.mxu0 %v219
  %1157 = vmatprep.subr.mxu0 0.0
  %1158 = vmatpush2.msra.mxu0 0.0
  %1159 = vmatprep.subr.mxu0 0.0
  %1160 = vmatpush2.msra.mxu0 0.0
  %1161 = vmatprep.subr.mxu0 0.0
  %1162 = vmatpush2.msra.mxu0 0.0
  %1163 = vmatprep.subr.mxu0 0.0
  %1164 = vmatpush2.msra.mxu0 0.0
  %1165 = vmatprep.subr.mxu0 0.0
  %1166 = vmatpush2.msra.mxu0 0.0
  %1167 = vmatprep.subr.mxu0 0.0
  %1168 = vmatpush2.msra.mxu0 0.0
  %1169 = vmatprep.subr.mxu0 0.0
  %1170 = vmatpush2.msra.mxu0 0.0
  %1171 = vmatprep.subr.mxu0 0.0
  %1172 = vmatpush2.msra.mxu0 0.0
  %1173 = vmatprep.subr.mxu0 0.0
  %1174 = vmatpush2.msra.mxu0 0.0
  %1175 = vmatprep.subr.mxu0 0.0
  %1176 = vmatpush2.msra.mxu0 0.0
  %1177 = vmatprep.subr.mxu0 0.0
  %1178 = vmatpush2.msra.mxu0 0.0
  %1179 = vmatprep.subr.mxu0 0.0
  %1180 = vmatpush2.msra.mxu0 0.0
  %1181 = vmatprep.subr.mxu0 0.0
  %1182 = vmatpush2.msra.mxu0 0.0
  %1183 = vmatprep.subr.mxu0 0.0
  %1184 = vmatpush2.msra.mxu0 0.0
  %1185 = vmatprep.subr.mxu0 0.0
  %1186 = vmatpush2.msra.mxu0 0.0
  %1187 = vmatprep.subr.mxu0 0.0
  %1188 = vmatpush2.msra.mxu0 0.0
  %1189 = vmatprep.mubr.f32.mxu0 0.0
  %1190 = vmatmul.mubr.f32.gmra.mxu0 %v1123
  %v1191 = vpop.f32.mrf.mxu0
  %v1192 = vadd.f32 0.0, %v1191
  %v1193 = vpop.f32.mrf.mxu0
  %1194 = vdwg.mxu0
  %v1195 = vadd.f32 %v1121, %v1192
  %1196 = vrot.lane.b32.xlu0 %v1110, 32
  %v1197 = vpop.permute.xlu0 %1196
  %v1198 = vsel %vm281, %v1197, 0
  %1200 = vmatprep.subr.mxu0 0.0
  %1201 = vmatpush1.msra.mxu0 0.0
  %1202 = vmatprep.subr.mxu0 0.0
  %1203 = vmatpush1.msra.mxu0 0.0
  %1204 = vmatprep.subr.mxu0 0.0
  %1205 = vmatpush1.msra.mxu0 0.0
  %1206 = vmatprep.subr.mxu0 0.0
  %1207 = vmatpush1.msra.mxu0 0.0
  %1208 = vmatprep.subr.mxu0 0.0
  %1209 = vmatpush1.msra.mxu0 0.0
  %1210 = vmatprep.subr.mxu0 0.0
  %1211 = vmatpush1.msra.mxu0 0.0
  %1212 = vmatprep.subr.mxu0 0.0
  %1213 = vmatpush1.msra.mxu0 0.0
  %1214 = vmatprep.subr.mxu0 0.0
  %1215 = vmatpush1.msra.mxu0 0.0
  %1216 = vmatprep.subr.mxu0 0.0
  %1217 = vmatpush1.msra.mxu0 0.0
  %1218 = vmatprep.subr.mxu0 0.0
  %1219 = vmatpush1.msra.mxu0 0.0
  %1220 = vmatprep.subr.mxu0 0.0
  %1221 = vmatpush1.msra.mxu0 0.0
  %1222 = vmatprep.subr.mxu0 0.0
  %1223 = vmatpush1.msra.mxu0 0.0
  %1224 = vmatprep.subr.mxu0 0.0
  %1225 = vmatpush1.msra.mxu0 %v226
  %1226 = vmatprep.subr.mxu0 0.0
  %1227 = vmatpush1.msra.mxu0 %v225
  %1228 = vmatprep.subr.mxu0 0.0
  %1229 = vmatpush1.msra.mxu0 %v224
  %1230 = vmatprep.subr.mxu0 0.0
  %1231 = vmatpush1.msra.mxu0 %v223
  %1232 = vmatprep.subr.mxu0 0.0
  %1233 = vmatpush2.msra.mxu0 0.0
  %1234 = vmatprep.subr.mxu0 0.0
  %1235 = vmatpush2.msra.mxu0 0.0
  %1236 = vmatprep.subr.mxu0 0.0
  %1237 = vmatpush2.msra.mxu0 0.0
  %1238 = vmatprep.subr.mxu0 0.0
  %1239 = vmatpush2.msra.mxu0 0.0
  %1240 = vmatprep.subr.mxu0 0.0
  %1241 = vmatpush2.msra.mxu0 0.0
  %1242 = vmatprep.subr.mxu0 0.0
  %1243 = vmatpush2.msra.mxu0 0.0
  %1244 = vmatprep.subr.mxu0 0.0
  %1245 = vmatpush2.msra.mxu0 0.0
  %1246 = vmatprep.subr.mxu0 0.0
  %1247 = vmatpush2.msra.mxu0 0.0
  %1248 = vmatprep.subr.mxu0 0.0
  %1249 = vmatpush2.msra.mxu0 0.0
  %1250 = vmatprep.subr.mxu0 0.0
  %1251 = vmatpush2.msra.mxu0 0.0
  %1252 = vmatprep.subr.mxu0 0.0
  %1253 = vmatpush2.msra.mxu0 0.0
  %1254 = vmatprep.subr.mxu0 0.0
  %1255 = vmatpush2.msra.mxu0 0.0
  %1256 = vmatprep.subr.mxu0 0.0
  %1257 = vmatpush2.msra.mxu0 0.0
  %1258 = vmatprep.subr.mxu0 0.0
  %1259 = vmatpush2.msra.mxu0 0.0
  %1260 = vmatprep.subr.mxu0 0.0
  %1261 = vmatpush2.msra.mxu0 0.0
  %1262 = vmatprep.subr.mxu0 0.0
  %1263 = vmatpush2.msra.mxu0 0.0
  %1264 = vmatprep.mubr.f32.mxu0 0.0
  %1265 = vmatmul.mubr.f32.gmra.mxu0 %v1198
  %v1266 = vpop.f32.mrf.mxu0
  %v1267 = vadd.f32 0.0, %v1266
  %v1268 = vpop.f32.mrf.mxu0
  %1269 = vdwg.mxu0
  %v1270 = vadd.f32 %v1122, %v1267
  %v1271 = vxor.u32 %v1195, 2147483648
  %v1272 = vmul.f32 %v1271, 1.442695
  %v1273 = vpow.pop %v1272
  %v1274 = vadd.f32 %v1273, 1.0
  %v1275 = vrcp.pop %v1274
  %v1276 = vmul.f32 1.0, %v1275
  %v1277 = vtanh.pop %v1195
  %v1278 = vmul.f32 %v1276, %v1080
  %1280 = vrot.lane.b32.xlu0 %v1277, 64
  %v1281 = vpop.permute.xlu0 %1280
  %v1283 = vmul.f32 %v1276, %v1281
  %1285 = vrot.lane.b32.xlu0 %v1283, 32
  %v1286 = vpop.permute.xlu0 %1285
  %v1288 = vadd.f32 %v1278, %v1286
  %v1289 = vtanh.pop %v1288
  %1291 = vrot.lane.b32.xlu0 %v1289, 64
  %v1292 = vpop.permute.xlu0 %1291
  %v1294 = vmul.f32 %v1276, %v1292
  %v1295 = vxor.u32 %v1270, 2147483648
  %v1296 = vmul.f32 %v1295, 1.442695
  %v1297 = vpow.pop %v1296
  %v1298 = vadd.f32 %v1297, 1.0
  %v1299 = vrcp.pop %v1298
  %v1300 = vmul.f32 1.0, %v1299
  %v1301 = vtanh.pop %v1270
  %v1302 = vmul.f32 %v1300, %v1104
  %1304 = vrot.lane.b32.xlu0 %v1301, 64
  %v1305 = vpop.permute.xlu0 %1304
  %v1307 = vmul.f32 %v1300, %v1305
  %1309 = vrot.lane.b32.xlu0 %v1307, 32
  %v1310 = vpop.permute.xlu0 %1309
  %v1312 = vadd.f32 %v1302, %v1310
  %v1313 = vtanh.pop %v1312
  %1315 = vrot.lane.b32.xlu0 %v1313, 64
  %v1316 = vpop.permute.xlu0 %1315
  %v1318 = vmul.f32 %v1300, %v1316
  %1320 = vrot.lane.b32.xlu0 %v1294, 32
  %v1321 = vpop.permute.xlu0 %1320
  %1323 = vst.msk [vmem:[#allocation3 + $0x28] sm:$0xff] %vm281, %v1321
  %1325 = vrot.lane.b32.xlu0 %v1318, 64
  %v1326 = vpop.permute.xlu0 %1325
  %1328 = vst.msk [vmem:[#allocation3 + $0x10] sm:$0xff] %vm287, %v1326
  %v1329 = vld [vmem:[#allocation2 + $0x60] sm:$0xff]
  %v1330 = vld [vmem:[#allocation2 + $0x18] sm:$0xff]
  %v1331 = vsel %vm281, %v1321, 0
  %1333 = vmatprep.subr.mxu0 0.0
  %1334 = vmatpush1.msra.mxu0 0.0
  %1335 = vmatprep.subr.mxu0 0.0
  %1336 = vmatpush1.msra.mxu0 0.0
  %1337 = vmatprep.subr.mxu0 0.0
  %1338 = vmatpush1.msra.mxu0 0.0
  %1339 = vmatprep.subr.mxu0 0.0
  %1340 = vmatpush1.msra.mxu0 0.0
  %1341 = vmatprep.subr.mxu0 0.0
  %1342 = vmatpush1.msra.mxu0 0.0
  %1343 = vmatprep.subr.mxu0 0.0
  %1344 = vmatpush1.msra.mxu0 0.0
  %1345 = vmatprep.subr.mxu0 0.0
  %1346 = vmatpush1.msra.mxu0 0.0
  %1347 = vmatprep.subr.mxu0 0.0
  %1348 = vmatpush1.msra.mxu0 0.0
  %1349 = vmatprep.subr.mxu0 0.0
  %1350 = vmatpush1.msra.mxu0 0.0
  %1351 = vmatprep.subr.mxu0 0.0
  %1352 = vmatpush1.msra.mxu0 0.0
  %1353 = vmatprep.subr.mxu0 0.0
  %1354 = vmatpush1.msra.mxu0 0.0
  %1355 = vmatprep.subr.mxu0 0.0
  %1356 = vmatpush1.msra.mxu0 0.0
  %1357 = vmatprep.subr.mxu0 0.0
  %1358 = vmatpush1.msra.mxu0 %v222
  %1359 = vmatprep.subr.mxu0 0.0
  %1360 = vmatpush1.msra.mxu0 %v221
  %1361 = vmatprep.subr.mxu0 0.0
  %1362 = vmatpush1.msra.mxu0 %v220
  %1363 = vmatprep.subr.mxu0 0.0
  %1364 = vmatpush1.msra.mxu0 %v219
  %1365 = vmatprep.subr.mxu0 0.0
  %1366 = vmatpush2.msra.mxu0 0.0
  %1367 = vmatprep.subr.mxu0 0.0
  %1368 = vmatpush2.msra.mxu0 0.0
  %1369 = vmatprep.subr.mxu0 0.0
  %1370 = vmatpush2.msra.mxu0 0.0
  %1371 = vmatprep.subr.mxu0 0.0
  %1372 = vmatpush2.msra.mxu0 0.0
  %1373 = vmatprep.subr.mxu0 0.0
  %1374 = vmatpush2.msra.mxu0 0.0
  %1375 = vmatprep.subr.mxu0 0.0
  %1376 = vmatpush2.msra.mxu0 0.0
  %1377 = vmatprep.subr.mxu0 0.0
  %1378 = vmatpush2.msra.mxu0 0.0
  %1379 = vmatprep.subr.mxu0 0.0
  %1380 = vmatpush2.msra.mxu0 0.0
  %1381 = vmatprep.subr.mxu0 0.0
  %1382 = vmatpush2.msra.mxu0 0.0
  %1383 = vmatprep.subr.mxu0 0.0
  %1384 = vmatpush2.msra.mxu0 0.0
  %1385 = vmatprep.subr.mxu0 0.0
  %1386 = vmatpush2.msra.mxu0 0.0
  %1387 = vmatprep.subr.mxu0 0.0
  %1388 = vmatpush2.msra.mxu0 0.0
  %1389 = vmatprep.subr.mxu0 0.0
  %1390 = vmatpush2.msra.mxu0 0.0
  %1391 = vmatprep.subr.mxu0 0.0
  %1392 = vmatpush2.msra.mxu0 0.0
  %1393 = vmatprep.subr.mxu0 0.0
  %1394 = vmatpush2.msra.mxu0 0.0
  %1395 = vmatprep.subr.mxu0 0.0
  %1396 = vmatpush2.msra.mxu0 0.0
  %1397 = vmatprep.mubr.f32.mxu0 0.0
  %1398 = vmatmul.mubr.f32.gmra.mxu0 %v1331
  %v1399 = vpop.f32.mrf.mxu0
  %v1400 = vadd.f32 0.0, %v1399
  %v1401 = vpop.f32.mrf.mxu0
  %1402 = vdwg.mxu0
  %v1403 = vadd.f32 %v1329, %v1400
  %1404 = vrot.lane.b32.xlu0 %v1318, 32
  %v1405 = vpop.permute.xlu0 %1404
  %v1406 = vsel %vm281, %v1405, 0
  %1408 = vmatprep.subr.mxu0 0.0
  %1409 = vmatpush1.msra.mxu0 0.0
  %1410 = vmatprep.subr.mxu0 0.0
  %1411 = vmatpush1.msra.mxu0 0.0
  %1412 = vmatprep.subr.mxu0 0.0
  %1413 = vmatpush1.msra.mxu0 0.0
  %1414 = vmatprep.subr.mxu0 0.0
  %1415 = vmatpush1.msra.mxu0 0.0
  %1416 = vmatprep.subr.mxu0 0.0
  %1417 = vmatpush1.msra.mxu0 0.0
  %1418 = vmatprep.subr.mxu0 0.0
  %1419 = vmatpush1.msra.mxu0 0.0
  %1420 = vmatprep.subr.mxu0 0.0
  %1421 = vmatpush1.msra.mxu0 0.0
  %1422 = vmatprep.subr.mxu0 0.0
  %1423 = vmatpush1.msra.mxu0 0.0
  %1424 = vmatprep.subr.mxu0 0.0
  %1425 = vmatpush1.msra.mxu0 0.0
  %1426 = vmatprep.subr.mxu0 0.0
  %1427 = vmatpush1.msra.mxu0 0.0
  %1428 = vmatprep.subr.mxu0 0.0
  %1429 = vmatpush1.msra.mxu0 0.0
  %1430 = vmatprep.subr.mxu0 0.0
  %1431 = vmatpush1.msra.mxu0 0.0
  %1432 = vmatprep.subr.mxu0 0.0
  %1433 = vmatpush1.msra.mxu0 %v226
  %1434 = vmatprep.subr.mxu0 0.0
  %1435 = vmatpush1.msra.mxu0 %v225
  %1436 = vmatprep.subr.mxu0 0.0
  %1437 = vmatpush1.msra.mxu0 %v224
  %1438 = vmatprep.subr.mxu0 0.0
  %1439 = vmatpush1.msra.mxu0 %v223
  %1440 = vmatprep.subr.mxu0 0.0
  %1441 = vmatpush2.msra.mxu0 0.0
  %1442 = vmatprep.subr.mxu0 0.0
  %1443 = vmatpush2.msra.mxu0 0.0
  %1444 = vmatprep.subr.mxu0 0.0
  %1445 = vmatpush2.msra.mxu0 0.0
  %1446 = vmatprep.subr.mxu0 0.0
  %1447 = vmatpush2.msra.mxu0 0.0
  %1448 = vmatprep.subr.mxu0 0.0
  %1449 = vmatpush2.msra.mxu0 0.0
  %1450 = vmatprep.subr.mxu0 0.0
  %1451 = vmatpush2.msra.mxu0 0.0
  %1452 = vmatprep.subr.mxu0 0.0
  %1453 = vmatpush2.msra.mxu0 0.0
  %1454 = vmatprep.subr.mxu0 0.0
  %1455 = vmatpush2.msra.mxu0 0.0
  %1456 = vmatprep.subr.mxu0 0.0
  %1457 = vmatpush2.msra.mxu0 0.0
  %1458 = vmatprep.subr.mxu0 0.0
  %1459 = vmatpush2.msra.mxu0 0.0
  %1460 = vmatprep.subr.mxu0 0.0
  %1461 = vmatpush2.msra.mxu0 0.0
  %1462 = vmatprep.subr.mxu0 0.0
  %1463 = vmatpush2.msra.mxu0 0.0
  %1464 = vmatprep.subr.mxu0 0.0
  %1465 = vmatpush2.msra.mxu0 0.0
  %1466 = vmatprep.subr.mxu0 0.0
  %1467 = vmatpush2.msra.mxu0 0.0
  %1468 = vmatprep.subr.mxu0 0.0
  %1469 = vmatpush2.msra.mxu0 0.0
  %1470 = vmatprep.subr.mxu0 0.0
  %1471 = vmatpush2.msra.mxu0 0.0
  %1472 = vmatprep.mubr.f32.mxu0 0.0
  %1473 = vmatmul.mubr.f32.gmra.mxu0 %v1406
  %v1474 = vpop.f32.mrf.mxu0
  %v1475 = vadd.f32 0.0, %v1474
  %v1476 = vpop.f32.mrf.mxu0
  %1477 = vdwg.mxu0
  %v1478 = vadd.f32 %v1330, %v1475
  %v1479 = vxor.u32 %v1403, 2147483648
  %v1480 = vmul.f32 %v1479, 1.442695
  %v1481 = vpow.pop %v1480
  %v1482 = vadd.f32 %v1481, 1.0
  %v1483 = vrcp.pop %v1482
  %v1484 = vmul.f32 1.0, %v1483
  %v1485 = vtanh.pop %v1403
  %v1486 = vmul.f32 %v1484, %v1288
  %1488 = vrot.lane.b32.xlu0 %v1485, 64
  %v1489 = vpop.permute.xlu0 %1488
  %v1491 = vmul.f32 %v1484, %v1489
  %1493 = vrot.lane.b32.xlu0 %v1491, 32
  %v1494 = vpop.permute.xlu0 %1493
  %v1496 = vadd.f32 %v1486, %v1494
  %v1497 = vtanh.pop %v1496
  %1499 = vrot.lane.b32.xlu0 %v1497, 64
  %v1500 = vpop.permute.xlu0 %1499
  %v1502 = vmul.f32 %v1484, %v1500
  %v1503 = vxor.u32 %v1478, 2147483648
  %v1504 = vmul.f32 %v1503, 1.442695
  %v1505 = vpow.pop %v1504
  %v1506 = vadd.f32 %v1505, 1.0
  %v1507 = vrcp.pop %v1506
  %v1508 = vmul.f32 1.0, %v1507
  %v1509 = vtanh.pop %v1478
  %v1510 = vmul.f32 %v1508, %v1312
  %1512 = vrot.lane.b32.xlu0 %v1509, 64
  %v1513 = vpop.permute.xlu0 %1512
  %v1515 = vmul.f32 %v1508, %v1513
  %1517 = vrot.lane.b32.xlu0 %v1515, 32
  %v1518 = vpop.permute.xlu0 %1517
  %v1520 = vadd.f32 %v1510, %v1518
  %v1521 = vtanh.pop %v1520
  %1523 = vrot.lane.b32.xlu0 %v1521, 64
  %v1524 = vpop.permute.xlu0 %1523
  %v1526 = vmul.f32 %v1508, %v1524
  %1528 = vrot.lane.b32.xlu0 %v1502, 32
  %v1529 = vpop.permute.xlu0 %1528
  %1531 = vst.msk [vmem:[#allocation3 + $0x30] sm:$0xff] %vm281, %v1529
  %1533 = vrot.lane.b32.xlu0 %v1526, 64
  %v1534 = vpop.permute.xlu0 %1533
  %1536 = vst.msk [vmem:[#allocation3 + $0x8] sm:$0xff] %vm287, %v1534
  %v1537 = vld [vmem:[#allocation2 + $0x70] sm:$0xff]
  %v1538 = vld [vmem:[#allocation2 + $0x8] sm:$0xff]
  %v1539 = vsel %vm281, %v1529, 0
  %1541 = vmatprep.subr.mxu0 0.0
  %1542 = vmatpush1.msra.mxu0 0.0
  %1543 = vmatprep.subr.mxu0 0.0
  %1544 = vmatpush1.msra.mxu0 0.0
  %1545 = vmatprep.subr.mxu0 0.0
  %1546 = vmatpush1.msra.mxu0 0.0
  %1547 = vmatprep.subr.mxu0 0.0
  %1548 = vmatpush1.msra.mxu0 0.0
  %1549 = vmatprep.subr.mxu0 0.0
  %1550 = vmatpush1.msra.mxu0 0.0
  %1551 = vmatprep.subr.mxu0 0.0
  %1552 = vmatpush1.msra.mxu0 0.0
  %1553 = vmatprep.subr.mxu0 0.0
  %1554 = vmatpush1.msra.mxu0 0.0
  %1555 = vmatprep.subr.mxu0 0.0
  %1556 = vmatpush1.msra.mxu0 0.0
  %1557 = vmatprep.subr.mxu0 0.0
  %1558 = vmatpush1.msra.mxu0 0.0
  %1559 = vmatprep.subr.mxu0 0.0
  %1560 = vmatpush1.msra.mxu0 0.0
  %1561 = vmatprep.subr.mxu0 0.0
  %1562 = vmatpush1.msra.mxu0 0.0
  %1563 = vmatprep.subr.mxu0 0.0
  %1564 = vmatpush1.msra.mxu0 0.0
  %1565 = vmatprep.subr.mxu0 0.0
  %1566 = vmatpush1.msra.mxu0 %v222
  %1567 = vmatprep.subr.mxu0 0.0
  %1568 = vmatpush1.msra.mxu0 %v221
  %1569 = vmatprep.subr.mxu0 0.0
  %1570 = vmatpush1.msra.mxu0 %v220
  %1571 = vmatprep.subr.mxu0 0.0
  %1572 = vmatpush1.msra.mxu0 %v219
  %1573 = vmatprep.subr.mxu0 0.0
  %1574 = vmatpush2.msra.mxu0 0.0
  %1575 = vmatprep.subr.mxu0 0.0
  %1576 = vmatpush2.msra.mxu0 0.0
  %1577 = vmatprep.subr.mxu0 0.0
  %1578 = vmatpush2.msra.mxu0 0.0
  %1579 = vmatprep.subr.mxu0 0.0
  %1580 = vmatpush2.msra.mxu0 0.0
  %1581 = vmatprep.subr.mxu0 0.0
  %1582 = vmatpush2.msra.mxu0 0.0
  %1583 = vmatprep.subr.mxu0 0.0
  %1584 = vmatpush2.msra.mxu0 0.0
  %1585 = vmatprep.subr.mxu0 0.0
  %1586 = vmatpush2.msra.mxu0 0.0
  %1587 = vmatprep.subr.mxu0 0.0
  %1588 = vmatpush2.msra.mxu0 0.0
  %1589 = vmatprep.subr.mxu0 0.0
  %1590 = vmatpush2.msra.mxu0 0.0
  %1591 = vmatprep.subr.mxu0 0.0
  %1592 = vmatpush2.msra.mxu0 0.0
  %1593 = vmatprep.subr.mxu0 0.0
  %1594 = vmatpush2.msra.mxu0 0.0
  %1595 = vmatprep.subr.mxu0 0.0
  %1596 = vmatpush2.msra.mxu0 0.0
  %1597 = vmatprep.subr.mxu0 0.0
  %1598 = vmatpush2.msra.mxu0 0.0
  %1599 = vmatprep.subr.mxu0 0.0
  %1600 = vmatpush2.msra.mxu0 0.0
  %1601 = vmatprep.subr.mxu0 0.0
  %1602 = vmatpush2.msra.mxu0 0.0
  %1603 = vmatprep.subr.mxu0 0.0
  %1604 = vmatpush2.msra.mxu0 0.0
  %1605 = vmatprep.mubr.f32.mxu0 0.0
  %1606 = vmatmul.mubr.f32.gmra.mxu0 %v1539
  %v1607 = vpop.f32.mrf.mxu0
  %v1608 = vadd.f32 0.0, %v1607
  %v1609 = vpop.f32.mrf.mxu0
  %1610 = vdwg.mxu0
  %v1611 = vadd.f32 %v1537, %v1608
  %1612 = vrot.lane.b32.xlu0 %v1526, 32
  %v1613 = vpop.permute.xlu0 %1612
  %v1614 = vsel %vm281, %v1613, 0
  %1616 = vmatprep.subr.mxu0 0.0
  %1617 = vmatpush1.msra.mxu0 0.0
  %1618 = vmatprep.subr.mxu0 0.0
  %1619 = vmatpush1.msra.mxu0 0.0
  %1620 = vmatprep.subr.mxu0 0.0
  %1621 = vmatpush1.msra.mxu0 0.0
  %1622 = vmatprep.subr.mxu0 0.0
  %1623 = vmatpush1.msra.mxu0 0.0
  %1624 = vmatprep.subr.mxu0 0.0
  %1625 = vmatpush1.msra.mxu0 0.0
  %1626 = vmatprep.subr.mxu0 0.0
  %1627 = vmatpush1.msra.mxu0 0.0
  %1628 = vmatprep.subr.mxu0 0.0
  %1629 = vmatpush1.msra.mxu0 0.0
  %1630 = vmatprep.subr.mxu0 0.0
  %1631 = vmatpush1.msra.mxu0 0.0
  %1632 = vmatprep.subr.mxu0 0.0
  %1633 = vmatpush1.msra.mxu0 0.0
  %1634 = vmatprep.subr.mxu0 0.0
  %1635 = vmatpush1.msra.mxu0 0.0
  %1636 = vmatprep.subr.mxu0 0.0
  %1637 = vmatpush1.msra.mxu0 0.0
  %1638 = vmatprep.subr.mxu0 0.0
  %1639 = vmatpush1.msra.mxu0 0.0
  %1640 = vmatprep.subr.mxu0 0.0
  %1641 = vmatpush1.msra.mxu0 %v226
  %1642 = vmatprep.subr.mxu0 0.0
  %1643 = vmatpush1.msra.mxu0 %v225
  %1644 = vmatprep.subr.mxu0 0.0
  %1645 = vmatpush1.msra.mxu0 %v224
  %1646 = vmatprep.subr.mxu0 0.0
  %1647 = vmatpush1.msra.mxu0 %v223
  %1648 = vmatprep.subr.mxu0 0.0
  %1649 = vmatpush2.msra.mxu0 0.0
  %1650 = vmatprep.subr.mxu0 0.0
  %1651 = vmatpush2.msra.mxu0 0.0
  %1652 = vmatprep.subr.mxu0 0.0
  %1653 = vmatpush2.msra.mxu0 0.0
  %1654 = vmatprep.subr.mxu0 0.0
  %1655 = vmatpush2.msra.mxu0 0.0
  %1656 = vmatprep.subr.mxu0 0.0
  %1657 = vmatpush2.msra.mxu0 0.0
  %1658 = vmatprep.subr.mxu0 0.0
  %1659 = vmatpush2.msra.mxu0 0.0
  %1660 = vmatprep.subr.mxu0 0.0
  %1661 = vmatpush2.msra.mxu0 0.0
  %1662 = vmatprep.subr.mxu0 0.0
  %1663 = vmatpush2.msra.mxu0 0.0
  %1664 = vmatprep.subr.mxu0 0.0
  %1665 = vmatpush2.msra.mxu0 0.0
  %1666 = vmatprep.subr.mxu0 0.0
  %1667 = vmatpush2.msra.mxu0 0.0
  %1668 = vmatprep.subr.mxu0 0.0
  %1669 = vmatpush2.msra.mxu0 0.0
  %1670 = vmatprep.subr.mxu0 0.0
  %1671 = vmatpush2.msra.mxu0 0.0
  %1672 = vmatprep.subr.mxu0 0.0
  %1673 = vmatpush2.msra.mxu0 0.0
  %1674 = vmatprep.subr.mxu0 0.0
  %1675 = vmatpush2.msra.mxu0 0.0
  %1676 = vmatprep.subr.mxu0 0.0
  %1677 = vmatpush2.msra.mxu0 0.0
  %1678 = vmatprep.subr.mxu0 0.0
  %1679 = vmatpush2.msra.mxu0 0.0
  %1680 = vmatprep.mubr.f32.mxu0 0.0
  %1681 = vmatmul.mubr.f32.gmra.mxu0 %v1614
  %v1682 = vpop.f32.mrf.mxu0
  %v1683 = vadd.f32 0.0, %v1682
  %v1684 = vpop.f32.mrf.mxu0
  %1685 = vdwg.mxu0
  %v1686 = vadd.f32 %v1538, %v1683
  %v1687 = vxor.u32 %v1611, 2147483648
  %v1688 = vmul.f32 %v1687, 1.442695
  %v1689 = vpow.pop %v1688
  %v1690 = vadd.f32 %v1689, 1.0
  %v1691 = vrcp.pop %v1690
  %v1692 = vmul.f32 1.0, %v1691
  %v1693 = vtanh.pop %v1611
  %v1694 = vmul.f32 %v1692, %v1496
  %1696 = vrot.lane.b32.xlu0 %v1693, 64
  %v1697 = vpop.permute.xlu0 %1696
  %v1699 = vmul.f32 %v1692, %v1697
  %1701 = vrot.lane.b32.xlu0 %v1699, 32
  %v1702 = vpop.permute.xlu0 %1701
  %v1704 = vadd.f32 %v1694, %v1702
  %v1705 = vtanh.pop %v1704
  %1707 = vrot.lane.b32.xlu0 %v1705, 64
  %v1708 = vpop.permute.xlu0 %1707
  %v1710 = vmul.f32 %v1692, %v1708
  %v1711 = vxor.u32 %v1686, 2147483648
  %v1712 = vmul.f32 %v1711, 1.442695
  %v1713 = vpow.pop %v1712
  %v1714 = vadd.f32 %v1713, 1.0
  %v1715 = vrcp.pop %v1714
  %v1716 = vmul.f32 1.0, %v1715
  %v1717 = vtanh.pop %v1686
  %v1718 = vmul.f32 %v1716, %v1520
  %1720 = vrot.lane.b32.xlu0 %v1717, 64
  %v1721 = vpop.permute.xlu0 %1720
  %v1723 = vmul.f32 %v1716, %v1721
  %1725 = vrot.lane.b32.xlu0 %v1723, 32
  %v1726 = vpop.permute.xlu0 %1725
  %v1728 = vadd.f32 %v1718, %v1726
  %v1729 = vtanh.pop %v1728
  %1731 = vrot.lane.b32.xlu0 %v1729, 64
  %v1732 = vpop.permute.xlu0 %1731
  %v1734 = vmul.f32 %v1716, %v1732
  %1736 = vrot.lane.b32.xlu0 %v1710, 32
  %v1737 = vpop.permute.xlu0 %1736
  %1739 = vst.msk [vmem:[#allocation3 + $0x38] sm:$0xff] %vm281, %v1737
  %1741 = vrot.lane.b32.xlu0 %v1734, 64
  %v1742 = vpop.permute.xlu0 %1741
  %1744 = vst.msk [vmem:[#allocation3] sm:$0xff] %vm287, %v1742
  %v1745 = vld [vmem:[#allocation3] sm:$0xff]
  %v1746 = vld [vmem:[#allocation3 + $0x8] sm:$0xff]
  %v1747 = vld [vmem:[#allocation3 + $0x10] sm:$0xff]
  %v1748 = vld [vmem:[#allocation3 + $0x18] sm:$0xff]
  %v1749 = vld [vmem:[#allocation3 + $0x20] sm:$0xff]
  %v1750 = vld [vmem:[#allocation3 + $0x28] sm:$0xff]
  %v1751 = vld [vmem:[#allocation3 + $0x30] sm:$0xff]
  %v1752 = vld [vmem:[#allocation3 + $0x38] sm:$0xff]
  %v1753 = vld [vmem:[%s5] sm:$0xff]
  %v1754 = vld [vmem:[%s5 + $0x8] sm:$0xff]
  %v1755 = vld [vmem:[%s5 + $0x10] sm:$0xff]
  %v1756 = vld [vmem:[%s5 + $0x18] sm:$0xff]
  %v1757 = vld [vmem:[%s5 + $0x20] sm:$0xff]
  %v1758 = vld [vmem:[%s5 + $0x28] sm:$0xff]
  %v1759 = vld [vmem:[%s5 + $0x30] sm:$0xff]
  %v1760 = vld [vmem:[%s5 + $0x38] sm:$0xff]
  %v1761 = vld [vmem:[%s5 + $0x40] sm:$0xff]
  %v1762 = vld [vmem:[%s5 + $0x48] sm:$0xff]
  %v1763 = vld [vmem:[%s5 + $0x50] sm:$0xff]
  %v1764 = vld [vmem:[%s5 + $0x58] sm:$0xff]
  %v1765 = vld [vmem:[%s5 + $0x60] sm:$0xff]
  %v1766 = vld [vmem:[%s5 + $0x68] sm:$0xff]
  %v1767 = vld [vmem:[%s5 + $0x70] sm:$0xff]
  %v1768 = vld [vmem:[%s5 + $0x78] sm:$0xff]
  %v1769 = vld [vmem:[%s6] sm:$0x3]
  %v1771 = vlaneseq
  %v1772 = vshrl.u32 %v1771, 7
  %v1773 = vsub.s32 0, %v1772
  %v1774 = vrot.slane %v1769, %v1773
  %v1775 = vlaneseq
  %v1776 = vshrl.u32 %v1775, 7
  %v1777 = vsub.s32 1, %v1776
  %v1778 = vrot.slane %v1769, %v1777
  %vm1781 = vcmask 523264
  %v1783 = vsel %vm1781, %v1745, 0
  %v1786 = vsel %vm1781, %v1746, 0
  %v1789 = vsel %vm1781, %v1747, 0
  %v1792 = vsel %vm1781, %v1748, 0
  %v1795 = vsel %vm1781, %v1749, 0
  %v1798 = vsel %vm1781, %v1750, 0
  %v1801 = vsel %vm1781, %v1751, 0
  %v1804 = vsel %vm1781, %v1752, 0
  %1806 = vmatprep.subr.mxu0 0.0
  %1807 = vmatpush1.msra.mxu0 0.0
  %1808 = vmatprep.subr.mxu0 0.0
  %1809 = vmatpush1.msra.mxu0 0.0
  %1810 = vmatprep.subr.mxu0 0.0
  %1811 = vmatpush1.msra.mxu0 0.0
  %1812 = vmatprep.subr.mxu0 0.0
  %1813 = vmatpush1.msra.mxu0 0.0
  %1814 = vmatprep.subr.mxu0 0.0
  %1815 = vmatpush1.msra.mxu0 0.0
  %1816 = vmatprep.subr.mxu0 0.0
  %1817 = vmatpush1.msra.mxu0 0.0
  %1818 = vmatprep.subr.mxu0 0.0
  %1819 = vmatpush1.msra.mxu0 0.0
  %1820 = vmatprep.subr.mxu0 0.0
  %1821 = vmatpush1.msra.mxu0 0.0
  %1822 = vmatprep.subr.mxu0 %v1768
  %1823 = vmatpush1.msra.mxu0 %v1767
  %1824 = vmatprep.subr.mxu0 %v1766
  %1825 = vmatpush1.msra.mxu0 %v1765
  %1826 = vmatprep.subr.mxu0 %v1764
  %1827 = vmatpush1.msra.mxu0 %v1763
  %1828 = vmatprep.subr.mxu0 %v1762
  %1829 = vmatpush1.msra.mxu0 %v1761
  %1830 = vmatprep.subr.mxu0 %v1760
  %1831 = vmatpush1.msra.mxu0 %v1759
  %1832 = vmatprep.subr.mxu0 %v1758
  %1833 = vmatpush1.msra.mxu0 %v1757
  %1834 = vmatprep.subr.mxu0 %v1756
  %1835 = vmatpush1.msra.mxu0 %v1755
  %1836 = vmatprep.subr.mxu0 %v1754
  %1837 = vmatpush1.msra.mxu0 %v1753
  %1838 = vmatprep.subr.mxu0 0.0
  %1839 = vmatpush2.msra.mxu0 0.0
  %1840 = vmatprep.subr.mxu0 0.0
  %1841 = vmatpush2.msra.mxu0 0.0
  %1842 = vmatprep.subr.mxu0 0.0
  %1843 = vmatpush2.msra.mxu0 0.0
  %1844 = vmatprep.subr.mxu0 0.0
  %1845 = vmatpush2.msra.mxu0 0.0
  %1846 = vmatprep.subr.mxu0 0.0
  %1847 = vmatpush2.msra.mxu0 0.0
  %1848 = vmatprep.subr.mxu0 0.0
  %1849 = vmatpush2.msra.mxu0 0.0
  %1850 = vmatprep.subr.mxu0 0.0
  %1851 = vmatpush2.msra.mxu0 0.0
  %1852 = vmatprep.subr.mxu0 0.0
  %1853 = vmatpush2.msra.mxu0 0.0
  %1854 = vmatprep.subr.mxu0 0.0
  %1855 = vmatpush2.msra.mxu0 0.0
  %1856 = vmatprep.subr.mxu0 0.0
  %1857 = vmatpush2.msra.mxu0 0.0
  %1858 = vmatprep.subr.mxu0 0.0
  %1859 = vmatpush2.msra.mxu0 0.0
  %1860 = vmatprep.subr.mxu0 0.0
  %1861 = vmatpush2.msra.mxu0 0.0
  %1862 = vmatprep.subr.mxu0 0.0
  %1863 = vmatpush2.msra.mxu0 0.0
  %1864 = vmatprep.subr.mxu0 0.0
  %1865 = vmatpush2.msra.mxu0 0.0
  %1866 = vmatprep.subr.mxu0 0.0
  %1867 = vmatpush2.msra.mxu0 0.0
  %1868 = vmatprep.subr.mxu0 0.0
  %1869 = vmatpush2.msra.mxu0 0.0
  %1870 = vmatprep.mubr.f32.mxu0 0.0
  %1871 = vmatmul.mubr.f32.gmra.mxu0 %v1783
  %v1872 = vpop.f32.mrf.mxu0
  %v1873 = vadd.f32 %v1774, %v1872
  %v1874 = vpop.f32.mrf.mxu0
  %v1875 = vadd.f32 %v1778, %v1874
  %1876 = vmatprep.mubr.f32.mxu0 0.0
  %1877 = vmatmul.mubr.f32.gmra.mxu0 %v1786
  %v1878 = vpop.f32.mrf.mxu0
  %v1879 = vadd.f32 %v1774, %v1878
  %v1880 = vpop.f32.mrf.mxu0
  %v1881 = vadd.f32 %v1778, %v1880
  %1882 = vmatprep.mubr.f32.mxu0 0.0
  %1883 = vmatmul.mubr.f32.gmra.mxu0 %v1789
  %v1884 = vpop.f32.mrf.mxu0
  %v1885 = vadd.f32 %v1774, %v1884
  %v1886 = vpop.f32.mrf.mxu0
  %v1887 = vadd.f32 %v1778, %v1886
  %1888 = vmatprep.mubr.f32.mxu0 0.0
  %1889 = vmatmul.mubr.f32.gmra.mxu0 %v1792
  %v1890 = vpop.f32.mrf.mxu0
  %v1891 = vadd.f32 %v1774, %v1890
  %v1892 = vpop.f32.mrf.mxu0
  %v1893 = vadd.f32 %v1778, %v1892
  %1894 = vmatprep.mubr.f32.mxu0 0.0
  %1895 = vmatmul.mubr.f32.gmra.mxu0 %v1795
  %v1896 = vpop.f32.mrf.mxu0
  %v1897 = vadd.f32 %v1774, %v1896
  %v1898 = vpop.f32.mrf.mxu0
  %v1899 = vadd.f32 %v1778, %v1898
  %1900 = vmatprep.mubr.f32.mxu0 0.0
  %1901 = vmatmul.mubr.f32.gmra.mxu0 %v1798
  %v1902 = vpop.f32.mrf.mxu0
  %v1903 = vadd.f32 %v1774, %v1902
  %v1904 = vpop.f32.mrf.mxu0
  %v1905 = vadd.f32 %v1778, %v1904
  %1906 = vmatprep.mubr.f32.mxu0 0.0
  %1907 = vmatmul.mubr.f32.gmra.mxu0 %v1801
  %v1908 = vpop.f32.mrf.mxu0
  %v1909 = vadd.f32 %v1774, %v1908
  %v1910 = vpop.f32.mrf.mxu0
  %v1911 = vadd.f32 %v1778, %v1910
  %1912 = vmatprep.mubr.f32.mxu0 0.0
  %1913 = vmatmul.mubr.f32.gmra.mxu0 %v1804
  %v1914 = vpop.f32.mrf.mxu0
  %v1915 = vadd.f32 %v1774, %v1914
  %v1916 = vpop.f32.mrf.mxu0
  %v1917 = vadd.f32 %v1778, %v1916
  %1918 = vdwg.mxu0
  %1919 = vst [vmem:[#allocation2] sm:$0xff] %v1873
  %1920 = vst [vmem:[#allocation2 + $0x8] sm:$0xff] %v1875
  %1921 = vst [vmem:[#allocation2 + $0x10] sm:$0xff] %v1879
  %1922 = vst [vmem:[#allocation2 + $0x18] sm:$0xff] %v1881
  %1923 = vst [vmem:[#allocation2 + $0x20] sm:$0xff] %v1885
  %1924 = vst [vmem:[#allocation2 + $0x28] sm:$0xff] %v1887
  %1925 = vst [vmem:[#allocation2 + $0x30] sm:$0xff] %v1891
  %1926 = vst [vmem:[#allocation2 + $0x38] sm:$0xff] %v1893
  %1927 = vst [vmem:[#allocation2 + $0x40] sm:$0xff] %v1897
  %1928 = vst [vmem:[#allocation2 + $0x48] sm:$0xff] %v1899
  %1929 = vst [vmem:[#allocation2 + $0x50] sm:$0xff] %v1903
  %1930 = vst [vmem:[#allocation2 + $0x58] sm:$0xff] %v1905
  %1931 = vst [vmem:[#allocation2 + $0x60] sm:$0xff] %v1909
  %1932 = vst [vmem:[#allocation2 + $0x68] sm:$0xff] %v1911
  %1933 = vst [vmem:[#allocation2 + $0x70] sm:$0xff] %v1915
  %1934 = vst [vmem:[#allocation2 + $0x78] sm:$0xff] %v1917
  %v1935 = vld [vmem:[%s7] sm:$0xff]
  %v1936 = vld [vmem:[%s7 + $0x8] sm:$0xff]
  %v1937 = vld [vmem:[%s7 + $0x10] sm:$0xff]
  %v1938 = vld [vmem:[%s7 + $0x18] sm:$0xff]
  %v1939 = vld [vmem:[%s8] sm:$0xff]
  %v1940 = vld [vmem:[%s8 + $0x8] sm:$0xff]
  %v1941 = vld [vmem:[%s8 + $0x10] sm:$0xff]
  %v1942 = vld [vmem:[%s8 + $0x18] sm:$0xff]
  %v1943 = vld [vmem:[#allocation2] sm:$0xff]
  %v1944 = vld [vmem:[#allocation2 + $0x78] sm:$0xff]
  %v1945 = vxor.u32 %v1943, 2147483648
  %v1946 = vmul.f32 %v1945, 1.442695
  %v1947 = vpow.pop %v1946
  %v1948 = vadd.f32 %v1947, 1.0
  %v1949 = vrcp.pop %v1948
  %v1950 = vmul.f32 1.0, %v1949
  %v1951 = vtanh.pop %v1943
  %v1952 = vmul.f32 %v1950, 0.0
  %1954 = vrot.lane.b32.xlu0 %v1951, 64
  %v1955 = vpop.permute.xlu0 %1954
  %v1957 = vmul.f32 %v1950, %v1955
  %1959 = vrot.lane.b32.xlu0 %v1957, 32
  %v1960 = vpop.permute.xlu0 %1959
  %v1962 = vadd.f32 %v1952, %v1960
  %v1963 = vtanh.pop %v1962
  %1965 = vrot.lane.b32.xlu0 %v1963, 64
  %v1966 = vpop.permute.xlu0 %1965
  %v1968 = vmul.f32 %v1950, %v1966
  %v1969 = vxor.u32 %v1944, 2147483648
  %v1970 = vmul.f32 %v1969, 1.442695
  %v1971 = vpow.pop %v1970
  %v1972 = vadd.f32 %v1971, 1.0
  %v1973 = vrcp.pop %v1972
  %v1974 = vmul.f32 1.0, %v1973
  %v1975 = vtanh.pop %v1944
  %v1976 = vmul.f32 %v1974, 0.0
  %1978 = vrot.lane.b32.xlu0 %v1975, 64
  %v1979 = vpop.permute.xlu0 %1978
  %v1981 = vmul.f32 %v1974, %v1979
  %1983 = vrot.lane.b32.xlu0 %v1981, 32
  %v1984 = vpop.permute.xlu0 %1983
  %v1986 = vadd.f32 %v1976, %v1984
  %v1987 = vtanh.pop %v1986
  %1989 = vrot.lane.b32.xlu0 %v1987, 64
  %v1990 = vpop.permute.xlu0 %1989
  %v1992 = vmul.f32 %v1974, %v1990
  %v1993 = vld [vmem:[#allocation2 + $0x10] sm:$0xff]
  %v1994 = vld [vmem:[#allocation2 + $0x68] sm:$0xff]
  %1996 = vrot.lane.b32.xlu0 %v1968, 32
  %v1997 = vpop.permute.xlu0 %1996
  %v1998 = vsel %vm281, %v1997, 0
  %2000 = vmatprep.subr.mxu0 0.0
  %2001 = vmatpush1.msra.mxu0 0.0
  %2002 = vmatprep.subr.mxu0 0.0
  %2003 = vmatpush1.msra.mxu0 0.0
  %2004 = vmatprep.subr.mxu0 0.0
  %2005 = vmatpush1.msra.mxu0 0.0
  %2006 = vmatprep.subr.mxu0 0.0
  %2007 = vmatpush1.msra.mxu0 0.0
  %2008 = vmatprep.subr.mxu0 0.0
  %2009 = vmatpush1.msra.mxu0 0.0
  %2010 = vmatprep.subr.mxu0 0.0
  %2011 = vmatpush1.msra.mxu0 0.0
  %2012 = vmatprep.subr.mxu0 0.0
  %2013 = vmatpush1.msra.mxu0 0.0
  %2014 = vmatprep.subr.mxu0 0.0
  %2015 = vmatpush1.msra.mxu0 0.0
  %2016 = vmatprep.subr.mxu0 0.0
  %2017 = vmatpush1.msra.mxu0 0.0
  %2018 = vmatprep.subr.mxu0 0.0
  %2019 = vmatpush1.msra.mxu0 0.0
  %2020 = vmatprep.subr.mxu0 0.0
  %2021 = vmatpush1.msra.mxu0 0.0
  %2022 = vmatprep.subr.mxu0 0.0
  %2023 = vmatpush1.msra.mxu0 0.0
  %2024 = vmatprep.subr.mxu0 0.0
  %2025 = vmatpush1.msra.mxu0 %v1938
  %2026 = vmatprep.subr.mxu0 0.0
  %2027 = vmatpush1.msra.mxu0 %v1937
  %2028 = vmatprep.subr.mxu0 0.0
  %2029 = vmatpush1.msra.mxu0 %v1936
  %2030 = vmatprep.subr.mxu0 0.0
  %2031 = vmatpush1.msra.mxu0 %v1935
  %2032 = vmatprep.subr.mxu0 0.0
  %2033 = vmatpush2.msra.mxu0 0.0
  %2034 = vmatprep.subr.mxu0 0.0
  %2035 = vmatpush2.msra.mxu0 0.0
  %2036 = vmatprep.subr.mxu0 0.0
  %2037 = vmatpush2.msra.mxu0 0.0
  %2038 = vmatprep.subr.mxu0 0.0
  %2039 = vmatpush2.msra.mxu0 0.0
  %2040 = vmatprep.subr.mxu0 0.0
  %2041 = vmatpush2.msra.mxu0 0.0
  %2042 = vmatprep.subr.mxu0 0.0
  %2043 = vmatpush2.msra.mxu0 0.0
  %2044 = vmatprep.subr.mxu0 0.0
  %2045 = vmatpush2.msra.mxu0 0.0
  %2046 = vmatprep.subr.mxu0 0.0
  %2047 = vmatpush2.msra.mxu0 0.0
  %2048 = vmatprep.subr.mxu0 0.0
  %2049 = vmatpush2.msra.mxu0 0.0
  %2050 = vmatprep.subr.mxu0 0.0
  %2051 = vmatpush2.msra.mxu0 0.0
  %2052 = vmatprep.subr.mxu0 0.0
  %2053 = vmatpush2.msra.mxu0 0.0
  %2054 = vmatprep.subr.mxu0 0.0
  %2055 = vmatpush2.msra.mxu0 0.0
  %2056 = vmatprep.subr.mxu0 0.0
  %2057 = vmatpush2.msra.mxu0 0.0
  %2058 = vmatprep.subr.mxu0 0.0
  %2059 = vmatpush2.msra.mxu0 0.0
  %2060 = vmatprep.subr.mxu0 0.0
  %2061 = vmatpush2.msra.mxu0 0.0
  %2062 = vmatprep.subr.mxu0 0.0
  %2063 = vmatpush2.msra.mxu0 0.0
  %2064 = vmatprep.mubr.f32.mxu0 0.0
  %2065 = vmatmul.mubr.f32.gmra.mxu0 %v1998
  %v2066 = vpop.f32.mrf.mxu0
  %v2067 = vadd.f32 0.0, %v2066
  %v2068 = vpop.f32.mrf.mxu0
  %2069 = vdwg.mxu0
  %v2070 = vadd.f32 %v1993, %v2067
  %2072 = vrot.lane.b32.xlu0 %v1992, 32
  %v2073 = vpop.permute.xlu0 %2072
  %v2074 = vsel %vm281, %v2073, 0
  %2076 = vmatprep.subr.mxu0 0.0
  %2077 = vmatpush1.msra.mxu0 0.0
  %2078 = vmatprep.subr.mxu0 0.0
  %2079 = vmatpush1.msra.mxu0 0.0
  %2080 = vmatprep.subr.mxu0 0.0
  %2081 = vmatpush1.msra.mxu0 0.0
  %2082 = vmatprep.subr.mxu0 0.0
  %2083 = vmatpush1.msra.mxu0 0.0
  %2084 = vmatprep.subr.mxu0 0.0
  %2085 = vmatpush1.msra.mxu0 0.0
  %2086 = vmatprep.subr.mxu0 0.0
  %2087 = vmatpush1.msra.mxu0 0.0
  %2088 = vmatprep.subr.mxu0 0.0
  %2089 = vmatpush1.msra.mxu0 0.0
  %2090 = vmatprep.subr.mxu0 0.0
  %2091 = vmatpush1.msra.mxu0 0.0
  %2092 = vmatprep.subr.mxu0 0.0
  %2093 = vmatpush1.msra.mxu0 0.0
  %2094 = vmatprep.subr.mxu0 0.0
  %2095 = vmatpush1.msra.mxu0 0.0
  %2096 = vmatprep.subr.mxu0 0.0
  %2097 = vmatpush1.msra.mxu0 0.0
  %2098 = vmatprep.subr.mxu0 0.0
  %2099 = vmatpush1.msra.mxu0 0.0
  %2100 = vmatprep.subr.mxu0 0.0
  %2101 = vmatpush1.msra.mxu0 %v1942
  %2102 = vmatprep.subr.mxu0 0.0
  %2103 = vmatpush1.msra.mxu0 %v1941
  %2104 = vmatprep.subr.mxu0 0.0
  %2105 = vmatpush1.msra.mxu0 %v1940
  %2106 = vmatprep.subr.mxu0 0.0
  %2107 = vmatpush1.msra.mxu0 %v1939
  %2108 = vmatprep.subr.mxu0 0.0
  %2109 = vmatpush2.msra.mxu0 0.0
  %2110 = vmatprep.subr.mxu0 0.0
  %2111 = vmatpush2.msra.mxu0 0.0
  %2112 = vmatprep.subr.mxu0 0.0
  %2113 = vmatpush2.msra.mxu0 0.0
  %2114 = vmatprep.subr.mxu0 0.0
  %2115 = vmatpush2.msra.mxu0 0.0
  %2116 = vmatprep.subr.mxu0 0.0
  %2117 = vmatpush2.msra.mxu0 0.0
  %2118 = vmatprep.subr.mxu0 0.0
  %2119 = vmatpush2.msra.mxu0 0.0
  %2120 = vmatprep.subr.mxu0 0.0
  %2121 = vmatpush2.msra.mxu0 0.0
  %2122 = vmatprep.subr.mxu0 0.0
  %2123 = vmatpush2.msra.mxu0 0.0
  %2124 = vmatprep.subr.mxu0 0.0
  %2125 = vmatpush2.msra.mxu0 0.0
  %2126 = vmatprep.subr.mxu0 0.0
  %2127 = vmatpush2.msra.mxu0 0.0
  %2128 = vmatprep.subr.mxu0 0.0
  %2129 = vmatpush2.msra.mxu0 0.0
  %2130 = vmatprep.subr.mxu0 0.0
  %2131 = vmatpush2.msra.mxu0 0.0
  %2132 = vmatprep.subr.mxu0 0.0
  %2133 = vmatpush2.msra.mxu0 0.0
  %2134 = vmatprep.subr.mxu0 0.0
  %2135 = vmatpush2.msra.mxu0 0.0
  %2136 = vmatprep.subr.mxu0 0.0
  %2137 = vmatpush2.msra.mxu0 0.0
  %2138 = vmatprep.subr.mxu0 0.0
  %2139 = vmatpush2.msra.mxu0 0.0
  %2140 = vmatprep.mubr.f32.mxu0 0.0
  %2141 = vmatmul.mubr.f32.gmra.mxu0 %v2074
  %v2142 = vpop.f32.mrf.mxu0
  %v2143 = vadd.f32 0.0, %v2142
  %v2144 = vpop.f32.mrf.mxu0
  %2145 = vdwg.mxu0
  %v2146 = vadd.f32 %v1994, %v2143
  %v2147 = vxor.u32 %v2070, 2147483648
  %v2148 = vmul.f32 %v2147, 1.442695
  %v2149 = vpow.pop %v2148
  %v2150 = vadd.f32 %v2149, 1.0
  %v2151 = vrcp.pop %v2150
  %v2152 = vmul.f32 1.0, %v2151
  %v2153 = vtanh.pop %v2070
  %v2154 = vmul.f32 %v2152, %v1962
  %2156 = vrot.lane.b32.xlu0 %v2153, 64
  %v2157 = vpop.permute.xlu0 %2156
  %v2159 = vmul.f32 %v2152, %v2157
  %2161 = vrot.lane.b32.xlu0 %v2159, 32
  %v2162 = vpop.permute.xlu0 %2161
  %v2164 = vadd.f32 %v2154, %v2162
  %v2165 = vtanh.pop %v2164
  %2167 = vrot.lane.b32.xlu0 %v2165, 64
  %v2168 = vpop.permute.xlu0 %2167
  %v2170 = vmul.f32 %v2152, %v2168
  %v2171 = vxor.u32 %v2146, 2147483648
  %v2172 = vmul.f32 %v2171, 1.442695
  %v2173 = vpow.pop %v2172
  %v2174 = vadd.f32 %v2173, 1.0
  %v2175 = vrcp.pop %v2174
  %v2176 = vmul.f32 1.0, %v2175
  %v2177 = vtanh.pop %v2146
  %v2178 = vmul.f32 %v2176, %v1986
  %2180 = vrot.lane.b32.xlu0 %v2177, 64
  %v2181 = vpop.permute.xlu0 %2180
  %v2183 = vmul.f32 %v2176, %v2181
  %2185 = vrot.lane.b32.xlu0 %v2183, 32
  %v2186 = vpop.permute.xlu0 %2185
  %v2188 = vadd.f32 %v2178, %v2186
  %v2189 = vtanh.pop %v2188
  %2191 = vrot.lane.b32.xlu0 %v2189, 64
  %v2192 = vpop.permute.xlu0 %2191
  %v2194 = vmul.f32 %v2176, %v2192
  %v2195 = vld [vmem:[#allocation2 + $0x20] sm:$0xff]
  %v2196 = vld [vmem:[#allocation2 + $0x58] sm:$0xff]
  %2198 = vrot.lane.b32.xlu0 %v2170, 32
  %v2199 = vpop.permute.xlu0 %2198
  %v2200 = vsel %vm281, %v2199, 0
  %2202 = vmatprep.subr.mxu0 0.0
  %2203 = vmatpush1.msra.mxu0 0.0
  %2204 = vmatprep.subr.mxu0 0.0
  %2205 = vmatpush1.msra.mxu0 0.0
  %2206 = vmatprep.subr.mxu0 0.0
  %2207 = vmatpush1.msra.mxu0 0.0
  %2208 = vmatprep.subr.mxu0 0.0
  %2209 = vmatpush1.msra.mxu0 0.0
  %2210 = vmatprep.subr.mxu0 0.0
  %2211 = vmatpush1.msra.mxu0 0.0
  %2212 = vmatprep.subr.mxu0 0.0
  %2213 = vmatpush1.msra.mxu0 0.0
  %2214 = vmatprep.subr.mxu0 0.0
  %2215 = vmatpush1.msra.mxu0 0.0
  %2216 = vmatprep.subr.mxu0 0.0
  %2217 = vmatpush1.msra.mxu0 0.0
  %2218 = vmatprep.subr.mxu0 0.0
  %2219 = vmatpush1.msra.mxu0 0.0
  %2220 = vmatprep.subr.mxu0 0.0
  %2221 = vmatpush1.msra.mxu0 0.0
  %2222 = vmatprep.subr.mxu0 0.0
  %2223 = vmatpush1.msra.mxu0 0.0
  %2224 = vmatprep.subr.mxu0 0.0
  %2225 = vmatpush1.msra.mxu0 0.0
  %2226 = vmatprep.subr.mxu0 0.0
  %2227 = vmatpush1.msra.mxu0 %v1938
  %2228 = vmatprep.subr.mxu0 0.0
  %2229 = vmatpush1.msra.mxu0 %v1937
  %2230 = vmatprep.subr.mxu0 0.0
  %2231 = vmatpush1.msra.mxu0 %v1936
  %2232 = vmatprep.subr.mxu0 0.0
  %2233 = vmatpush1.msra.mxu0 %v1935
  %2234 = vmatprep.subr.mxu0 0.0
  %2235 = vmatpush2.msra.mxu0 0.0
  %2236 = vmatprep.subr.mxu0 0.0
  %2237 = vmatpush2.msra.mxu0 0.0
  %2238 = vmatprep.subr.mxu0 0.0
  %2239 = vmatpush2.msra.mxu0 0.0
  %2240 = vmatprep.subr.mxu0 0.0
  %2241 = vmatpush2.msra.mxu0 0.0
  %2242 = vmatprep.subr.mxu0 0.0
  %2243 = vmatpush2.msra.mxu0 0.0
  %2244 = vmatprep.subr.mxu0 0.0
  %2245 = vmatpush2.msra.mxu0 0.0
  %2246 = vmatprep.subr.mxu0 0.0
  %2247 = vmatpush2.msra.mxu0 0.0
  %2248 = vmatprep.subr.mxu0 0.0
  %2249 = vmatpush2.msra.mxu0 0.0
  %2250 = vmatprep.subr.mxu0 0.0
  %2251 = vmatpush2.msra.mxu0 0.0
  %2252 = vmatprep.subr.mxu0 0.0
  %2253 = vmatpush2.msra.mxu0 0.0
  %2254 = vmatprep.subr.mxu0 0.0
  %2255 = vmatpush2.msra.mxu0 0.0
  %2256 = vmatprep.subr.mxu0 0.0
  %2257 = vmatpush2.msra.mxu0 0.0
  %2258 = vmatprep.subr.mxu0 0.0
  %2259 = vmatpush2.msra.mxu0 0.0
  %2260 = vmatprep.subr.mxu0 0.0
  %2261 = vmatpush2.msra.mxu0 0.0
  %2262 = vmatprep.subr.mxu0 0.0
  %2263 = vmatpush2.msra.mxu0 0.0
  %2264 = vmatprep.subr.mxu0 0.0
  %2265 = vmatpush2.msra.mxu0 0.0
  %2266 = vmatprep.mubr.f32.mxu0 0.0
  %2267 = vmatmul.mubr.f32.gmra.mxu0 %v2200
  %v2268 = vpop.f32.mrf.mxu0
  %v2269 = vadd.f32 0.0, %v2268
  %v2270 = vpop.f32.mrf.mxu0
  %2271 = vdwg.mxu0
  %v2272 = vadd.f32 %v2195, %v2269
  %2274 = vrot.lane.b32.xlu0 %v2194, 32
  %v2275 = vpop.permute.xlu0 %2274
  %v2276 = vsel %vm281, %v2275, 0
  %2278 = vmatprep.subr.mxu0 0.0
  %2279 = vmatpush1.msra.mxu0 0.0
  %2280 = vmatprep.subr.mxu0 0.0
  %2281 = vmatpush1.msra.mxu0 0.0
  %2282 = vmatprep.subr.mxu0 0.0
  %2283 = vmatpush1.msra.mxu0 0.0
  %2284 = vmatprep.subr.mxu0 0.0
  %2285 = vmatpush1.msra.mxu0 0.0
  %2286 = vmatprep.subr.mxu0 0.0
  %2287 = vmatpush1.msra.mxu0 0.0
  %2288 = vmatprep.subr.mxu0 0.0
  %2289 = vmatpush1.msra.mxu0 0.0
  %2290 = vmatprep.subr.mxu0 0.0
  %2291 = vmatpush1.msra.mxu0 0.0
  %2292 = vmatprep.subr.mxu0 0.0
  %2293 = vmatpush1.msra.mxu0 0.0
  %2294 = vmatprep.subr.mxu0 0.0
  %2295 = vmatpush1.msra.mxu0 0.0
  %2296 = vmatprep.subr.mxu0 0.0
  %2297 = vmatpush1.msra.mxu0 0.0
  %2298 = vmatprep.subr.mxu0 0.0
  %2299 = vmatpush1.msra.mxu0 0.0
  %2300 = vmatprep.subr.mxu0 0.0
  %2301 = vmatpush1.msra.mxu0 0.0
  %2302 = vmatprep.subr.mxu0 0.0
  %2303 = vmatpush1.msra.mxu0 %v1942
  %2304 = vmatprep.subr.mxu0 0.0
  %2305 = vmatpush1.msra.mxu0 %v1941
  %2306 = vmatprep.subr.mxu0 0.0
  %2307 = vmatpush1.msra.mxu0 %v1940
  %2308 = vmatprep.subr.mxu0 0.0
  %2309 = vmatpush1.msra.mxu0 %v1939
  %2310 = vmatprep.subr.mxu0 0.0
  %2311 = vmatpush2.msra.mxu0 0.0
  %2312 = vmatprep.subr.mxu0 0.0
  %2313 = vmatpush2.msra.mxu0 0.0
  %2314 = vmatprep.subr.mxu0 0.0
  %2315 = vmatpush2.msra.mxu0 0.0
  %2316 = vmatprep.subr.mxu0 0.0
  %2317 = vmatpush2.msra.mxu0 0.0
  %2318 = vmatprep.subr.mxu0 0.0
  %2319 = vmatpush2.msra.mxu0 0.0
  %2320 = vmatprep.subr.mxu0 0.0
  %2321 = vmatpush2.msra.mxu0 0.0
  %2322 = vmatprep.subr.mxu0 0.0
  %2323 = vmatpush2.msra.mxu0 0.0
  %2324 = vmatprep.subr.mxu0 0.0
  %2325 = vmatpush2.msra.mxu0 0.0
  %2326 = vmatprep.subr.mxu0 0.0
  %2327 = vmatpush2.msra.mxu0 0.0
  %2328 = vmatprep.subr.mxu0 0.0
  %2329 = vmatpush2.msra.mxu0 0.0
  %2330 = vmatprep.subr.mxu0 0.0
  %2331 = vmatpush2.msra.mxu0 0.0
  %2332 = vmatprep.subr.mxu0 0.0
  %2333 = vmatpush2.msra.mxu0 0.0
  %2334 = vmatprep.subr.mxu0 0.0
  %2335 = vmatpush2.msra.mxu0 0.0
  %2336 = vmatprep.subr.mxu0 0.0
  %2337 = vmatpush2.msra.mxu0 0.0
  %2338 = vmatprep.subr.mxu0 0.0
  %2339 = vmatpush2.msra.mxu0 0.0
  %2340 = vmatprep.subr.mxu0 0.0
  %2341 = vmatpush2.msra.mxu0 0.0
  %2342 = vmatprep.mubr.f32.mxu0 0.0
  %2343 = vmatmul.mubr.f32.gmra.mxu0 %v2276
  %v2344 = vpop.f32.mrf.mxu0
  %v2345 = vadd.f32 0.0, %v2344
  %v2346 = vpop.f32.mrf.mxu0
  %2347 = vdwg.mxu0
  %v2348 = vadd.f32 %v2196, %v2345
  %v2349 = vxor.u32 %v2272, 2147483648
  %v2350 = vmul.f32 %v2349, 1.442695
  %v2351 = vpow.pop %v2350
  %v2352 = vadd.f32 %v2351, 1.0
  %v2353 = vrcp.pop %v2352
  %v2354 = vmul.f32 1.0, %v2353
  %v2355 = vtanh.pop %v2272
  %v2356 = vmul.f32 %v2354, %v2164
  %2358 = vrot.lane.b32.xlu0 %v2355, 64
  %v2359 = vpop.permute.xlu0 %2358
  %v2361 = vmul.f32 %v2354, %v2359
  %2363 = vrot.lane.b32.xlu0 %v2361, 32
  %v2364 = vpop.permute.xlu0 %2363
  %v2366 = vadd.f32 %v2356, %v2364
  %v2367 = vtanh.pop %v2366
  %2369 = vrot.lane.b32.xlu0 %v2367, 64
  %v2370 = vpop.permute.xlu0 %2369
  %v2372 = vmul.f32 %v2354, %v2370
  %v2373 = vxor.u32 %v2348, 2147483648
  %v2374 = vmul.f32 %v2373, 1.442695
  %v2375 = vpow.pop %v2374
  %v2376 = vadd.f32 %v2375, 1.0
  %v2377 = vrcp.pop %v2376
  %v2378 = vmul.f32 1.0, %v2377
  %v2379 = vtanh.pop %v2348
  %v2380 = vmul.f32 %v2378, %v2188
  %2382 = vrot.lane.b32.xlu0 %v2379, 64
  %v2383 = vpop.permute.xlu0 %2382
  %v2385 = vmul.f32 %v2378, %v2383
  %2387 = vrot.lane.b32.xlu0 %v2385, 32
  %v2388 = vpop.permute.xlu0 %2387
  %v2390 = vadd.f32 %v2380, %v2388
  %v2391 = vtanh.pop %v2390
  %2393 = vrot.lane.b32.xlu0 %v2391, 64
  %v2394 = vpop.permute.xlu0 %2393
  %v2396 = vmul.f32 %v2378, %v2394
  %v2397 = vld [vmem:[#allocation2 + $0x30] sm:$0xff]
  %v2398 = vld [vmem:[#allocation2 + $0x48] sm:$0xff]
  %2400 = vrot.lane.b32.xlu0 %v2372, 32
  %v2401 = vpop.permute.xlu0 %2400
  %v2402 = vsel %vm281, %v2401, 0
  %2404 = vmatprep.subr.mxu0 0.0
  %2405 = vmatpush1.msra.mxu0 0.0
  %2406 = vmatprep.subr.mxu0 0.0
  %2407 = vmatpush1.msra.mxu0 0.0
  %2408 = vmatprep.subr.mxu0 0.0
  %2409 = vmatpush1.msra.mxu0 0.0
  %2410 = vmatprep.subr.mxu0 0.0
  %2411 = vmatpush1.msra.mxu0 0.0
  %2412 = vmatprep.subr.mxu0 0.0
  %2413 = vmatpush1.msra.mxu0 0.0
  %2414 = vmatprep.subr.mxu0 0.0
  %2415 = vmatpush1.msra.mxu0 0.0
  %2416 = vmatprep.subr.mxu0 0.0
  %2417 = vmatpush1.msra.mxu0 0.0
  %2418 = vmatprep.subr.mxu0 0.0
  %2419 = vmatpush1.msra.mxu0 0.0
  %2420 = vmatprep.subr.mxu0 0.0
  %2421 = vmatpush1.msra.mxu0 0.0
  %2422 = vmatprep.subr.mxu0 0.0
  %2423 = vmatpush1.msra.mxu0 0.0
  %2424 = vmatprep.subr.mxu0 0.0
  %2425 = vmatpush1.msra.mxu0 0.0
  %2426 = vmatprep.subr.mxu0 0.0
  %2427 = vmatpush1.msra.mxu0 0.0
  %2428 = vmatprep.subr.mxu0 0.0
  %2429 = vmatpush1.msra.mxu0 %v1938
  %2430 = vmatprep.subr.mxu0 0.0
  %2431 = vmatpush1.msra.mxu0 %v1937
  %2432 = vmatprep.subr.mxu0 0.0
  %2433 = vmatpush1.msra.mxu0 %v1936
  %2434 = vmatprep.subr.mxu0 0.0
  %2435 = vmatpush1.msra.mxu0 %v1935
  %2436 = vmatprep.subr.mxu0 0.0
  %2437 = vmatpush2.msra.mxu0 0.0
  %2438 = vmatprep.subr.mxu0 0.0
  %2439 = vmatpush2.msra.mxu0 0.0
  %2440 = vmatprep.subr.mxu0 0.0
  %2441 = vmatpush2.msra.mxu0 0.0
  %2442 = vmatprep.subr.mxu0 0.0
  %2443 = vmatpush2.msra.mxu0 0.0
  %2444 = vmatprep.subr.mxu0 0.0
  %2445 = vmatpush2.msra.mxu0 0.0
  %2446 = vmatprep.subr.mxu0 0.0
  %2447 = vmatpush2.msra.mxu0 0.0
  %2448 = vmatprep.subr.mxu0 0.0
  %2449 = vmatpush2.msra.mxu0 0.0
  %2450 = vmatprep.subr.mxu0 0.0
  %2451 = vmatpush2.msra.mxu0 0.0
  %2452 = vmatprep.subr.mxu0 0.0
  %2453 = vmatpush2.msra.mxu0 0.0
  %2454 = vmatprep.subr.mxu0 0.0
  %2455 = vmatpush2.msra.mxu0 0.0
  %2456 = vmatprep.subr.mxu0 0.0
  %2457 = vmatpush2.msra.mxu0 0.0
  %2458 = vmatprep.subr.mxu0 0.0
  %2459 = vmatpush2.msra.mxu0 0.0
  %2460 = vmatprep.subr.mxu0 0.0
  %2461 = vmatpush2.msra.mxu0 0.0
  %2462 = vmatprep.subr.mxu0 0.0
  %2463 = vmatpush2.msra.mxu0 0.0
  %2464 = vmatprep.subr.mxu0 0.0
  %2465 = vmatpush2.msra.mxu0 0.0
  %2466 = vmatprep.subr.mxu0 0.0
  %2467 = vmatpush2.msra.mxu0 0.0
  %2468 = vmatprep.mubr.f32.mxu0 0.0
  %2469 = vmatmul.mubr.f32.gmra.mxu0 %v2402
  %v2470 = vpop.f32.mrf.mxu0
  %v2471 = vadd.f32 0.0, %v2470
  %v2472 = vpop.f32.mrf.mxu0
  %2473 = vdwg.mxu0
  %v2474 = vadd.f32 %v2397, %v2471
  %2476 = vrot.lane.b32.xlu0 %v2396, 32
  %v2477 = vpop.permute.xlu0 %2476
  %v2478 = vsel %vm281, %v2477, 0
  %2480 = vmatprep.subr.mxu0 0.0
  %2481 = vmatpush1.msra.mxu0 0.0
  %2482 = vmatprep.subr.mxu0 0.0
  %2483 = vmatpush1.msra.mxu0 0.0
  %2484 = vmatprep.subr.mxu0 0.0
  %2485 = vmatpush1.msra.mxu0 0.0
  %2486 = vmatprep.subr.mxu0 0.0
  %2487 = vmatpush1.msra.mxu0 0.0
  %2488 = vmatprep.subr.mxu0 0.0
  %2489 = vmatpush1.msra.mxu0 0.0
  %2490 = vmatprep.subr.mxu0 0.0
  %2491 = vmatpush1.msra.mxu0 0.0
  %2492 = vmatprep.subr.mxu0 0.0
  %2493 = vmatpush1.msra.mxu0 0.0
  %2494 = vmatprep.subr.mxu0 0.0
  %2495 = vmatpush1.msra.mxu0 0.0
  %2496 = vmatprep.subr.mxu0 0.0
  %2497 = vmatpush1.msra.mxu0 0.0
  %2498 = vmatprep.subr.mxu0 0.0
  %2499 = vmatpush1.msra.mxu0 0.0
  %2500 = vmatprep.subr.mxu0 0.0
  %2501 = vmatpush1.msra.mxu0 0.0
  %2502 = vmatprep.subr.mxu0 0.0
  %2503 = vmatpush1.msra.mxu0 0.0
  %2504 = vmatprep.subr.mxu0 0.0
  %2505 = vmatpush1.msra.mxu0 %v1942
  %2506 = vmatprep.subr.mxu0 0.0
  %2507 = vmatpush1.msra.mxu0 %v1941
  %2508 = vmatprep.subr.mxu0 0.0
  %2509 = vmatpush1.msra.mxu0 %v1940
  %2510 = vmatprep.subr.mxu0 0.0
  %2511 = vmatpush1.msra.mxu0 %v1939
  %2512 = vmatprep.subr.mxu0 0.0
  %2513 = vmatpush2.msra.mxu0 0.0
  %2514 = vmatprep.subr.mxu0 0.0
  %2515 = vmatpush2.msra.mxu0 0.0
  %2516 = vmatprep.subr.mxu0 0.0
  %2517 = vmatpush2.msra.mxu0 0.0
  %2518 = vmatprep.subr.mxu0 0.0
  %2519 = vmatpush2.msra.mxu0 0.0
  %2520 = vmatprep.subr.mxu0 0.0
  %2521 = vmatpush2.msra.mxu0 0.0
  %2522 = vmatprep.subr.mxu0 0.0
  %2523 = vmatpush2.msra.mxu0 0.0
  %2524 = vmatprep.subr.mxu0 0.0
  %2525 = vmatpush2.msra.mxu0 0.0
  %2526 = vmatprep.subr.mxu0 0.0
  %2527 = vmatpush2.msra.mxu0 0.0
  %2528 = vmatprep.subr.mxu0 0.0
  %2529 = vmatpush2.msra.mxu0 0.0
  %2530 = vmatprep.subr.mxu0 0.0
  %2531 = vmatpush2.msra.mxu0 0.0
  %2532 = vmatprep.subr.mxu0 0.0
  %2533 = vmatpush2.msra.mxu0 0.0
  %2534 = vmatprep.subr.mxu0 0.0
  %2535 = vmatpush2.msra.mxu0 0.0
  %2536 = vmatprep.subr.mxu0 0.0
  %2537 = vmatpush2.msra.mxu0 0.0
  %2538 = vmatprep.subr.mxu0 0.0
  %2539 = vmatpush2.msra.mxu0 0.0
  %2540 = vmatprep.subr.mxu0 0.0
  %2541 = vmatpush2.msra.mxu0 0.0
  %2542 = vmatprep.subr.mxu0 0.0
  %2543 = vmatpush2.msra.mxu0 0.0
  %2544 = vmatprep.mubr.f32.mxu0 0.0
  %2545 = vmatmul.mubr.f32.gmra.mxu0 %v2478
  %v2546 = vpop.f32.mrf.mxu0
  %v2547 = vadd.f32 0.0, %v2546
  %v2548 = vpop.f32.mrf.mxu0
  %2549 = vdwg.mxu0
  %v2550 = vadd.f32 %v2398, %v2547
  %v2551 = vxor.u32 %v2474, 2147483648
  %v2552 = vmul.f32 %v2551, 1.442695
  %v2553 = vpow.pop %v2552
  %v2554 = vadd.f32 %v2553, 1.0
  %v2555 = vrcp.pop %v2554
  %v2556 = vmul.f32 1.0, %v2555
  %v2557 = vtanh.pop %v2474
  %v2558 = vmul.f32 %v2556, %v2366
  %2560 = vrot.lane.b32.xlu0 %v2557, 64
  %v2561 = vpop.permute.xlu0 %2560
  %v2563 = vmul.f32 %v2556, %v2561
  %2565 = vrot.lane.b32.xlu0 %v2563, 32
  %v2566 = vpop.permute.xlu0 %2565
  %v2568 = vadd.f32 %v2558, %v2566
  %v2569 = vtanh.pop %v2568
  %2571 = vrot.lane.b32.xlu0 %v2569, 64
  %v2572 = vpop.permute.xlu0 %2571
  %v2574 = vmul.f32 %v2556, %v2572
  %v2575 = vxor.u32 %v2550, 2147483648
  %v2576 = vmul.f32 %v2575, 1.442695
  %v2577 = vpow.pop %v2576
  %v2578 = vadd.f32 %v2577, 1.0
  %v2579 = vrcp.pop %v2578
  %v2580 = vmul.f32 1.0, %v2579
  %v2581 = vtanh.pop %v2550
  %v2582 = vmul.f32 %v2580, %v2390
  %2584 = vrot.lane.b32.xlu0 %v2581, 64
  %v2585 = vpop.permute.xlu0 %2584
  %v2587 = vmul.f32 %v2580, %v2585
  %2589 = vrot.lane.b32.xlu0 %v2587, 32
  %v2590 = vpop.permute.xlu0 %2589
  %v2592 = vadd.f32 %v2582, %v2590
  %v2593 = vtanh.pop %v2592
  %2595 = vrot.lane.b32.xlu0 %v2593, 64
  %v2596 = vpop.permute.xlu0 %2595
  %v2598 = vmul.f32 %v2580, %v2596
  %v2599 = vld [vmem:[#allocation2 + $0x40] sm:$0xff]
  %v2600 = vld [vmem:[#allocation2 + $0x38] sm:$0xff]
  %2602 = vrot.lane.b32.xlu0 %v2574, 32
  %v2603 = vpop.permute.xlu0 %2602
  %v2604 = vsel %vm281, %v2603, 0
  %2606 = vmatprep.subr.mxu0 0.0
  %2607 = vmatpush1.msra.mxu0 0.0
  %2608 = vmatprep.subr.mxu0 0.0
  %2609 = vmatpush1.msra.mxu0 0.0
  %2610 = vmatprep.subr.mxu0 0.0
  %2611 = vmatpush1.msra.mxu0 0.0
  %2612 = vmatprep.subr.mxu0 0.0
  %2613 = vmatpush1.msra.mxu0 0.0
  %2614 = vmatprep.subr.mxu0 0.0
  %2615 = vmatpush1.msra.mxu0 0.0
  %2616 = vmatprep.subr.mxu0 0.0
  %2617 = vmatpush1.msra.mxu0 0.0
  %2618 = vmatprep.subr.mxu0 0.0
  %2619 = vmatpush1.msra.mxu0 0.0
  %2620 = vmatprep.subr.mxu0 0.0
  %2621 = vmatpush1.msra.mxu0 0.0
  %2622 = vmatprep.subr.mxu0 0.0
  %2623 = vmatpush1.msra.mxu0 0.0
  %2624 = vmatprep.subr.mxu0 0.0
  %2625 = vmatpush1.msra.mxu0 0.0
  %2626 = vmatprep.subr.mxu0 0.0
  %2627 = vmatpush1.msra.mxu0 0.0
  %2628 = vmatprep.subr.mxu0 0.0
  %2629 = vmatpush1.msra.mxu0 0.0
  %2630 = vmatprep.subr.mxu0 0.0
  %2631 = vmatpush1.msra.mxu0 %v1938
  %2632 = vmatprep.subr.mxu0 0.0
  %2633 = vmatpush1.msra.mxu0 %v1937
  %2634 = vmatprep.subr.mxu0 0.0
  %2635 = vmatpush1.msra.mxu0 %v1936
  %2636 = vmatprep.subr.mxu0 0.0
  %2637 = vmatpush1.msra.mxu0 %v1935
  %2638 = vmatprep.subr.mxu0 0.0
  %2639 = vmatpush2.msra.mxu0 0.0
  %2640 = vmatprep.subr.mxu0 0.0
  %2641 = vmatpush2.msra.mxu0 0.0
  %2642 = vmatprep.subr.mxu0 0.0
  %2643 = vmatpush2.msra.mxu0 0.0
  %2644 = vmatprep.subr.mxu0 0.0
  %2645 = vmatpush2.msra.mxu0 0.0
  %2646 = vmatprep.subr.mxu0 0.0
  %2647 = vmatpush2.msra.mxu0 0.0
  %2648 = vmatprep.subr.mxu0 0.0
  %2649 = vmatpush2.msra.mxu0 0.0
  %2650 = vmatprep.subr.mxu0 0.0
  %2651 = vmatpush2.msra.mxu0 0.0
  %2652 = vmatprep.subr.mxu0 0.0
  %2653 = vmatpush2.msra.mxu0 0.0
  %2654 = vmatprep.subr.mxu0 0.0
  %2655 = vmatpush2.msra.mxu0 0.0
  %2656 = vmatprep.subr.mxu0 0.0
  %2657 = vmatpush2.msra.mxu0 0.0
  %2658 = vmatprep.subr.mxu0 0.0
  %2659 = vmatpush2.msra.mxu0 0.0
  %2660 = vmatprep.subr.mxu0 0.0
  %2661 = vmatpush2.msra.mxu0 0.0
  %2662 = vmatprep.subr.mxu0 0.0
  %2663 = vmatpush2.msra.mxu0 0.0
  %2664 = vmatprep.subr.mxu0 0.0
  %2665 = vmatpush2.msra.mxu0 0.0
  %2666 = vmatprep.subr.mxu0 0.0
  %2667 = vmatpush2.msra.mxu0 0.0
  %2668 = vmatprep.subr.mxu0 0.0
  %2669 = vmatpush2.msra.mxu0 0.0
  %2670 = vmatprep.mubr.f32.mxu0 0.0
  %2671 = vmatmul.mubr.f32.gmra.mxu0 %v2604
  %v2672 = vpop.f32.mrf.mxu0
  %v2673 = vadd.f32 0.0, %v2672
  %v2674 = vpop.f32.mrf.mxu0
  %2675 = vdwg.mxu0
  %v2676 = vadd.f32 %v2599, %v2673
  %2678 = vrot.lane.b32.xlu0 %v2598, 32
  %v2679 = vpop.permute.xlu0 %2678
  %v2680 = vsel %vm281, %v2679, 0
  %2682 = vmatprep.subr.mxu0 0.0
  %2683 = vmatpush1.msra.mxu0 0.0
  %2684 = vmatprep.subr.mxu0 0.0
  %2685 = vmatpush1.msra.mxu0 0.0
  %2686 = vmatprep.subr.mxu0 0.0
  %2687 = vmatpush1.msra.mxu0 0.0
  %2688 = vmatprep.subr.mxu0 0.0
  %2689 = vmatpush1.msra.mxu0 0.0
  %2690 = vmatprep.subr.mxu0 0.0
  %2691 = vmatpush1.msra.mxu0 0.0
  %2692 = vmatprep.subr.mxu0 0.0
  %2693 = vmatpush1.msra.mxu0 0.0
  %2694 = vmatprep.subr.mxu0 0.0
  %2695 = vmatpush1.msra.mxu0 0.0
  %2696 = vmatprep.subr.mxu0 0.0
  %2697 = vmatpush1.msra.mxu0 0.0
  %2698 = vmatprep.subr.mxu0 0.0
  %2699 = vmatpush1.msra.mxu0 0.0
  %2700 = vmatprep.subr.mxu0 0.0
  %2701 = vmatpush1.msra.mxu0 0.0
  %2702 = vmatprep.subr.mxu0 0.0
  %2703 = vmatpush1.msra.mxu0 0.0
  %2704 = vmatprep.subr.mxu0 0.0
  %2705 = vmatpush1.msra.mxu0 0.0
  %2706 = vmatprep.subr.mxu0 0.0
  %2707 = vmatpush1.msra.mxu0 %v1942
  %2708 = vmatprep.subr.mxu0 0.0
  %2709 = vmatpush1.msra.mxu0 %v1941
  %2710 = vmatprep.subr.mxu0 0.0
  %2711 = vmatpush1.msra.mxu0 %v1940
  %2712 = vmatprep.subr.mxu0 0.0
  %2713 = vmatpush1.msra.mxu0 %v1939
  %2714 = vmatprep.subr.mxu0 0.0
  %2715 = vmatpush2.msra.mxu0 0.0
  %2716 = vmatprep.subr.mxu0 0.0
  %2717 = vmatpush2.msra.mxu0 0.0
  %2718 = vmatprep.subr.mxu0 0.0
  %2719 = vmatpush2.msra.mxu0 0.0
  %2720 = vmatprep.subr.mxu0 0.0
  %2721 = vmatpush2.msra.mxu0 0.0
  %2722 = vmatprep.subr.mxu0 0.0
  %2723 = vmatpush2.msra.mxu0 0.0
  %2724 = vmatprep.subr.mxu0 0.0
  %2725 = vmatpush2.msra.mxu0 0.0
  %2726 = vmatprep.subr.mxu0 0.0
  %2727 = vmatpush2.msra.mxu0 0.0
  %2728 = vmatprep.subr.mxu0 0.0
  %2729 = vmatpush2.msra.mxu0 0.0
  %2730 = vmatprep.subr.mxu0 0.0
  %2731 = vmatpush2.msra.mxu0 0.0
  %2732 = vmatprep.subr.mxu0 0.0
  %2733 = vmatpush2.msra.mxu0 0.0
  %2734 = vmatprep.subr.mxu0 0.0
  %2735 = vmatpush2.msra.mxu0 0.0
  %2736 = vmatprep.subr.mxu0 0.0
  %2737 = vmatpush2.msra.mxu0 0.0
  %2738 = vmatprep.subr.mxu0 0.0
  %2739 = vmatpush2.msra.mxu0 0.0
  %2740 = vmatprep.subr.mxu0 0.0
  %2741 = vmatpush2.msra.mxu0 0.0
  %2742 = vmatprep.subr.mxu0 0.0
  %2743 = vmatpush2.msra.mxu0 0.0
  %2744 = vmatprep.subr.mxu0 0.0
  %2745 = vmatpush2.msra.mxu0 0.0
  %2746 = vmatprep.mubr.f32.mxu0 0.0
  %2747 = vmatmul.mubr.f32.gmra.mxu0 %v2680
  %v2748 = vpop.f32.mrf.mxu0
  %v2749 = vadd.f32 0.0, %v2748
  %v2750 = vpop.f32.mrf.mxu0
  %2751 = vdwg.mxu0
  %v2752 = vadd.f32 %v2600, %v2749
  %v2753 = vxor.u32 %v2676, 2147483648
  %v2754 = vmul.f32 %v2753, 1.442695
  %v2755 = vpow.pop %v2754
  %v2756 = vadd.f32 %v2755, 1.0
  %v2757 = vrcp.pop %v2756
  %v2758 = vmul.f32 1.0, %v2757
  %v2759 = vtanh.pop %v2676
  %v2760 = vmul.f32 %v2758, %v2568
  %2762 = vrot.lane.b32.xlu0 %v2759, 64
  %v2763 = vpop.permute.xlu0 %2762
  %v2765 = vmul.f32 %v2758, %v2763
  %2767 = vrot.lane.b32.xlu0 %v2765, 32
  %v2768 = vpop.permute.xlu0 %2767
  %v2770 = vadd.f32 %v2760, %v2768
  %v2771 = vtanh.pop %v2770
  %2773 = vrot.lane.b32.xlu0 %v2771, 64
  %v2774 = vpop.permute.xlu0 %2773
  %v2776 = vmul.f32 %v2758, %v2774
  %v2777 = vxor.u32 %v2752, 2147483648
  %v2778 = vmul.f32 %v2777, 1.442695
  %v2779 = vpow.pop %v2778
  %v2780 = vadd.f32 %v2779, 1.0
  %v2781 = vrcp.pop %v2780
  %v2782 = vmul.f32 1.0, %v2781
  %v2783 = vtanh.pop %v2752
  %v2784 = vmul.f32 %v2782, %v2592
  %2786 = vrot.lane.b32.xlu0 %v2783, 64
  %v2787 = vpop.permute.xlu0 %2786
  %v2789 = vmul.f32 %v2782, %v2787
  %2791 = vrot.lane.b32.xlu0 %v2789, 32
  %v2792 = vpop.permute.xlu0 %2791
  %v2794 = vadd.f32 %v2784, %v2792
  %v2795 = vtanh.pop %v2794
  %2797 = vrot.lane.b32.xlu0 %v2795, 64
  %v2798 = vpop.permute.xlu0 %2797
  %v2800 = vmul.f32 %v2782, %v2798
  %v2801 = vld [vmem:[#allocation2 + $0x50] sm:$0xff]
  %v2802 = vld [vmem:[#allocation2 + $0x28] sm:$0xff]
  %2804 = vrot.lane.b32.xlu0 %v2776, 32
  %v2805 = vpop.permute.xlu0 %2804
  %v2806 = vsel %vm281, %v2805, 0
  %2808 = vmatprep.subr.mxu0 0.0
  %2809 = vmatpush1.msra.mxu0 0.0
  %2810 = vmatprep.subr.mxu0 0.0
  %2811 = vmatpush1.msra.mxu0 0.0
  %2812 = vmatprep.subr.mxu0 0.0
  %2813 = vmatpush1.msra.mxu0 0.0
  %2814 = vmatprep.subr.mxu0 0.0
  %2815 = vmatpush1.msra.mxu0 0.0
  %2816 = vmatprep.subr.mxu0 0.0
  %2817 = vmatpush1.msra.mxu0 0.0
  %2818 = vmatprep.subr.mxu0 0.0
  %2819 = vmatpush1.msra.mxu0 0.0
  %2820 = vmatprep.subr.mxu0 0.0
  %2821 = vmatpush1.msra.mxu0 0.0
  %2822 = vmatprep.subr.mxu0 0.0
  %2823 = vmatpush1.msra.mxu0 0.0
  %2824 = vmatprep.subr.mxu0 0.0
  %2825 = vmatpush1.msra.mxu0 0.0
  %2826 = vmatprep.subr.mxu0 0.0
  %2827 = vmatpush1.msra.mxu0 0.0
  %2828 = vmatprep.subr.mxu0 0.0
  %2829 = vmatpush1.msra.mxu0 0.0
  %2830 = vmatprep.subr.mxu0 0.0
  %2831 = vmatpush1.msra.mxu0 0.0
  %2832 = vmatprep.subr.mxu0 0.0
  %2833 = vmatpush1.msra.mxu0 %v1938
  %2834 = vmatprep.subr.mxu0 0.0
  %2835 = vmatpush1.msra.mxu0 %v1937
  %2836 = vmatprep.subr.mxu0 0.0
  %2837 = vmatpush1.msra.mxu0 %v1936
  %2838 = vmatprep.subr.mxu0 0.0
  %2839 = vmatpush1.msra.mxu0 %v1935
  %2840 = vmatprep.subr.mxu0 0.0
  %2841 = vmatpush2.msra.mxu0 0.0
  %2842 = vmatprep.subr.mxu0 0.0
  %2843 = vmatpush2.msra.mxu0 0.0
  %2844 = vmatprep.subr.mxu0 0.0
  %2845 = vmatpush2.msra.mxu0 0.0
  %2846 = vmatprep.subr.mxu0 0.0
  %2847 = vmatpush2.msra.mxu0 0.0
  %2848 = vmatprep.subr.mxu0 0.0
  %2849 = vmatpush2.msra.mxu0 0.0
  %2850 = vmatprep.subr.mxu0 0.0
  %2851 = vmatpush2.msra.mxu0 0.0
  %2852 = vmatprep.subr.mxu0 0.0
  %2853 = vmatpush2.msra.mxu0 0.0
  %2854 = vmatprep.subr.mxu0 0.0
  %2855 = vmatpush2.msra.mxu0 0.0
  %2856 = vmatprep.subr.mxu0 0.0
  %2857 = vmatpush2.msra.mxu0 0.0
  %2858 = vmatprep.subr.mxu0 0.0
  %2859 = vmatpush2.msra.mxu0 0.0
  %2860 = vmatprep.subr.mxu0 0.0
  %2861 = vmatpush2.msra.mxu0 0.0
  %2862 = vmatprep.subr.mxu0 0.0
  %2863 = vmatpush2.msra.mxu0 0.0
  %2864 = vmatprep.subr.mxu0 0.0
  %2865 = vmatpush2.msra.mxu0 0.0
  %2866 = vmatprep.subr.mxu0 0.0
  %2867 = vmatpush2.msra.mxu0 0.0
  %2868 = vmatprep.subr.mxu0 0.0
  %2869 = vmatpush2.msra.mxu0 0.0
  %2870 = vmatprep.subr.mxu0 0.0
  %2871 = vmatpush2.msra.mxu0 0.0
  %2872 = vmatprep.mubr.f32.mxu0 0.0
  %2873 = vmatmul.mubr.f32.gmra.mxu0 %v2806
  %v2874 = vpop.f32.mrf.mxu0
  %v2875 = vadd.f32 0.0, %v2874
  %v2876 = vpop.f32.mrf.mxu0
  %2877 = vdwg.mxu0
  %v2878 = vadd.f32 %v2801, %v2875
  %2880 = vrot.lane.b32.xlu0 %v2800, 32
  %v2881 = vpop.permute.xlu0 %2880
  %v2882 = vsel %vm281, %v2881, 0
  %2884 = vmatprep.subr.mxu0 0.0
  %2885 = vmatpush1.msra.mxu0 0.0
  %2886 = vmatprep.subr.mxu0 0.0
  %2887 = vmatpush1.msra.mxu0 0.0
  %2888 = vmatprep.subr.mxu0 0.0
  %2889 = vmatpush1.msra.mxu0 0.0
  %2890 = vmatprep.subr.mxu0 0.0
  %2891 = vmatpush1.msra.mxu0 0.0
  %2892 = vmatprep.subr.mxu0 0.0
  %2893 = vmatpush1.msra.mxu0 0.0
  %2894 = vmatprep.subr.mxu0 0.0
  %2895 = vmatpush1.msra.mxu0 0.0
  %2896 = vmatprep.subr.mxu0 0.0
  %2897 = vmatpush1.msra.mxu0 0.0
  %2898 = vmatprep.subr.mxu0 0.0
  %2899 = vmatpush1.msra.mxu0 0.0
  %2900 = vmatprep.subr.mxu0 0.0
  %2901 = vmatpush1.msra.mxu0 0.0
  %2902 = vmatprep.subr.mxu0 0.0
  %2903 = vmatpush1.msra.mxu0 0.0
  %2904 = vmatprep.subr.mxu0 0.0
  %2905 = vmatpush1.msra.mxu0 0.0
  %2906 = vmatprep.subr.mxu0 0.0
  %2907 = vmatpush1.msra.mxu0 0.0
  %2908 = vmatprep.subr.mxu0 0.0
  %2909 = vmatpush1.msra.mxu0 %v1942
  %2910 = vmatprep.subr.mxu0 0.0
  %2911 = vmatpush1.msra.mxu0 %v1941
  %2912 = vmatprep.subr.mxu0 0.0
  %2913 = vmatpush1.msra.mxu0 %v1940
  %2914 = vmatprep.subr.mxu0 0.0
  %2915 = vmatpush1.msra.mxu0 %v1939
  %2916 = vmatprep.subr.mxu0 0.0
  %2917 = vmatpush2.msra.mxu0 0.0
  %2918 = vmatprep.subr.mxu0 0.0
  %2919 = vmatpush2.msra.mxu0 0.0
  %2920 = vmatprep.subr.mxu0 0.0
  %2921 = vmatpush2.msra.mxu0 0.0
  %2922 = vmatprep.subr.mxu0 0.0
  %2923 = vmatpush2.msra.mxu0 0.0
  %2924 = vmatprep.subr.mxu0 0.0
  %2925 = vmatpush2.msra.mxu0 0.0
  %2926 = vmatprep.subr.mxu0 0.0
  %2927 = vmatpush2.msra.mxu0 0.0
  %2928 = vmatprep.subr.mxu0 0.0
  %2929 = vmatpush2.msra.mxu0 0.0
  %2930 = vmatprep.subr.mxu0 0.0
  %2931 = vmatpush2.msra.mxu0 0.0
  %2932 = vmatprep.subr.mxu0 0.0
  %2933 = vmatpush2.msra.mxu0 0.0
  %2934 = vmatprep.subr.mxu0 0.0
  %2935 = vmatpush2.msra.mxu0 0.0
  %2936 = vmatprep.subr.mxu0 0.0
  %2937 = vmatpush2.msra.mxu0 0.0
  %2938 = vmatprep.subr.mxu0 0.0
  %2939 = vmatpush2.msra.mxu0 0.0
  %2940 = vmatprep.subr.mxu0 0.0
  %2941 = vmatpush2.msra.mxu0 0.0
  %2942 = vmatprep.subr.mxu0 0.0
  %2943 = vmatpush2.msra.mxu0 0.0
  %2944 = vmatprep.subr.mxu0 0.0
  %2945 = vmatpush2.msra.mxu0 0.0
  %2946 = vmatprep.subr.mxu0 0.0
  %2947 = vmatpush2.msra.mxu0 0.0
  %2948 = vmatprep.mubr.f32.mxu0 0.0
  %2949 = vmatmul.mubr.f32.gmra.mxu0 %v2882
  %v2950 = vpop.f32.mrf.mxu0
  %v2951 = vadd.f32 0.0, %v2950
  %v2952 = vpop.f32.mrf.mxu0
  %2953 = vdwg.mxu0
  %v2954 = vadd.f32 %v2802, %v2951
  %v2955 = vxor.u32 %v2878, 2147483648
  %v2956 = vmul.f32 %v2955, 1.442695
  %v2957 = vpow.pop %v2956
  %v2958 = vadd.f32 %v2957, 1.0
  %v2959 = vrcp.pop %v2958
  %v2960 = vmul.f32 1.0, %v2959
  %v2961 = vtanh.pop %v2878
  %v2962 = vmul.f32 %v2960, %v2770
  %2964 = vrot.lane.b32.xlu0 %v2961, 64
  %v2965 = vpop.permute.xlu0 %2964
  %v2967 = vmul.f32 %v2960, %v2965
  %2969 = vrot.lane.b32.xlu0 %v2967, 32
  %v2970 = vpop.permute.xlu0 %2969
  %v2972 = vadd.f32 %v2962, %v2970
  %v2973 = vtanh.pop %v2972
  %2975 = vrot.lane.b32.xlu0 %v2973, 64
  %v2976 = vpop.permute.xlu0 %2975
  %v2978 = vmul.f32 %v2960, %v2976
  %v2979 = vxor.u32 %v2954, 2147483648
  %v2980 = vmul.f32 %v2979, 1.442695
  %v2981 = vpow.pop %v2980
  %v2982 = vadd.f32 %v2981, 1.0
  %v2983 = vrcp.pop %v2982
  %v2984 = vmul.f32 1.0, %v2983
  %v2985 = vtanh.pop %v2954
  %v2986 = vmul.f32 %v2984, %v2794
  %2988 = vrot.lane.b32.xlu0 %v2985, 64
  %v2989 = vpop.permute.xlu0 %2988
  %v2991 = vmul.f32 %v2984, %v2989
  %2993 = vrot.lane.b32.xlu0 %v2991, 32
  %v2994 = vpop.permute.xlu0 %2993
  %v2996 = vadd.f32 %v2986, %v2994
  %v2997 = vtanh.pop %v2996
  %2999 = vrot.lane.b32.xlu0 %v2997, 64
  %v3000 = vpop.permute.xlu0 %2999
  %v3002 = vmul.f32 %v2984, %v3000
  %v3003 = vld [vmem:[#allocation2 + $0x60] sm:$0xff]
  %v3004 = vld [vmem:[#allocation2 + $0x18] sm:$0xff]
  %3006 = vrot.lane.b32.xlu0 %v2978, 32
  %v3007 = vpop.permute.xlu0 %3006
  %v3008 = vsel %vm281, %v3007, 0
  %3010 = vmatprep.subr.mxu0 0.0
  %3011 = vmatpush1.msra.mxu0 0.0
  %3012 = vmatprep.subr.mxu0 0.0
  %3013 = vmatpush1.msra.mxu0 0.0
  %3014 = vmatprep.subr.mxu0 0.0
  %3015 = vmatpush1.msra.mxu0 0.0
  %3016 = vmatprep.subr.mxu0 0.0
  %3017 = vmatpush1.msra.mxu0 0.0
  %3018 = vmatprep.subr.mxu0 0.0
  %3019 = vmatpush1.msra.mxu0 0.0
  %3020 = vmatprep.subr.mxu0 0.0
  %3021 = vmatpush1.msra.mxu0 0.0
  %3022 = vmatprep.subr.mxu0 0.0
  %3023 = vmatpush1.msra.mxu0 0.0
  %3024 = vmatprep.subr.mxu0 0.0
  %3025 = vmatpush1.msra.mxu0 0.0
  %3026 = vmatprep.subr.mxu0 0.0
  %3027 = vmatpush1.msra.mxu0 0.0
  %3028 = vmatprep.subr.mxu0 0.0
  %3029 = vmatpush1.msra.mxu0 0.0
  %3030 = vmatprep.subr.mxu0 0.0
  %3031 = vmatpush1.msra.mxu0 0.0
  %3032 = vmatprep.subr.mxu0 0.0
  %3033 = vmatpush1.msra.mxu0 0.0
  %3034 = vmatprep.subr.mxu0 0.0
  %3035 = vmatpush1.msra.mxu0 %v1938
  %3036 = vmatprep.subr.mxu0 0.0
  %3037 = vmatpush1.msra.mxu0 %v1937
  %3038 = vmatprep.subr.mxu0 0.0
  %3039 = vmatpush1.msra.mxu0 %v1936
  %3040 = vmatprep.subr.mxu0 0.0
  %3041 = vmatpush1.msra.mxu0 %v1935
  %3042 = vmatprep.subr.mxu0 0.0
  %3043 = vmatpush2.msra.mxu0 0.0
  %3044 = vmatprep.subr.mxu0 0.0
  %3045 = vmatpush2.msra.mxu0 0.0
  %3046 = vmatprep.subr.mxu0 0.0
  %3047 = vmatpush2.msra.mxu0 0.0
  %3048 = vmatprep.subr.mxu0 0.0
  %3049 = vmatpush2.msra.mxu0 0.0
  %3050 = vmatprep.subr.mxu0 0.0
  %3051 = vmatpush2.msra.mxu0 0.0
  %3052 = vmatprep.subr.mxu0 0.0
  %3053 = vmatpush2.msra.mxu0 0.0
  %3054 = vmatprep.subr.mxu0 0.0
  %3055 = vmatpush2.msra.mxu0 0.0
  %3056 = vmatprep.subr.mxu0 0.0
  %3057 = vmatpush2.msra.mxu0 0.0
  %3058 = vmatprep.subr.mxu0 0.0
  %3059 = vmatpush2.msra.mxu0 0.0
  %3060 = vmatprep.subr.mxu0 0.0
  %3061 = vmatpush2.msra.mxu0 0.0
  %3062 = vmatprep.subr.mxu0 0.0
  %3063 = vmatpush2.msra.mxu0 0.0
  %3064 = vmatprep.subr.mxu0 0.0
  %3065 = vmatpush2.msra.mxu0 0.0
  %3066 = vmatprep.subr.mxu0 0.0
  %3067 = vmatpush2.msra.mxu0 0.0
  %3068 = vmatprep.subr.mxu0 0.0
  %3069 = vmatpush2.msra.mxu0 0.0
  %3070 = vmatprep.subr.mxu0 0.0
  %3071 = vmatpush2.msra.mxu0 0.0
  %3072 = vmatprep.subr.mxu0 0.0
  %3073 = vmatpush2.msra.mxu0 0.0
  %3074 = vmatprep.mubr.f32.mxu0 0.0
  %3075 = vmatmul.mubr.f32.gmra.mxu0 %v3008
  %v3076 = vpop.f32.mrf.mxu0
  %v3077 = vadd.f32 0.0, %v3076
  %v3078 = vpop.f32.mrf.mxu0
  %3079 = vdwg.mxu0
  %v3080 = vadd.f32 %v3003, %v3077
  %3082 = vrot.lane.b32.xlu0 %v3002, 32
  %v3083 = vpop.permute.xlu0 %3082
  %v3084 = vsel %vm281, %v3083, 0
  %3086 = vmatprep.subr.mxu0 0.0
  %3087 = vmatpush1.msra.mxu0 0.0
  %3088 = vmatprep.subr.mxu0 0.0
  %3089 = vmatpush1.msra.mxu0 0.0
  %3090 = vmatprep.subr.mxu0 0.0
  %3091 = vmatpush1.msra.mxu0 0.0
  %3092 = vmatprep.subr.mxu0 0.0
  %3093 = vmatpush1.msra.mxu0 0.0
  %3094 = vmatprep.subr.mxu0 0.0
  %3095 = vmatpush1.msra.mxu0 0.0
  %3096 = vmatprep.subr.mxu0 0.0
  %3097 = vmatpush1.msra.mxu0 0.0
  %3098 = vmatprep.subr.mxu0 0.0
  %3099 = vmatpush1.msra.mxu0 0.0
  %3100 = vmatprep.subr.mxu0 0.0
  %3101 = vmatpush1.msra.mxu0 0.0
  %3102 = vmatprep.subr.mxu0 0.0
  %3103 = vmatpush1.msra.mxu0 0.0
  %3104 = vmatprep.subr.mxu0 0.0
  %3105 = vmatpush1.msra.mxu0 0.0
  %3106 = vmatprep.subr.mxu0 0.0
  %3107 = vmatpush1.msra.mxu0 0.0
  %3108 = vmatprep.subr.mxu0 0.0
  %3109 = vmatpush1.msra.mxu0 0.0
  %3110 = vmatprep.subr.mxu0 0.0
  %3111 = vmatpush1.msra.mxu0 %v1942
  %3112 = vmatprep.subr.mxu0 0.0
  %3113 = vmatpush1.msra.mxu0 %v1941
  %3114 = vmatprep.subr.mxu0 0.0
  %3115 = vmatpush1.msra.mxu0 %v1940
  %3116 = vmatprep.subr.mxu0 0.0
  %3117 = vmatpush1.msra.mxu0 %v1939
  %3118 = vmatprep.subr.mxu0 0.0
  %3119 = vmatpush2.msra.mxu0 0.0
  %3120 = vmatprep.subr.mxu0 0.0
  %3121 = vmatpush2.msra.mxu0 0.0
  %3122 = vmatprep.subr.mxu0 0.0
  %3123 = vmatpush2.msra.mxu0 0.0
  %3124 = vmatprep.subr.mxu0 0.0
  %3125 = vmatpush2.msra.mxu0 0.0
  %3126 = vmatprep.subr.mxu0 0.0
  %3127 = vmatpush2.msra.mxu0 0.0
  %3128 = vmatprep.subr.mxu0 0.0
  %3129 = vmatpush2.msra.mxu0 0.0
  %3130 = vmatprep.subr.mxu0 0.0
  %3131 = vmatpush2.msra.mxu0 0.0
  %3132 = vmatprep.subr.mxu0 0.0
  %3133 = vmatpush2.msra.mxu0 0.0
  %3134 = vmatprep.subr.mxu0 0.0
  %3135 = vmatpush2.msra.mxu0 0.0
  %3136 = vmatprep.subr.mxu0 0.0
  %3137 = vmatpush2.msra.mxu0 0.0
  %3138 = vmatprep.subr.mxu0 0.0
  %3139 = vmatpush2.msra.mxu0 0.0
  %3140 = vmatprep.subr.mxu0 0.0
  %3141 = vmatpush2.msra.mxu0 0.0
  %3142 = vmatprep.subr.mxu0 0.0
  %3143 = vmatpush2.msra.mxu0 0.0
  %3144 = vmatprep.subr.mxu0 0.0
  %3145 = vmatpush2.msra.mxu0 0.0
  %3146 = vmatprep.subr.mxu0 0.0
  %3147 = vmatpush2.msra.mxu0 0.0
  %3148 = vmatprep.subr.mxu0 0.0
  %3149 = vmatpush2.msra.mxu0 0.0
  %3150 = vmatprep.mubr.f32.mxu0 0.0
  %3151 = vmatmul.mubr.f32.gmra.mxu0 %v3084
  %v3152 = vpop.f32.mrf.mxu0
  %v3153 = vadd.f32 0.0, %v3152
  %v3154 = vpop.f32.mrf.mxu0
  %3155 = vdwg.mxu0
  %v3156 = vadd.f32 %v3004, %v3153
  %v3157 = vxor.u32 %v3080, 2147483648
  %v3158 = vmul.f32 %v3157, 1.442695
  %v3159 = vpow.pop %v3158
  %v3160 = vadd.f32 %v3159, 1.0
  %v3161 = vrcp.pop %v3160
  %v3162 = vmul.f32 1.0, %v3161
  %v3163 = vtanh.pop %v3080
  %v3164 = vmul.f32 %v3162, %v2972
  %3166 = vrot.lane.b32.xlu0 %v3163, 64
  %v3167 = vpop.permute.xlu0 %3166
  %v3169 = vmul.f32 %v3162, %v3167
  %3171 = vrot.lane.b32.xlu0 %v3169, 32
  %v3172 = vpop.permute.xlu0 %3171
  %v3174 = vadd.f32 %v3164, %v3172
  %v3175 = vtanh.pop %v3174
  %3177 = vrot.lane.b32.xlu0 %v3175, 64
  %v3178 = vpop.permute.xlu0 %3177
  %v3180 = vmul.f32 %v3162, %v3178
  %v3181 = vxor.u32 %v3156, 2147483648
  %v3182 = vmul.f32 %v3181, 1.442695
  %v3183 = vpow.pop %v3182
  %v3184 = vadd.f32 %v3183, 1.0
  %v3185 = vrcp.pop %v3184
  %v3186 = vmul.f32 1.0, %v3185
  %v3187 = vtanh.pop %v3156
  %v3188 = vmul.f32 %v3186, %v2996
  %3190 = vrot.lane.b32.xlu0 %v3187, 64
  %v3191 = vpop.permute.xlu0 %3190
  %v3193 = vmul.f32 %v3186, %v3191
  %3195 = vrot.lane.b32.xlu0 %v3193, 32
  %v3196 = vpop.permute.xlu0 %3195
  %v3198 = vadd.f32 %v3188, %v3196
  %v3199 = vtanh.pop %v3198
  %3201 = vrot.lane.b32.xlu0 %v3199, 64
  %v3202 = vpop.permute.xlu0 %3201
  %v3204 = vmul.f32 %v3186, %v3202
  %v3205 = vld [vmem:[#allocation2 + $0x70] sm:$0xff]
  %v3206 = vld [vmem:[#allocation2 + $0x8] sm:$0xff]
  %3208 = vrot.lane.b32.xlu0 %v3180, 32
  %v3209 = vpop.permute.xlu0 %3208
  %v3210 = vsel %vm281, %v3209, 0
  %3212 = vmatprep.subr.mxu0 0.0
  %3213 = vmatpush1.msra.mxu0 0.0
  %3214 = vmatprep.subr.mxu0 0.0
  %3215 = vmatpush1.msra.mxu0 0.0
  %3216 = vmatprep.subr.mxu0 0.0
  %3217 = vmatpush1.msra.mxu0 0.0
  %3218 = vmatprep.subr.mxu0 0.0
  %3219 = vmatpush1.msra.mxu0 0.0
  %3220 = vmatprep.subr.mxu0 0.0
  %3221 = vmatpush1.msra.mxu0 0.0
  %3222 = vmatprep.subr.mxu0 0.0
  %3223 = vmatpush1.msra.mxu0 0.0
  %3224 = vmatprep.subr.mxu0 0.0
  %3225 = vmatpush1.msra.mxu0 0.0
  %3226 = vmatprep.subr.mxu0 0.0
  %3227 = vmatpush1.msra.mxu0 0.0
  %3228 = vmatprep.subr.mxu0 0.0
  %3229 = vmatpush1.msra.mxu0 0.0
  %3230 = vmatprep.subr.mxu0 0.0
  %3231 = vmatpush1.msra.mxu0 0.0
  %3232 = vmatprep.subr.mxu0 0.0
  %3233 = vmatpush1.msra.mxu0 0.0
  %3234 = vmatprep.subr.mxu0 0.0
  %3235 = vmatpush1.msra.mxu0 0.0
  %3236 = vmatprep.subr.mxu0 0.0
  %3237 = vmatpush1.msra.mxu0 %v1938
  %3238 = vmatprep.subr.mxu0 0.0
  %3239 = vmatpush1.msra.mxu0 %v1937
  %3240 = vmatprep.subr.mxu0 0.0
  %3241 = vmatpush1.msra.mxu0 %v1936
  %3242 = vmatprep.subr.mxu0 0.0
  %3243 = vmatpush1.msra.mxu0 %v1935
  %3244 = vmatprep.subr.mxu0 0.0
  %3245 = vmatpush2.msra.mxu0 0.0
  %3246 = vmatprep.subr.mxu0 0.0
  %3247 = vmatpush2.msra.mxu0 0.0
  %3248 = vmatprep.subr.mxu0 0.0
  %3249 = vmatpush2.msra.mxu0 0.0
  %3250 = vmatprep.subr.mxu0 0.0
  %3251 = vmatpush2.msra.mxu0 0.0
  %3252 = vmatprep.subr.mxu0 0.0
  %3253 = vmatpush2.msra.mxu0 0.0
  %3254 = vmatprep.subr.mxu0 0.0
  %3255 = vmatpush2.msra.mxu0 0.0
  %3256 = vmatprep.subr.mxu0 0.0
  %3257 = vmatpush2.msra.mxu0 0.0
  %3258 = vmatprep.subr.mxu0 0.0
  %3259 = vmatpush2.msra.mxu0 0.0
  %3260 = vmatprep.subr.mxu0 0.0
  %3261 = vmatpush2.msra.mxu0 0.0
  %3262 = vmatprep.subr.mxu0 0.0
  %3263 = vmatpush2.msra.mxu0 0.0
  %3264 = vmatprep.subr.mxu0 0.0
  %3265 = vmatpush2.msra.mxu0 0.0
  %3266 = vmatprep.subr.mxu0 0.0
  %3267 = vmatpush2.msra.mxu0 0.0
  %3268 = vmatprep.subr.mxu0 0.0
  %3269 = vmatpush2.msra.mxu0 0.0
  %3270 = vmatprep.subr.mxu0 0.0
  %3271 = vmatpush2.msra.mxu0 0.0
  %3272 = vmatprep.subr.mxu0 0.0
  %3273 = vmatpush2.msra.mxu0 0.0
  %3274 = vmatprep.subr.mxu0 0.0
  %3275 = vmatpush2.msra.mxu0 0.0
  %3276 = vmatprep.mubr.f32.mxu0 0.0
  %3277 = vmatmul.mubr.f32.gmra.mxu0 %v3210
  %v3278 = vpop.f32.mrf.mxu0
  %v3279 = vadd.f32 0.0, %v3278
  %v3280 = vpop.f32.mrf.mxu0
  %3281 = vdwg.mxu0
  %v3282 = vadd.f32 %v3205, %v3279
  %3284 = vrot.lane.b32.xlu0 %v3204, 32
  %v3285 = vpop.permute.xlu0 %3284
  %v3286 = vsel %vm281, %v3285, 0
  %3288 = vmatprep.subr.mxu0 0.0
  %3289 = vmatpush1.msra.mxu0 0.0
  %3290 = vmatprep.subr.mxu0 0.0
  %3291 = vmatpush1.msra.mxu0 0.0
  %3292 = vmatprep.subr.mxu0 0.0
  %3293 = vmatpush1.msra.mxu0 0.0
  %3294 = vmatprep.subr.mxu0 0.0
  %3295 = vmatpush1.msra.mxu0 0.0
  %3296 = vmatprep.subr.mxu0 0.0
  %3297 = vmatpush1.msra.mxu0 0.0
  %3298 = vmatprep.subr.mxu0 0.0
  %3299 = vmatpush1.msra.mxu0 0.0
  %3300 = vmatprep.subr.mxu0 0.0
  %3301 = vmatpush1.msra.mxu0 0.0
  %3302 = vmatprep.subr.mxu0 0.0
  %3303 = vmatpush1.msra.mxu0 0.0
  %3304 = vmatprep.subr.mxu0 0.0
  %3305 = vmatpush1.msra.mxu0 0.0
  %3306 = vmatprep.subr.mxu0 0.0
  %3307 = vmatpush1.msra.mxu0 0.0
  %3308 = vmatprep.subr.mxu0 0.0
  %3309 = vmatpush1.msra.mxu0 0.0
  %3310 = vmatprep.subr.mxu0 0.0
  %3311 = vmatpush1.msra.mxu0 0.0
  %3312 = vmatprep.subr.mxu0 0.0
  %3313 = vmatpush1.msra.mxu0 %v1942
  %3314 = vmatprep.subr.mxu0 0.0
  %3315 = vmatpush1.msra.mxu0 %v1941
  %3316 = vmatprep.subr.mxu0 0.0
  %3317 = vmatpush1.msra.mxu0 %v1940
  %3318 = vmatprep.subr.mxu0 0.0
  %3319 = vmatpush1.msra.mxu0 %v1939
  %3320 = vmatprep.subr.mxu0 0.0
  %3321 = vmatpush2.msra.mxu0 0.0
  %3322 = vmatprep.subr.mxu0 0.0
  %3323 = vmatpush2.msra.mxu0 0.0
  %3324 = vmatprep.subr.mxu0 0.0
  %3325 = vmatpush2.msra.mxu0 0.0
  %3326 = vmatprep.subr.mxu0 0.0
  %3327 = vmatpush2.msra.mxu0 0.0
  %3328 = vmatprep.subr.mxu0 0.0
  %3329 = vmatpush2.msra.mxu0 0.0
  %3330 = vmatprep.subr.mxu0 0.0
  %3331 = vmatpush2.msra.mxu0 0.0
  %3332 = vmatprep.subr.mxu0 0.0
  %3333 = vmatpush2.msra.mxu0 0.0
  %3334 = vmatprep.subr.mxu0 0.0
  %3335 = vmatpush2.msra.mxu0 0.0
  %3336 = vmatprep.subr.mxu0 0.0
  %3337 = vmatpush2.msra.mxu0 0.0
  %3338 = vmatprep.subr.mxu0 0.0
  %3339 = vmatpush2.msra.mxu0 0.0
  %3340 = vmatprep.subr.mxu0 0.0
  %3341 = vmatpush2.msra.mxu0 0.0
  %3342 = vmatprep.subr.mxu0 0.0
  %3343 = vmatpush2.msra.mxu0 0.0
  %3344 = vmatprep.subr.mxu0 0.0
  %3345 = vmatpush2.msra.mxu0 0.0
  %3346 = vmatprep.subr.mxu0 0.0
  %3347 = vmatpush2.msra.mxu0 0.0
  %3348 = vmatprep.subr.mxu0 0.0
  %3349 = vmatpush2.msra.mxu0 0.0
  %3350 = vmatprep.subr.mxu0 0.0
  %3351 = vmatpush2.msra.mxu0 0.0
  %3352 = vmatprep.mubr.f32.mxu0 0.0
  %3353 = vmatmul.mubr.f32.gmra.mxu0 %v3286
  %v3354 = vpop.f32.mrf.mxu0
  %v3355 = vadd.f32 0.0, %v3354
  %v3356 = vpop.f32.mrf.mxu0
  %3357 = vdwg.mxu0
  %v3358 = vadd.f32 %v3206, %v3355
  %v3359 = vxor.u32 %v3282, 2147483648
  %v3360 = vmul.f32 %v3359, 1.442695
  %v3361 = vpow.pop %v3360
  %v3362 = vadd.f32 %v3361, 1.0
  %v3363 = vrcp.pop %v3362
  %v3364 = vmul.f32 1.0, %v3363
  %v3365 = vtanh.pop %v3282
  %v3366 = vmul.f32 %v3364, %v3174
  %3368 = vrot.lane.b32.xlu0 %v3365, 64
  %v3369 = vpop.permute.xlu0 %3368
  %v3371 = vmul.f32 %v3364, %v3369
  %3373 = vrot.lane.b32.xlu0 %v3371, 32
  %v3374 = vpop.permute.xlu0 %3373
  %v3376 = vadd.f32 %v3366, %v3374
  %v3377 = vtanh.pop %v3376
  %3379 = vrot.lane.b32.xlu0 %v3377, 64
  %v3380 = vpop.permute.xlu0 %3379
  %v3382 = vmul.f32 %v3364, %v3380
  %v3383 = vxor.u32 %v3358, 2147483648
  %v3384 = vmul.f32 %v3383, 1.442695
  %v3385 = vpow.pop %v3384
  %v3386 = vadd.f32 %v3385, 1.0
  %v3387 = vrcp.pop %v3386
  %v3388 = vmul.f32 1.0, %v3387
  %v3389 = vtanh.pop %v3358
  %v3390 = vmul.f32 %v3388, %v3198
  %3392 = vrot.lane.b32.xlu0 %v3389, 64
  %v3393 = vpop.permute.xlu0 %3392
  %v3395 = vmul.f32 %v3388, %v3393
  %3397 = vrot.lane.b32.xlu0 %v3395, 32
  %v3398 = vpop.permute.xlu0 %3397
  %v3400 = vadd.f32 %v3390, %v3398
  %v3401 = vtanh.pop %v3400
  %3403 = vrot.lane.b32.xlu0 %v3401, 64
  %v3404 = vpop.permute.xlu0 %3403
  %v3406 = vmul.f32 %v3388, %v3404
  %v3407 = vld [vmem:[%s9] sm:$0xff]
  %v3408 = vld [vmem:[%s9 + $0x8] sm:$0xff]
  %v3409 = vld [vmem:[%s9 + $0x10] sm:$0xff]
  %v3410 = vld [vmem:[%s9 + $0x18] sm:$0xff]
  %v3411 = vld [vmem:[%s10] sm:$0xff]
  %v3412 = vld [vmem:[%s10 + $0x8] sm:$0xff]
  %v3413 = vld [vmem:[%s10 + $0x10] sm:$0xff]
  %v3414 = vld [vmem:[%s10 + $0x18] sm:$0xff]
  %3416 = vrot.lane.b32.xlu0 %v3382, 32
  %v3417 = vpop.permute.xlu0 %3416
  %v3418 = vsel %vm281, %v3417, 0
  %3420 = vmatprep.subr.mxu0 0.0
  %3421 = vmatpush1.msra.mxu0 0.0
  %3422 = vmatprep.subr.mxu0 0.0
  %3423 = vmatpush1.msra.mxu0 0.0
  %3424 = vmatprep.subr.mxu0 0.0
  %3425 = vmatpush1.msra.mxu0 0.0
  %3426 = vmatprep.subr.mxu0 0.0
  %3427 = vmatpush1.msra.mxu0 0.0
  %3428 = vmatprep.subr.mxu0 0.0
  %3429 = vmatpush1.msra.mxu0 0.0
  %3430 = vmatprep.subr.mxu0 0.0
  %3431 = vmatpush1.msra.mxu0 0.0
  %3432 = vmatprep.subr.mxu0 0.0
  %3433 = vmatpush1.msra.mxu0 0.0
  %3434 = vmatprep.subr.mxu0 0.0
  %3435 = vmatpush1.msra.mxu0 0.0
  %3436 = vmatprep.subr.mxu0 0.0
  %3437 = vmatpush1.msra.mxu0 0.0
  %3438 = vmatprep.subr.mxu0 0.0
  %3439 = vmatpush1.msra.mxu0 0.0
  %3440 = vmatprep.subr.mxu0 0.0
  %3441 = vmatpush1.msra.mxu0 0.0
  %3442 = vmatprep.subr.mxu0 0.0
  %3443 = vmatpush1.msra.mxu0 0.0
  %3444 = vmatprep.subr.mxu0 0.0
  %3445 = vmatpush1.msra.mxu0 %v3414
  %3446 = vmatprep.subr.mxu0 0.0
  %3447 = vmatpush1.msra.mxu0 %v3413
  %3448 = vmatprep.subr.mxu0 0.0
  %3449 = vmatpush1.msra.mxu0 %v3412
  %3450 = vmatprep.subr.mxu0 0.0
  %3451 = vmatpush1.msra.mxu0 %v3411
  %3452 = vmatprep.subr.mxu0 0.0
  %3453 = vmatpush2.msra.mxu0 0.0
  %3454 = vmatprep.subr.mxu0 0.0
  %3455 = vmatpush2.msra.mxu0 0.0
  %3456 = vmatprep.subr.mxu0 0.0
  %3457 = vmatpush2.msra.mxu0 0.0
  %3458 = vmatprep.subr.mxu0 0.0
  %3459 = vmatpush2.msra.mxu0 0.0
  %3460 = vmatprep.subr.mxu0 0.0
  %3461 = vmatpush2.msra.mxu0 0.0
  %3462 = vmatprep.subr.mxu0 0.0
  %3463 = vmatpush2.msra.mxu0 0.0
  %3464 = vmatprep.subr.mxu0 0.0
  %3465 = vmatpush2.msra.mxu0 0.0
  %3466 = vmatprep.subr.mxu0 0.0
  %3467 = vmatpush2.msra.mxu0 0.0
  %3468 = vmatprep.subr.mxu0 0.0
  %3469 = vmatpush2.msra.mxu0 0.0
  %3470 = vmatprep.subr.mxu0 0.0
  %3471 = vmatpush2.msra.mxu0 0.0
  %3472 = vmatprep.subr.mxu0 0.0
  %3473 = vmatpush2.msra.mxu0 0.0
  %3474 = vmatprep.subr.mxu0 0.0
  %3475 = vmatpush2.msra.mxu0 0.0
  %3476 = vmatprep.subr.mxu0 0.0
  %3477 = vmatpush2.msra.mxu0 0.0
  %3478 = vmatprep.subr.mxu0 0.0
  %3479 = vmatpush2.msra.mxu0 0.0
  %3480 = vmatprep.subr.mxu0 0.0
  %3481 = vmatpush2.msra.mxu0 0.0
  %3482 = vmatprep.subr.mxu0 0.0
  %3483 = vmatpush2.msra.mxu0 0.0
  %3484 = vmatprep.mubr.f32.mxu0 0.0
  %3485 = vmatmul.mubr.f32.gmra.mxu0 %v3418
  %v3486 = vpop.f32.mrf.mxu0
  %v3487 = vadd.f32 0.0, %v3486
  %v3488 = vpop.f32.mrf.mxu0
  %3489 = vdwg.mxu0
  %3491 = vrot.lane.b32.xlu0 %v3406, 32
  %v3492 = vpop.permute.xlu0 %3491
  %v3493 = vsel %vm281, %v3492, 0
  %3495 = vmatprep.subr.mxu0 0.0
  %3496 = vmatpush1.msra.mxu0 0.0
  %3497 = vmatprep.subr.mxu0 0.0
  %3498 = vmatpush1.msra.mxu0 0.0
  %3499 = vmatprep.subr.mxu0 0.0
  %3500 = vmatpush1.msra.mxu0 0.0
  %3501 = vmatprep.subr.mxu0 0.0
  %3502 = vmatpush1.msra.mxu0 0.0
  %3503 = vmatprep.subr.mxu0 0.0
  %3504 = vmatpush1.msra.mxu0 0.0
  %3505 = vmatprep.subr.mxu0 0.0
  %3506 = vmatpush1.msra.mxu0 0.0
  %3507 = vmatprep.subr.mxu0 0.0
  %3508 = vmatpush1.msra.mxu0 0.0
  %3509 = vmatprep.subr.mxu0 0.0
  %3510 = vmatpush1.msra.mxu0 0.0
  %3511 = vmatprep.subr.mxu0 0.0
  %3512 = vmatpush1.msra.mxu0 0.0
  %3513 = vmatprep.subr.mxu0 0.0
  %3514 = vmatpush1.msra.mxu0 0.0
  %3515 = vmatprep.subr.mxu0 0.0
  %3516 = vmatpush1.msra.mxu0 0.0
  %3517 = vmatprep.subr.mxu0 0.0
  %3518 = vmatpush1.msra.mxu0 0.0
  %3519 = vmatprep.subr.mxu0 0.0
  %3520 = vmatpush1.msra.mxu0 %v3410
  %3521 = vmatprep.subr.mxu0 0.0
  %3522 = vmatpush1.msra.mxu0 %v3409
  %3523 = vmatprep.subr.mxu0 0.0
  %3524 = vmatpush1.msra.mxu0 %v3408
  %3525 = vmatprep.subr.mxu0 0.0
  %3526 = vmatpush1.msra.mxu0 %v3407
  %3527 = vmatprep.subr.mxu0 0.0
  %3528 = vmatpush2.msra.mxu0 0.0
  %3529 = vmatprep.subr.mxu0 0.0
  %3530 = vmatpush2.msra.mxu0 0.0
  %3531 = vmatprep.subr.mxu0 0.0
  %3532 = vmatpush2.msra.mxu0 0.0
  %3533 = vmatprep.subr.mxu0 0.0
  %3534 = vmatpush2.msra.mxu0 0.0
  %3535 = vmatprep.subr.mxu0 0.0
  %3536 = vmatpush2.msra.mxu0 0.0
  %3537 = vmatprep.subr.mxu0 0.0
  %3538 = vmatpush2.msra.mxu0 0.0
  %3539 = vmatprep.subr.mxu0 0.0
  %3540 = vmatpush2.msra.mxu0 0.0
  %3541 = vmatprep.subr.mxu0 0.0
  %3542 = vmatpush2.msra.mxu0 0.0
  %3543 = vmatprep.subr.mxu0 0.0
  %3544 = vmatpush2.msra.mxu0 0.0
  %3545 = vmatprep.subr.mxu0 0.0
  %3546 = vmatpush2.msra.mxu0 0.0
  %3547 = vmatprep.subr.mxu0 0.0
  %3548 = vmatpush2.msra.mxu0 0.0
  %3549 = vmatprep.subr.mxu0 0.0
  %3550 = vmatpush2.msra.mxu0 0.0
  %3551 = vmatprep.subr.mxu0 0.0
  %3552 = vmatpush2.msra.mxu0 0.0
  %3553 = vmatprep.subr.mxu0 0.0
  %3554 = vmatpush2.msra.mxu0 0.0
  %3555 = vmatprep.subr.mxu0 0.0
  %3556 = vmatpush2.msra.mxu0 0.0
  %3557 = vmatprep.subr.mxu0 0.0
  %3558 = vmatpush2.msra.mxu0 0.0
  %3559 = vmatprep.mubr.f32.mxu0 0.0
  %3560 = vmatmul.mubr.f32.gmra.mxu0 %v3493
  %v3561 = vpop.f32.mrf.mxu0
  %v3562 = vadd.f32 %v3487, %v3561
  %v3563 = vpop.f32.mrf.mxu0
  %3564 = vdwg.mxu0
  %v3565 = vld [vmem:[%s11] sm:$0x1]
  %v3567 = vlaneseq
  %v3568 = vshrl.u32 %v3567, 7
  %v3569 = vsub.s32 0, %v3568
  %v3570 = vrot.slane %v3565, %v3569
  %v3572 = vadd.f32 %v3562, %v3570
  %v3573 = vmax.f32 %v3572, 0.0
  %3574 = vst [vmem:[%s12] sm:$0xff] %v3573
  // Predicated region
  $region50: #{char_predictor_forward.1} parent=0 // pred_check
    _
  $region51: #{char_predictor_forward.1} parent=0 // pred_check_branch
    %3576 = sbr.rel (0) target = $region53
  $region52: #{char_predictor_forward.1} parent=0 // pred_region
    _
  $region53: #{char_predictor_forward.1} parent=0 // pred_fallthru
    _
  // Predicated region
  $region54: #{char_predictor_forward.1} parent=0 // pred_check
    _
  $region55: #{char_predictor_forward.1} parent=0 // pred_check_branch
    %3578 = sbr.rel (0) target = $region57
  $region56: #{char_predictor_forward.1} parent=0 // pred_region
    _
  $region57: #{char_predictor_forward.1} parent=0 // pred_fallthru
    _

</llo_original>
